<compile_context>
chip_gen: v7x
topology: tpu7x:2x2x1
jax: 0.10.0
libtpu: 0.0.40
codegen_flags: <defaults>
</compile_context>

<pallas_src>
import functools

import jax
import jax.numpy as jnp
from jax.experimental import pallas as pl
from jax.experimental.pallas import tpu as pltpu

LANE = 128  # TPU lane width.


# ----------------------------- Pallas kernels ------------------------------

def _mm_bias_relu_kernel(x_ref, w_ref, b_ref, o_ref):
    acc = jnp.dot(x_ref[...], w_ref[...], preferred_element_type=jnp.float32)
    o_ref[...] = jnp.maximum(acc + b_ref[...], 0.0).astype(o_ref.dtype)


def matmul_bias_relu(x, w, b, *, out_dtype=jnp.bfloat16, tile_m=512):
    """relu(x @ w + b). x:(M,K) bf16, w:(K,N) bf16, b:(1,N) f32."""
    M, K = x.shape
    K2, N = w.shape
    assert K == K2
    if M <= tile_m:
        tm, Mp = M, M                       # single full-array block
    else:
        tm = tile_m
        Mp = pl.cdiv(M, tm) * tm
        if Mp != M:
            x = jnp.pad(x, ((0, Mp - M), (0, 0)))
    out = pl.pallas_call(
        _mm_bias_relu_kernel,
        out_shape=jax.ShapeDtypeStruct((Mp, N), out_dtype),
        grid=(Mp // tm,),
        in_specs=[
            pl.BlockSpec((tm, K), lambda i: (i, 0)),
            pl.BlockSpec((K, N), lambda i: (0, 0)),
            pl.BlockSpec((1, N), lambda i: (0, 0)),
        ],
        out_specs=pl.BlockSpec((tm, N), lambda i: (i, 0)),
        compiler_params=pltpu.CompilerParams(dimension_semantics=("parallel",)),
    )(x, w, b)
    return out[:M] if Mp != M else out


def _fused_tail_kernel(p2_ref, w2_ref, b2_ref, w3_ref, b3_ref,
                       wv1_ref, bv1_ref, wv2_ref, bv2_ref,
                       wa1_ref, ba1_ref, wa2_ref, ba2_ref,
                       v_ref, a_ref):
    f32, bf16 = jnp.float32, jnp.bfloat16
    tb = p2_ref.shape[1]

    # conv2 (4x4/s2 on the 8x8 map -> 3x3) fused with conv3 (3x3/s1 -> 1x1):
    # conv3 output accumulated tap-by-tap, so no in-kernel reshape/relayout.
    h3 = jnp.zeros((tb, LANE), dtype=f32)
    for j in range(9):                                   # static, unrolled
        y2 = jnp.dot(p2_ref[j], w2_ref[...], preferred_element_type=f32)
        y2 = jnp.maximum(y2 + b2_ref[...], 0.0)          # (tb, 64) f32
        h3 = h3 + jnp.dot(y2.astype(bf16), w3_ref[j], preferred_element_type=f32)
    feats = jnp.maximum(h3 + b3_ref[...], 0.0).astype(bf16)   # (tb, 128); 64 real

    # value stream: Linear(64,512) + ReLU + Linear(512,1) (lane 0 real)
    hv = jnp.dot(feats, wv1_ref[...], preferred_element_type=f32)
    hv = jnp.maximum(hv + bv1_ref[...], 0.0)
    v = jnp.dot(hv.astype(bf16), wv2_ref[...], preferred_element_type=f32) + bv2_ref[...]
    v_ref[...] = v.astype(v_ref.dtype)

    # advantage stream: Linear(64,512) + ReLU + Linear(512,n_actions) (padded)
    ha = jnp.dot(feats, wa1_ref[...], preferred_element_type=f32)
    ha = jnp.maximum(ha + ba1_ref[...], 0.0)
    a = jnp.dot(ha.astype(bf16), wa2_ref[...], preferred_element_type=f32) + ba2_ref[...]
    a_ref[...] = a.astype(a_ref.dtype)


def fused_tail(p2, packed, *, tile_b=128):
    """conv2 + conv3 + value/advantage streams, B-tiled. p2: (9, B, 512) bf16.
    Returns lane-dense (B,128) V and A slabs (dueling combine done in XLA)."""
    B = p2.shape[1]
    if B <= tile_b:
        tb, Bp = B, B
    else:
        tb = tile_b
        Bp = pl.cdiv(B, tb) * tb
        if Bp != B:
            p2 = jnp.pad(p2, ((0, 0), (0, Bp - B), (0, 0)))

    weights = (packed["w2"], packed["b2"], packed["w3"], packed["b3"],
               packed["wv1"], packed["bv1"], packed["wv2"], packed["bv2"],
               packed["wa1"], packed["ba1"], packed["wa2"], packed["ba2"])
    w_specs = [pl.BlockSpec(w.shape, lambda i, _nd=w.ndim: (0,) * _nd)
               for w in weights]

    v, a = pl.pallas_call(
        _fused_tail_kernel,
        out_shape=(jax.ShapeDtypeStruct((Bp, LANE), jnp.float32),
                   jax.ShapeDtypeStruct((Bp, LANE), jnp.float32)),
        grid=(Bp // tb,),
        in_specs=[pl.BlockSpec((9, tb, 512), lambda i: (0, i, 0))] + w_specs,
        out_specs=[pl.BlockSpec((tb, LANE), lambda i: (i, 0)),
                   pl.BlockSpec((tb, LANE), lambda i: (i, 0))],
        compiler_params=pltpu.CompilerParams(dimension_semantics=("parallel",)),
    )(p2, *weights)
    return v[:B], a[:B]


# ----------------------------- Parameter prep ------------------------------

def init_params(key, in_channels, n_actions):
    """Synthetic PyTorch-style init (uniform +-1/sqrt(fan_in)), PyTorch layouts.
    Linear weights are stored pre-transposed to (in, out)."""
    ks = jax.random.split(key, 14)

    def u(k, shape, fan_in):
        bound = 1.0 / float(fan_in) ** 0.5
        return jax.random.uniform(k, shape, jnp.float32, -bound, bound)

    p = {}
    p["w1"] = u(ks[0], (32, in_channels, 8, 8), in_channels * 64)
    p["b1"] = u(ks[1], (32,), in_channels * 64)
    p["w2"] = u(ks[2], (64, 32, 4, 4), 32 * 16)
    p["b2"] = u(ks[3], (64,), 32 * 16)
    p["w3"] = u(ks[4], (64, 64, 3, 3), 64 * 9)
    p["b3"] = u(ks[5], (64,), 64 * 9)
    p["vw1"] = u(ks[6], (64, 512), 64);   p["vb1"] = u(ks[7], (512,), 64)
    p["vw2"] = u(ks[8], (512, 1), 512);   p["vb2"] = u(ks[9], (1,), 512)
    p["aw1"] = u(ks[10], (64, 512), 64);  p["ab1"] = u(ks[11], (512,), 64)
    p["aw2"] = u(ks[12], (512, n_actions), 512)
    p["ab2"] = u(ks[13], (n_actions,), 512)
    return p


def pack_params(raw):
    """One-time re-layout: tight (K,N) matmul weights (no zero-padded K),
    bf16 MXU operands, f32 biases, outputs padded to 128 lanes only where they
    are stored to HBM (wv2/wa2)."""
    f32, bf16 = jnp.float32, jnp.bfloat16
    na = raw["aw2"].shape[1]
    assert na <= LANE

    def pad_to(x, shape):
        return jnp.pad(x, [(0, t - s) for s, t in zip(x.shape, shape)])

    p = {"n_actions": na}
    c_in = raw["w1"].shape[1]
    # conv1: patch features ordered (cin, kh, kw) == w1.reshape(32,-1) rows.
    # Output kept at its 32 real channels (feeds conv2's 512-wide patches).
    p["w1"] = raw["w1"].reshape(32, c_in * 64).T.astype(bf16)          # (c_in*64, 32)
    p["b1"] = raw["b1"].reshape(1, 32).astype(f32)
    # conv2: tight K=512 (cin,kh,kw rows) x N=64 real output channels.
    p["w2"] = raw["w2"].transpose(1, 2, 3, 0).reshape(32 * 16, 64).astype(bf16)
    p["b2"] = raw["b2"].reshape(1, 64).astype(f32)
    # conv3: per spatial tap j = h*3 + w, a (64_in, 128_out-padded) matrix.
    w3 = raw["w3"].transpose(2, 3, 1, 0).reshape(9, 64, 64)            # (j, i, o)
    p["w3"] = pad_to(w3, (9, 64, LANE)).astype(bf16)
    p["b3"] = pad_to(raw["b3"], (LANE,)).reshape(1, LANE).astype(f32)
    # value stream
    p["wv1"] = pad_to(raw["vw1"], (LANE, 512)).astype(bf16)            # rows 64.. zero
    p["bv1"] = raw["vb1"].reshape(1, 512).astype(f32)
    p["wv2"] = pad_to(raw["vw2"], (512, LANE)).astype(bf16)            # lane 0 real
    p["bv2"] = pad_to(raw["vb2"], (LANE,)).reshape(1, LANE).astype(f32)
    # advantage stream
    p["wa1"] = pad_to(raw["aw1"], (LANE, 512)).astype(bf16)
    p["ba1"] = raw["ab1"].reshape(1, 512).astype(f32)
    p["wa2"] = pad_to(raw["aw2"], (512, LANE)).astype(bf16)            # lanes < na real
    p["ba2"] = pad_to(raw["ab2"], (LANE,)).reshape(1, LANE).astype(f32)
    return p


# --------------------------------- Forward ---------------------------------

def convddqn_forward(packed, state, hs=None):
    """Mirrors ConvDDQN.forward. state: (B, C, H, W) NCHW -> (Q:(B,n_actions), hs)."""
    n_actions = packed["n_actions"]
    B = state.shape[0]
    x = state.transpose(0, 2, 3, 1).astype(jnp.bfloat16)       # NCHW -> NHWC, once

    # conv1 as GEMM over 8x8/stride-4 patches (single fused XLA patches op).
    p1 = jax.lax.conv_general_dilated_patches(
        x, (8, 8), (4, 4), "VALID", dimension_numbers=("NHWC", "HWIO", "NHWC"))
    _, h1, w1, k1 = p1.shape
    y1 = matmul_bias_relu(p1.reshape(B * h1 * w1, k1), packed["w1"], packed["b1"])
    y1 = y1.reshape(B, h1, w1, 32)                              # 32 real channels only

    # conv2 patches: tight 512-wide features, re-laid out position-major so the
    # fused tail kernel reads contiguous (tb, 512) slabs per tap.
    p2 = jax.lax.conv_general_dilated_patches(
        y1, (4, 4), (2, 2), "VALID", dimension_numbers=("NHWC", "HWIO", "NHWC"))
    _, h2, w2, k2 = p2.shape
    assert (h2, w2, k2) == (3, 3, 512), "ConvDDQN head requires a 36x36 spatial input"
    p2 = p2.reshape(B, 9, 512).transpose(1, 0, 2)               # (9, B, 512)

    # fused conv2 + conv3 + value/advantage streams (one B-tiled pallas_call).
    v_full, a_full = fused_tail(p2, packed)
    v = v_full[:, :1]                                           # (B, 1)
    a = a_full[:, :n_actions]                                   # (B, n_actions)
    # PyTorch `A.mean()` with no dim: global scalar mean over (batch, n_actions).
    q = v + (a - jnp.mean(a))
    # TODO(synk): nn.LSTM is constructed in __init__ but commented out of the
    # PyTorch forward, so it is intentionally not executed; hs passes through.
    return q, hs


def convddqn_reference(raw, state):
    """Pure-JAX f32 mirror of the PyTorch forward (correctness check only)."""
    def conv_relu(x, w, b, s):
        y = jax.lax.conv_general_dilated(
            x, w, (s, s), "VALID", dimension_numbers=("NCHW", "OIHW", "NCHW"))
        return jax.nn.relu(y + b[None, :, None, None])

    x = conv_relu(state, raw["w1"], raw["b1"], 4)
    x = conv_relu(x, raw["w2"], raw["b2"], 2)
    x = conv_relu(x, raw["w3"], raw["b3"], 1)
    f = x.reshape(x.shape[0], -1)
    v = jax.nn.relu(f @ raw["vw1"] + raw["vb1"]) @ raw["vw2"] + raw["vb2"]
    a = jax.nn.relu(f @ raw["aw1"] + raw["ab1"]) @ raw["aw2"] + raw["ab2"]
    return v + (a - jnp.mean(a))


if __name__ == "__main__":
    key = jax.random.PRNGKey(0)
    kp, kx = jax.random.split(key)

    B, C, H, W = 2, 4, 36, 36     # 36x36 so the conv stack ends at 1x1x64
    n_actions = 6

    raw = init_params(kp, C, n_actions)
    packed = pack_params(raw)
    state = jax.random.uniform(kx, (B, C, H, W), jnp.float32)

    fwd = jax.jit(functools.partial(convddqn_forward, packed))
    q, hs = fwd(state)
    q = jax.block_until_ready(q)

    q_ref = convddqn_reference(raw, state)
    err = float(jnp.max(jnp.abs(q - q_ref)))
    assert q.shape == (B, n_actions) and q.dtype == jnp.float32 and hs is None
    assert err < 5e-2, f"max |q - q_ref| = {err}"
    print("KERNEL_OK")
</pallas_src>

<mosaic_0001>
module attributes {stable_mosaic.version = 11 : i64} {
  func.func @_mm_bias_relu_kernel(%arg0: i32, %arg1: memref<128x256xbf16, #tpu.memory_space<vmem>>, %arg2: memref<256x32xbf16, #tpu.memory_space<vmem>>, %arg3: memref<1x32xf32, #tpu.memory_space<vmem>>, %arg4: memref<128x32xbf16, #tpu.memory_space<vmem>>) attributes {dimension_semantics = [#tpu.dimension_semantics<parallel>], iteration_bounds = array<i64: 1>, scalar_prefetch = 0 : i64, scratch_operands = 0 : i64, tpu.core_type = #tpu.core_type<tc>, window_params = [{transform_indices = @transform_0, window_bounds = array<i64: 128, 256>}, {pipeline_mode = #tpu.pipeline_mode<synchronous>, transform_indices = @transform_1, window_bounds = array<i64: 256, 32>}, {pipeline_mode = #tpu.pipeline_mode<synchronous>, transform_indices = @transform_2, window_bounds = array<i64: 1, 32>}, {transform_indices = @transform_3, window_bounds = array<i64: 128, 32>}]} {
    %c0 = arith.constant 0 : index
    %c0_0 = arith.constant 0 : index
    %0 = vector.load %arg1[%c0, %c0_0] : memref<128x256xbf16, #tpu.memory_space<vmem>>, vector<128x256xbf16>
    %c0_1 = arith.constant 0 : index
    %c0_2 = arith.constant 0 : index
    %1 = vector.load %arg2[%c0_1, %c0_2] : memref<256x32xbf16, #tpu.memory_space<vmem>>, vector<256x32xbf16>
    %cst = arith.constant dense<0.000000e+00> : vector<128x32xf32>
    %2 = tpu.matmul %0, %1, %cst {dimension_numbers = #tpu.dot_dimension_numbers<[1], [0], [0], [1], [0, 0, 1, 1], [], []>} : vector<128x256xbf16>, vector<256x32xbf16>, vector<128x32xf32> -> vector<128x32xf32>
    %c0_3 = arith.constant 0 : index
    %c0_4 = arith.constant 0 : index
    %3 = vector.load %arg3[%c0_3, %c0_4] : memref<1x32xf32, #tpu.memory_space<vmem>>, vector<1x32xf32>
    %4 = vector.broadcast %3 : vector<1x32xf32> to vector<128x32xf32>
    %5 = arith.addf %2, %4 : vector<128x32xf32>
    %cst_5 = arith.constant 0.000000e+00 : f32
    %6 = vector.broadcast %cst_5 : f32 to vector<128x32xf32>
    %7 = arith.maximumf %5, %6 : vector<128x32xf32>
    %8 = arith.truncf %7 : vector<128x32xf32> to vector<128x32xbf16>
    %c0_6 = arith.constant 0 : index
    %c0_7 = arith.constant 0 : index
    %9 = vector.load %arg4[%c0_6, %c0_7] : memref<128x32xbf16, #tpu.memory_space<vmem>>, vector<128x32xbf16>
    tpu.vector_store %arg4[%c0_6, %c0_7], %8 {strides = array<i32>} : memref<128x32xbf16, #tpu.memory_space<vmem>>, vector<128x32xbf16>,
    return
  }
  func.func @transform_0(%arg0: i32) -> (i32, i32) {
    %c0_i32 = arith.constant 0 : i32
    %c0_i32_0 = arith.constant 0 : i32
    return %arg0, %c0_i32 : i32, i32
  }
  func.func @transform_1(%arg0: i32) -> (i32, i32) {
    %c0_i32 = arith.constant 0 : i32
    %c0_i32_0 = arith.constant 0 : i32
    %c0_i32_1 = arith.constant 0 : i32
    return %c0_i32, %c0_i32_0 : i32, i32
  }
  func.func @transform_2(%arg0: i32) -> (i32, i32) {
    %c0_i32 = arith.constant 0 : i32
    %c0_i32_0 = arith.constant 0 : i32
    %c0_i32_1 = arith.constant 0 : i32
    return %c0_i32, %c0_i32_0 : i32, i32
  }
  func.func @transform_3(%arg0: i32) -> (i32, i32) {
    %c0_i32 = arith.constant 0 : i32
    %c0_i32_0 = arith.constant 0 : i32
    return %arg0, %c0_i32 : i32, i32
  }
}

module attributes {stable_mosaic.version = 11 : i64} {
  func.func @_fused_tail_kernel(%arg0: i32, %arg1: memref<9x2x512xbf16, #tpu.memory_space<vmem>>, %arg2: memref<512x64xbf16, #tpu.memory_space<vmem>>, %arg3: memref<1x64xf32, #tpu.memory_space<vmem>>, %arg4: memref<9x64x128xbf16, #tpu.memory_space<vmem>>, %arg5: memref<1x128xf32, #tpu.memory_space<vmem>>, %arg6: memref<128x512xbf16, #tpu.memory_space<vmem>>, %arg7: memref<1x512xf32, #tpu.memory_space<vmem>>, %arg8: memref<512x128xbf16, #tpu.memory_space<vmem>>, %arg9: memref<1x128xf32, #tpu.memory_space<vmem>>, %arg10: memref<128x512xbf16, #tpu.memory_space<vmem>>, %arg11: memref<1x512xf32, #tpu.memory_space<vmem>>, %arg12: memref<512x128xbf16, #tpu.memory_space<vmem>>, %arg13: memref<1x128xf32, #tpu.memory_space<vmem>>, %arg14: memref<2x128xf32, #tpu.memory_space<vmem>>, %arg15: memref<2x128xf32, #tpu.memory_space<vmem>>) attributes {dimension_semantics = [#tpu.dimension_semantics<parallel>], iteration_bounds = array<i64: 1>, scalar_prefetch = 0 : i64, scratch_operands = 0 : i64, tpu.core_type = #tpu.core_type<tc>, window_params = [{transform_indices = @transform_0, window_bounds = array<i64: 9, 2, 512>}, {pipeline_mode = #tpu.pipeline_mode<synchronous>, transform_indices = @transform_1, window_bounds = array<i64: 512, 64>}, {pipeline_mode = #tpu.pipeline_mode<synchronous>, transform_indices = @transform_2, window_bounds = array<i64: 1, 64>}, {pipeline_mode = #tpu.pipeline_mode<synchronous>, transform_indices = @transform_3, window_bounds = array<i64: 9, 64, 128>}, {pipeline_mode = #tpu.pipeline_mode<synchronous>, transform_indices = @transform_4, window_bounds = array<i64: 1, 128>}, {pipeline_mode = #tpu.pipeline_mode<synchronous>, transform_indices = @transform_5, window_bounds = array<i64: 128, 512>}, {pipeline_mode = #tpu.pipeline_mode<synchronous>, transform_indices = @transform_6, window_bounds = array<i64: 1, 512>}, {pipeline_mode = #tpu.pipeline_mode<synchronous>, transform_indices = @transform_7, window_bounds = array<i64: 512, 128>}, {pipeline_mode = #tpu.pipeline_mode<synchronous>, transform_indices = @transform_8, window_bounds = array<i64: 1, 128>}, {pipeline_mode = #tpu.pipeline_mode<synchronous>, transform_indices = @transform_9, window_bounds = array<i64: 128, 512>}, {pipeline_mode = #tpu.pipeline_mode<synchronous>, transform_indices = @transform_10, window_bounds = array<i64: 1, 512>}, {pipeline_mode = #tpu.pipeline_mode<synchronous>, transform_indices = @transform_11, window_bounds = array<i64: 512, 128>}, {pipeline_mode = #tpu.pipeline_mode<synchronous>, transform_indices = @transform_12, window_bounds = array<i64: 1, 128>}, {transform_indices = @transform_13, window_bounds = array<i64: 2, 128>}, {transform_indices = @transform_14, window_bounds = array<i64: 2, 128>}]} {
    %cst = arith.constant 0.000000e+00 : f32
    %0 = vector.broadcast %cst : f32 to vector<2x128xf32>
    %c0 = arith.constant 0 : index
    %c0_0 = arith.constant 0 : index
    %c0_1 = arith.constant 0 : index
    %1 = vector.load %arg1[%c0, %c0_0, %c0_1] : memref<9x2x512xbf16, #tpu.memory_space<vmem>>, vector<1x2x512xbf16>
    %2 = vector.shape_cast %1 : vector<1x2x512xbf16> to vector<2x512xbf16>
    %c0_2 = arith.constant 0 : index
    %c0_3 = arith.constant 0 : index
    %3 = vector.load %arg2[%c0_2, %c0_3] : memref<512x64xbf16, #tpu.memory_space<vmem>>, vector<512x64xbf16>
    %cst_4 = arith.constant dense<0.000000e+00> : vector<2x64xf32>
    %4 = tpu.matmul %2, %3, %cst_4 {dimension_numbers = #tpu.dot_dimension_numbers<[1], [0], [0], [1], [0, 0, 1, 1], [], []>} : vector<2x512xbf16>, vector<512x64xbf16>, vector<2x64xf32> -> vector<2x64xf32>
    %c0_5 = arith.constant 0 : index
    %c0_6 = arith.constant 0 : index
    %5 = vector.load %arg3[%c0_5, %c0_6] : memref<1x64xf32, #tpu.memory_space<vmem>>, vector<1x64xf32>
    %6 = vector.broadcast %5 : vector<1x64xf32> to vector<2x64xf32>
    %7 = arith.addf %4, %6 : vector<2x64xf32>
    %cst_7 = arith.constant 0.000000e+00 : f32
    %8 = vector.broadcast %cst_7 : f32 to vector<2x64xf32>
    %9 = arith.maximumf %7, %8 : vector<2x64xf32>
    %10 = arith.truncf %9 : vector<2x64xf32> to vector<2x64xbf16>
    %c0_8 = arith.constant 0 : index
    %c0_9 = arith.constant 0 : index
    %c0_10 = arith.constant 0 : index
    %11 = vector.load %arg4[%c0_8, %c0_9, %c0_10] : memref<9x64x128xbf16, #tpu.memory_space<vmem>>, vector<1x64x128xbf16>
    %12 = vector.shape_cast %11 : vector<1x64x128xbf16> to vector<64x128xbf16>
    %cst_11 = arith.constant dense<0.000000e+00> : vector<2x128xf32>
    %13 = tpu.matmul %10, %12, %cst_11 {dimension_numbers = #tpu.dot_dimension_numbers<[1], [0], [0], [1], [0, 0, 1, 1], [], []>} : vector<2x64xbf16>, vector<64x128xbf16>, vector<2x128xf32> -> vector<2x128xf32>
    %14 = arith.addf %0, %13 : vector<2x128xf32>
    %c1 = arith.constant 1 : index
    %c0_12 = arith.constant 0 : index
    %c0_13 = arith.constant 0 : index
    %15 = vector.load %arg1[%c1, %c0_12, %c0_13] : memref<9x2x512xbf16, #tpu.memory_space<vmem>>, vector<1x2x512xbf16>
    %16 = vector.shape_cast %15 : vector<1x2x512xbf16> to vector<2x512xbf16>
    %c0_14 = arith.constant 0 : index
    %c0_15 = arith.constant 0 : index
    %17 = vector.load %arg2[%c0_14, %c0_15] : memref<512x64xbf16, #tpu.memory_space<vmem>>, vector<512x64xbf16>
    %cst_16 = arith.constant dense<0.000000e+00> : vector<2x64xf32>
    %18 = tpu.matmul %16, %17, %cst_16 {dimension_numbers = #tpu.dot_dimension_numbers<[1], [0], [0], [1], [0, 0, 1, 1], [], []>} : vector<2x512xbf16>, vector<512x64xbf16>, vector<2x64xf32> -> vector<2x64xf32>
    %c0_17 = arith.constant 0 : index
    %c0_18 = arith.constant 0 : index
    %19 = vector.load %arg3[%c0_17, %c0_18] : memref<1x64xf32, #tpu.memory_space<vmem>>, vector<1x64xf32>
    %20 = vector.broadcast %19 : vector<1x64xf32> to vector<2x64xf32>
    %21 = arith.addf %18, %20 : vector<2x64xf32>
    %cst_19 = arith.constant 0.000000e+00 : f32
    %22 = vector.broadcast %cst_19 : f32 to vector<2x64xf32>
    %23 = arith.maximumf %21, %22 : vector<2x64xf32>
    %24 = arith.truncf %23 : vector<2x64xf32> to vector<2x64xbf16>
    %c1_20 = arith.constant 1 : index
    %c0_21 = arith.constant 0 : index
    %c0_22 = arith.constant 0 : index
    %25 = vector.load %arg4[%c1_20, %c0_21, %c0_22] : memref<9x64x128xbf16, #tpu.memory_space<vmem>>, vector<1x64x128xbf16>
    %26 = vector.shape_cast %25 : vector<1x64x128xbf16> to vector<64x128xbf16>
    %cst_23 = arith.constant dense<0.000000e+00> : vector<2x128xf32>
    %27 = tpu.matmul %24, %26, %cst_23 {dimension_numbers = #tpu.dot_dimension_numbers<[1], [0], [0], [1], [0, 0, 1, 1], [], []>} : vector<2x64xbf16>, vector<64x128xbf16>, vector<2x128xf32> -> vector<2x128xf32>
    %28 = arith.addf %14, %27 : vector<2x128xf32>
    %c2 = arith.constant 2 : index
    %c0_24 = arith.constant 0 : index
    %c0_25 = arith.constant 0 : index
    %29 = vector.load %arg1[%c2, %c0_24, %c0_25] : memref<9x2x512xbf16, #tpu.memory_space<vmem>>, vector<1x2x512xbf16>
    %30 = vector.shape_cast %29 : vector<1x2x512xbf16> to vector<2x512xbf16>
    %c0_26 = arith.constant 0 : index
    %c0_27 = arith.constant 0 : index
    %31 = vector.load %arg2[%c0_26, %c0_27] : memref<512x64xbf16, #tpu.memory_space<vmem>>, vector<512x64xbf16>
    %cst_28 = arith.constant dense<0.000000e+00> : vector<2x64xf32>
    %32 = tpu.matmul %30, %31, %cst_28 {dimension_numbers = #tpu.dot_dimension_numbers<[1], [0], [0], [1], [0, 0, 1, 1], [], []>} : vector<2x512xbf16>, vector<512x64xbf16>, vector<2x64xf32> -> vector<2x64xf32>
    %c0_29 = arith.constant 0 : index
    %c0_30 = arith.constant 0 : index
    %33 = vector.load %arg3[%c0_29, %c0_30] : memref<1x64xf32, #tpu.memory_space<vmem>>, vector<1x64xf32>
    %34 = vector.broadcast %33 : vector<1x64xf32> to vector<2x64xf32>
    %35 = arith.addf %32, %34 : vector<2x64xf32>
    %cst_31 = arith.constant 0.000000e+00 : f32
    %36 = vector.broadcast %cst_31 : f32 to vector<2x64xf32>
    %37 = arith.maximumf %35, %36 : vector<2x64xf32>
    %38 = arith.truncf %37 : vector<2x64xf32> to vector<2x64xbf16>
    %c2_32 = arith.constant 2 : index
    %c0_33 = arith.constant 0 : index
    %c0_34 = arith.constant 0 : index
    %39 = vector.load %arg4[%c2_32, %c0_33, %c0_34] : memref<9x64x128xbf16, #tpu.memory_space<vmem>>, vector<1x64x128xbf16>
    %40 = vector.shape_cast %39 : vector<1x64x128xbf16> to vector<64x128xbf16>
    %cst_35 = arith.constant dense<0.000000e+00> : vector<2x128xf32>
    %41 = tpu.matmul %38, %40, %cst_35 {dimension_numbers = #tpu.dot_dimension_numbers<[1], [0], [0], [1], [0, 0, 1, 1], [], []>} : vector<2x64xbf16>, vector<64x128xbf16>, vector<2x128xf32> -> vector<2x128xf32>
    %42 = arith.addf %28, %41 : vector<2x128xf32>
    %c3 = arith.constant 3 : index
    %c0_36 = arith.constant 0 : index
    %c0_37 = arith.constant 0 : index
    %43 = vector.load %arg1[%c3, %c0_36, %c0_37] : memref<9x2x512xbf16, #tpu.memory_space<vmem>>, vector<1x2x512xbf16>
    %44 = vector.shape_cast %43 : vector<1x2x512xbf16> to vector<2x512xbf16>
    %c0_38 = arith.constant 0 : index
    %c0_39 = arith.constant 0 : index
    %45 = vector.load %arg2[%c0_38, %c0_39] : memref<512x64xbf16, #tpu.memory_space<vmem>>, vector<512x64xbf16>
    %cst_40 = arith.constant dense<0.000000e+00> : vector<2x64xf32>
    %46 = tpu.matmul %44, %45, %cst_40 {dimension_numbers = #tpu.dot_dimension_numbers<[1], [0], [0], [1], [0, 0, 1, 1], [], []>} : vector<2x512xbf16>, vector<512x64xbf16>, vector<2x64xf32> -> vector<2x64xf32>
    %c0_41 = arith.constant 0 : index
    %c0_42 = arith.constant 0 : index
    %47 = vector.load %arg3[%c0_41, %c0_42] : memref<1x64xf32, #tpu.memory_space<vmem>>, vector<1x64xf32>
    %48 = vector.broadcast %47 : vector<1x64xf32> to vector<2x64xf32>
    %49 = arith.addf %46, %48 : vector<2x64xf32>
    %cst_43 = arith.constant 0.000000e+00 : f32
    %50 = vector.broadcast %cst_43 : f32 to vector<2x64xf32>
    %51 = arith.maximumf %49, %50 : vector<2x64xf32>
    %52 = arith.truncf %51 : vector<2x64xf32> to vector<2x64xbf16>
    %c3_44 = arith.constant 3 : index
    %c0_45 = arith.constant 0 : index
    %c0_46 = arith.constant 0 : index
    %53 = vector.load %arg4[%c3_44, %c0_45, %c0_46] : memref<9x64x128xbf16, #tpu.memory_space<vmem>>, vector<1x64x128xbf16>
    %54 = vector.shape_cast %53 : vector<1x64x128xbf16> to vector<64x128xbf16>
    %cst_47 = arith.constant dense<0.000000e+00> : vector<2x128xf32>
    %55 = tpu.matmul %52, %54, %cst_47 {dimension_numbers = #tpu.dot_dimension_numbers<[1], [0], [0], [1], [0, 0, 1, 1], [], []>} : vector<2x64xbf16>, vector<64x128xbf16>, vector<2x128xf32> -> vector<2x128xf32>
    %56 = arith.addf %42, %55 : vector<2x128xf32>
    %c4 = arith.constant 4 : index
    %c0_48 = arith.constant 0 : index
    %c0_49 = arith.constant 0 : index
    %57 = vector.load %arg1[%c4, %c0_48, %c0_49] : memref<9x2x512xbf16, #tpu.memory_space<vmem>>, vector<1x2x512xbf16>
    %58 = vector.shape_cast %57 : vector<1x2x512xbf16> to vector<2x512xbf16>
    %c0_50 = arith.constant 0 : index
    %c0_51 = arith.constant 0 : index
    %59 = vector.load %arg2[%c0_50, %c0_51] : memref<512x64xbf16, #tpu.memory_space<vmem>>, vector<512x64xbf16>
    %cst_52 = arith.constant dense<0.000000e+00> : vector<2x64xf32>
    %60 = tpu.matmul %58, %59, %cst_52 {dimension_numbers = #tpu.dot_dimension_numbers<[1], [0], [0], [1], [0, 0, 1, 1], [], []>} : vector<2x512xbf16>, vector<512x64xbf16>, vector<2x64xf32> -> vector<2x64xf32>
    %c0_53 = arith.constant 0 : index
    %c0_54 = arith.constant 0 : index
    %61 = vector.load %arg3[%c0_53, %c0_54] : memref<1x64xf32, #tpu.memory_space<vmem>>, vector<1x64xf32>
    %62 = vector.broadcast %61 : vector<1x64xf32> to vector<2x64xf32>
    %63 = arith.addf %60, %62 : vector<2x64xf32>
    %cst_55 = arith.constant 0.000000e+00 : f32
    %64 = vector.broadcast %cst_55 : f32 to vector<2x64xf32>
    %65 = arith.maximumf %63, %64 : vector<2x64xf32>
    %66 = arith.truncf %65 : vector<2x64xf32> to vector<2x64xbf16>
    %c4_56 = arith.constant 4 : index
    %c0_57 = arith.constant 0 : index
    %c0_58 = arith.constant 0 : index
    %67 = vector.load %arg4[%c4_56, %c0_57, %c0_58] : memref<9x64x128xbf16, #tpu.memory_space<vmem>>, vector<1x64x128xbf16>
    %68 = vector.shape_cast %67 : vector<1x64x128xbf16> to vector<64x128xbf16>
    %cst_59 = arith.constant dense<0.000000e+00> : vector<2x128xf32>
    %69 = tpu.matmul %66, %68, %cst_59 {dimension_numbers = #tpu.dot_dimension_numbers<[1], [0], [0], [1], [0, 0, 1, 1], [], []>} : vector<2x64xbf16>, vector<64x128xbf16>, vector<2x128xf32> -> vector<2x128xf32>
    %70 = arith.addf %56, %69 : vector<2x128xf32>
    %c5 = arith.constant 5 : index
    %c0_60 = arith.constant 0 : index
    %c0_61 = arith.constant 0 : index
    %71 = vector.load %arg1[%c5, %c0_60, %c0_61] : memref<9x2x512xbf16, #tpu.memory_space<vmem>>, vector<1x2x512xbf16>
    %72 = vector.shape_cast %71 : vector<1x2x512xbf16> to vector<2x512xbf16>
    %c0_62 = arith.constant 0 : index
    %c0_63 = arith.constant 0 : index
    %73 = vector.load %arg2[%c0_62, %c0_63] : memref<512x64xbf16, #tpu.memory_space<vmem>>, vector<512x64xbf16>
    %cst_64 = arith.constant dense<0.000000e+00> : vector<2x64xf32>
    %74 = tpu.matmul %72, %73, %cst_64 {dimension_numbers = #tpu.dot_dimension_numbers<[1], [0], [0], [1], [0, 0, 1, 1], [], []>} : vector<2x512xbf16>, vector<512x64xbf16>, vector<2x64xf32> -> vector<2x64xf32>
    %c0_65 = arith.constant 0 : index
    %c0_66 = arith.constant 0 : index
    %75 = vector.load %arg3[%c0_65, %c0_66] : memref<1x64xf32, #tpu.memory_space<vmem>>, vector<1x64xf32>
    %76 = vector.broadcast %75 : vector<1x64xf32> to vector<2x64xf32>
    %77 = arith.addf %74, %76 : vector<2x64xf32>
    %cst_67 = arith.constant 0.000000e+00 : f32
    %78 = vector.broadcast %cst_67 : f32 to vector<2x64xf32>
    %79 = arith.maximumf %77, %78 : vector<2x64xf32>
    %80 = arith.truncf %79 : vector<2x64xf32> to vector<2x64xbf16>
    %c5_68 = arith.constant 5 : index
    %c0_69 = arith.constant 0 : index
    %c0_70 = arith.constant 0 : index
    %81 = vector.load %arg4[%c5_68, %c0_69, %c0_70] : memref<9x64x128xbf16, #tpu.memory_space<vmem>>, vector<1x64x128xbf16>
    %82 = vector.shape_cast %81 : vector<1x64x128xbf16> to vector<64x128xbf16>
    %cst_71 = arith.constant dense<0.000000e+00> : vector<2x128xf32>
    %83 = tpu.matmul %80, %82, %cst_71 {dimension_numbers = #tpu.dot_dimension_numbers<[1], [0], [0], [1], [0, 0, 1, 1], [], []>} : vector<2x64xbf16>, vector<64x128xbf16>, vector<2x128xf32> -> vector<2x128xf32>
    %84 = arith.addf %70, %83 : vector<2x128xf32>
    %c6 = arith.constant 6 : index
    %c0_72 = arith.constant 0 : index
    %c0_73 = arith.constant 0 : index
    %85 = vector.load %arg1[%c6, %c0_72, %c0_73] : memref<9x2x512xbf16, #tpu.memory_space<vmem>>, vector<1x2x512xbf16>
    %86 = vector.shape_cast %85 : vector<1x2x512xbf16> to vector<2x512xbf16>
    %c0_74 = arith.constant 0 : index
    %c0_75 = arith.constant 0 : index
    %87 = vector.load %arg2[%c0_74, %c0_75] : memref<512x64xbf16, #tpu.memory_space<vmem>>, vector<512x64xbf16>
    %cst_76 = arith.constant dense<0.000000e+00> : vector<2x64xf32>
    %88 = tpu.matmul %86, %87, %cst_76 {dimension_numbers = #tpu.dot_dimension_numbers<[1], [0], [0], [1], [0, 0, 1, 1], [], []>} : vector<2x512xbf16>, vector<512x64xbf16>, vector<2x64xf32> -> vector<2x64xf32>
    %c0_77 = arith.constant 0 : index
    %c0_78 = arith.constant 0 : index
    %89 = vector.load %arg3[%c0_77, %c0_78] : memref<1x64xf32, #tpu.memory_space<vmem>>, vector<1x64xf32>
    %90 = vector.broadcast %89 : vector<1x64xf32> to vector<2x64xf32>
    %91 = arith.addf %88, %90 : vector<2x64xf32>
    %cst_79 = arith.constant 0.000000e+00 : f32
    %92 = vector.broadcast %cst_79 : f32 to vector<2x64xf32>
    %93 = arith.maximumf %91, %92 : vector<2x64xf32>
    %94 = arith.truncf %93 : vector<2x64xf32> to vector<2x64xbf16>
    %c6_80 = arith.constant 6 : index
    %c0_81 = arith.constant 0 : index
    %c0_82 = arith.constant 0 : index
    %95 = vector.load %arg4[%c6_80, %c0_81, %c0_82] : memref<9x64x128xbf16, #tpu.memory_space<vmem>>, vector<1x64x128xbf16>
    %96 = vector.shape_cast %95 : vector<1x64x128xbf16> to vector<64x128xbf16>
    %cst_83 = arith.constant dense<0.000000e+00> : vector<2x128xf32>
    %97 = tpu.matmul %94, %96, %cst_83 {dimension_numbers = #tpu.dot_dimension_numbers<[1], [0], [0], [1], [0, 0, 1, 1], [], []>} : vector<2x64xbf16>, vector<64x128xbf16>, vector<2x128xf32> -> vector<2x128xf32>
    %98 = arith.addf %84, %97 : vector<2x128xf32>
    %c7 = arith.constant 7 : index
    %c0_84 = arith.constant 0 : index
    %c0_85 = arith.constant 0 : index
    %99 = vector.load %arg1[%c7, %c0_84, %c0_85] : memref<9x2x512xbf16, #tpu.memory_space<vmem>>, vector<1x2x512xbf16>
    %100 = vector.shape_cast %99 : vector<1x2x512xbf16> to vector<2x512xbf16>
    %c0_86 = arith.constant 0 : index
    %c0_87 = arith.constant 0 : index
    %101 = vector.load %arg2[%c0_86, %c0_87] : memref<512x64xbf16, #tpu.memory_space<vmem>>, vector<512x64xbf16>
    %cst_88 = arith.constant dense<0.000000e+00> : vector<2x64xf32>
    %102 = tpu.matmul %100, %101, %cst_88 {dimension_numbers = #tpu.dot_dimension_numbers<[1], [0], [0], [1], [0, 0, 1, 1], [], []>} : vector<2x512xbf16>, vector<512x64xbf16>, vector<2x64xf32> -> vector<2x64xf32>
    %c0_89 = arith.constant 0 : index
    %c0_90 = arith.constant 0 : index
    %103 = vector.load %arg3[%c0_89, %c0_90] : memref<1x64xf32, #tpu.memory_space<vmem>>, vector<1x64xf32>
    %104 = vector.broadcast %103 : vector<1x64xf32> to vector<2x64xf32>
    %105 = arith.addf %102, %104 : vector<2x64xf32>
    %cst_91 = arith.constant 0.000000e+00 : f32
    %106 = vector.broadcast %cst_91 : f32 to vector<2x64xf32>
    %107 = arith.maximumf %105, %106 : vector<2x64xf32>
    %108 = arith.truncf %107 : vector<2x64xf32> to vector<2x64xbf16>
    %c7_92 = arith.constant 7 : index
    %c0_93 = arith.constant 0 : index
    %c0_94 = arith.constant 0 : index
    %109 = vector.load %arg4[%c7_92, %c0_93, %c0_94] : memref<9x64x128xbf16, #tpu.memory_space<vmem>>, vector<1x64x128xbf16>
    %110 = vector.shape_cast %109 : vector<1x64x128xbf16> to vector<64x128xbf16>
    %cst_95 = arith.constant dense<0.000000e+00> : vector<2x128xf32>
    %111 = tpu.matmul %108, %110, %cst_95 {dimension_numbers = #tpu.dot_dimension_numbers<[1], [0], [0], [1], [0, 0, 1, 1], [], []>} : vector<2x64xbf16>, vector<64x128xbf16>, vector<2x128xf32> -> vector<2x128xf32>
    %112 = arith.addf %98, %111 : vector<2x128xf32>
    %c8 = arith.constant 8 : index
    %c0_96 = arith.constant 0 : index
    %c0_97 = arith.constant 0 : index
    %113 = vector.load %arg1[%c8, %c0_96, %c0_97] : memref<9x2x512xbf16, #tpu.memory_space<vmem>>, vector<1x2x512xbf16>
    %114 = vector.shape_cast %113 : vector<1x2x512xbf16> to vector<2x512xbf16>
    %c0_98 = arith.constant 0 : index
    %c0_99 = arith.constant 0 : index
    %115 = vector.load %arg2[%c0_98, %c0_99] : memref<512x64xbf16, #tpu.memory_space<vmem>>, vector<512x64xbf16>
    %cst_100 = arith.constant dense<0.000000e+00> : vector<2x64xf32>
    %116 = tpu.matmul %114, %115, %cst_100 {dimension_numbers = #tpu.dot_dimension_numbers<[1], [0], [0], [1], [0, 0, 1, 1], [], []>} : vector<2x512xbf16>, vector<512x64xbf16>, vector<2x64xf32> -> vector<2x64xf32>
    %c0_101 = arith.constant 0 : index
    %c0_102 = arith.constant 0 : index
    %117 = vector.load %arg3[%c0_101, %c0_102] : memref<1x64xf32, #tpu.memory_space<vmem>>, vector<1x64xf32>
    %118 = vector.broadcast %117 : vector<1x64xf32> to vector<2x64xf32>
    %119 = arith.addf %116, %118 : vector<2x64xf32>
    %cst_103 = arith.constant 0.000000e+00 : f32
    %120 = vector.broadcast %cst_103 : f32 to vector<2x64xf32>
    %121 = arith.maximumf %119, %120 : vector<2x64xf32>
    %122 = arith.truncf %121 : vector<2x64xf32> to vector<2x64xbf16>
    %c8_104 = arith.constant 8 : index
    %c0_105 = arith.constant 0 : index
    %c0_106 = arith.constant 0 : index
    %123 = vector.load %arg4[%c8_104, %c0_105, %c0_106] : memref<9x64x128xbf16, #tpu.memory_space<vmem>>, vector<1x64x128xbf16>
    %124 = vector.shape_cast %123 : vector<1x64x128xbf16> to vector<64x128xbf16>
    %cst_107 = arith.constant dense<0.000000e+00> : vector<2x128xf32>
    %125 = tpu.matmul %122, %124, %cst_107 {dimension_numbers = #tpu.dot_dimension_numbers<[1], [0], [0], [1], [0, 0, 1, 1], [], []>} : vector<2x64xbf16>, vector<64x128xbf16>, vector<2x128xf32> -> vector<2x128xf32>
    %126 = arith.addf %112, %125 : vector<2x128xf32>
    %c0_108 = arith.constant 0 : index
    %c0_109 = arith.constant 0 : index
    %127 = vector.load %arg5[%c0_108, %c0_109] : memref<1x128xf32, #tpu.memory_space<vmem>>, vector<1x128xf32>
    %128 = vector.broadcast %127 : vector<1x128xf32> to vector<2x128xf32>
    %129 = arith.addf %126, %128 : vector<2x128xf32>
    %cst_110 = arith.constant 0.000000e+00 : f32
    %130 = vector.broadcast %cst_110 : f32 to vector<2x128xf32>
    %131 = arith.maximumf %129, %130 : vector<2x128xf32>
    %132 = arith.truncf %131 : vector<2x128xf32> to vector<2x128xbf16>
    %c0_111 = arith.constant 0 : index
    %c0_112 = arith.constant 0 : index
    %133 = vector.load %arg6[%c0_111, %c0_112] : memref<128x512xbf16, #tpu.memory_space<vmem>>, vector<128x512xbf16>
    %cst_113 = arith.constant dense<0.000000e+00> : vector<2x512xf32>
    %134 = tpu.matmul %132, %133, %cst_113 {dimension_numbers = #tpu.dot_dimension_numbers<[1], [0], [0], [1], [0, 0, 1, 1], [], []>} : vector<2x128xbf16>, vector<128x512xbf16>, vector<2x512xf32> -> vector<2x512xf32>
    %c0_114 = arith.constant 0 : index
    %c0_115 = arith.constant 0 : index
    %135 = vector.load %arg7[%c0_114, %c0_115] : memref<1x512xf32, #tpu.memory_space<vmem>>, vector<1x512xf32>
    %136 = vector.broadcast %135 : vector<1x512xf32> to vector<2x512xf32>
    %137 = arith.addf %134, %136 : vector<2x512xf32>
    %cst_116 = arith.constant 0.000000e+00 : f32
    %138 = vector.broadcast %cst_116 : f32 to vector<2x512xf32>
    %139 = arith.maximumf %137, %138 : vector<2x512xf32>
    %140 = arith.truncf %139 : vector<2x512xf32> to vector<2x512xbf16>
    %c0_117 = arith.constant 0 : index
    %c0_118 = arith.constant 0 : index
    %141 = vector.load %arg8[%c0_117, %c0_118] : memref<512x128xbf16, #tpu.memory_space<vmem>>, vector<512x128xbf16>
    %cst_119 = arith.constant dense<0.000000e+00> : vector<2x128xf32>
    %142 = tpu.matmul %140, %141, %cst_119 {dimension_numbers = #tpu.dot_dimension_numbers<[1], [0], [0], [1], [0, 0, 1, 1], [], []>} : vector<2x512xbf16>, vector<512x128xbf16>, vector<2x128xf32> -> vector<2x128xf32>
    %c0_120 = arith.constant 0 : index
    %c0_121 = arith.constant 0 : index
    %143 = vector.load %arg9[%c0_120, %c0_121] : memref<1x128xf32, #tpu.memory_space<vmem>>, vector<1x128xf32>
    %144 = vector.broadcast %143 : vector<1x128xf32> to vector<2x128xf32>
    %145 = arith.addf %142, %144 : vector<2x128xf32>
    %c0_122 = arith.constant 0 : index
    %c0_123 = arith.constant 0 : index
    %146 = vector.load %arg14[%c0_122, %c0_123] : memref<2x128xf32, #tpu.memory_space<vmem>>, vector<2x128xf32>
    tpu.vector_store %arg14[%c0_122, %c0_123], %145 {strides = array<i32>} : memref<2x128xf32, #tpu.memory_space<vmem>>, vector<2x128xf32>,
    %c0_124 = arith.constant 0 : index
    %c0_125 = arith.constant 0 : index
    %147 = vector.load %arg10[%c0_124, %c0_125] : memref<128x512xbf16, #tpu.memory_space<vmem>>, vector<128x512xbf16>
    %cst_126 = arith.constant dense<0.000000e+00> : vector<2x512xf32>
    %148 = tpu.matmul %132, %147, %cst_126 {dimension_numbers = #tpu.dot_dimension_numbers<[1], [0], [0], [1], [0, 0, 1, 1], [], []>} : vector<2x128xbf16>, vector<128x512xbf16>, vector<2x512xf32> -> vector<2x512xf32>
    %c0_127 = arith.constant 0 : index
    %c0_128 = arith.constant 0 : index
    %149 = vector.load %arg11[%c0_127, %c0_128] : memref<1x512xf32, #tpu.memory_space<vmem>>, vector<1x512xf32>
    %150 = vector.broadcast %149 : vector<1x512xf32> to vector<2x512xf32>
    %151 = arith.addf %148, %150 : vector<2x512xf32>
    %cst_129 = arith.constant 0.000000e+00 : f32
    %152 = vector.broadcast %cst_129 : f32 to vector<2x512xf32>
    %153 = arith.maximumf %151, %152 : vector<2x512xf32>
    %154 = arith.truncf %153 : vector<2x512xf32> to vector<2x512xbf16>
    %c0_130 = arith.constant 0 : index
    %c0_131 = arith.constant 0 : index
    %155 = vector.load %arg12[%c0_130, %c0_131] : memref<512x128xbf16, #tpu.memory_space<vmem>>, vector<512x128xbf16>
    %cst_132 = arith.constant dense<0.000000e+00> : vector<2x128xf32>
    %156 = tpu.matmul %154, %155, %cst_132 {dimension_numbers = #tpu.dot_dimension_numbers<[1], [0], [0], [1], [0, 0, 1, 1], [], []>} : vector<2x512xbf16>, vector<512x128xbf16>, vector<2x128xf32> -> vector<2x128xf32>
    %c0_133 = arith.constant 0 : index
    %c0_134 = arith.constant 0 : index
    %157 = vector.load %arg13[%c0_133, %c0_134] : memref<1x128xf32, #tpu.memory_space<vmem>>, vector<1x128xf32>
    %158 = vector.broadcast %157 : vector<1x128xf32> to vector<2x128xf32>
    %159 = arith.addf %156, %158 : vector<2x128xf32>
    %c0_135 = arith.constant 0 : index
    %c0_136 = arith.constant 0 : index
    %160 = vector.load %arg15[%c0_135, %c0_136] : memref<2x128xf32, #tpu.memory_space<vmem>>, vector<2x128xf32>
    tpu.vector_store %arg15[%c0_135, %c0_136], %159 {strides = array<i32>} : memref<2x128xf32, #tpu.memory_space<vmem>>, vector<2x128xf32>,
    return
  }
  func.func @transform_0(%arg0: i32) -> (i32, i32, i32) {
    %c0_i32 = arith.constant 0 : i32
    %c0_i32_0 = arith.constant 0 : i32
    %c0_i32_1 = arith.constant 0 : i32
    return %c0_i32, %arg0, %c0_i32_0 : i32, i32, i32
  }
  func.func @transform_1(%arg0: i32) -> (i32, i32) {
    %c0_i32 = arith.constant 0 : i32
    %c0_i32_0 = arith.constant 0 : i32
    %c0_i32_1 = arith.constant 0 : i32
    return %c0_i32, %c0_i32_0 : i32, i32
  }
  func.func @transform_2(%arg0: i32) -> (i32, i32) {
    %c0_i32 = arith.constant 0 : i32
    %c0_i32_0 = arith.constant 0 : i32
    %c0_i32_1 = arith.constant 0 : i32
    return %c0_i32, %c0_i32_0 : i32, i32
  }
  func.func @transform_3(%arg0: i32) -> (i32, i32, i32) {
    %c0_i32 = arith.constant 0 : i32
    %c0_i32_0 = arith.constant 0 : i32
    %c0_i32_1 = arith.constant 0 : i32
    %c0_i32_2 = arith.constant 0 : i32
    return %c0_i32, %c0_i32_0, %c0_i32_1 : i32, i32, i32
  }
  func.func @transform_4(%arg0: i32) -> (i32, i32) {
    %c0_i32 = arith.constant 0 : i32
    %c0_i32_0 = arith.constant 0 : i32
    %c0_i32_1 = arith.constant 0 : i32
    return %c0_i32, %c0_i32_0 : i32, i32
  }
  func.func @transform_5(%arg0: i32) -> (i32, i32) {
    %c0_i32 = arith.constant 0 : i32
    %c0_i32_0 = arith.constant 0 : i32
    %c0_i32_1 = arith.constant 0 : i32
    return %c0_i32, %c0_i32_0 : i32, i32
  }
  func.func @transform_6(%arg0: i32) -> (i32, i32) {
    %c0_i32 = arith.constant 0 : i32
    %c0_i32_0 = arith.constant 0 : i32
    %c0_i32_1 = arith.constant 0 : i32
    return %c0_i32, %c0_i32_0 : i32, i32
  }
  func.func @transform_7(%arg0: i32) -> (i32, i32) {
    %c0_i32 = arith.constant 0 : i32
    %c0_i32_0 = arith.constant 0 : i32
    %c0_i32_1 = arith.constant 0 : i32
    return %c0_i32, %c0_i32_0 : i32, i32
  }
  func.func @transform_8(%arg0: i32) -> (i32, i32) {
    %c0_i32 = arith.constant 0 : i32
    %c0_i32_0 = arith.constant 0 : i32
    %c0_i32_1 = arith.constant 0 : i32
    return %c0_i32, %c0_i32_0 : i32, i32
  }
  func.func @transform_9(%arg0: i32) -> (i32, i32) {
    %c0_i32 = arith.constant 0 : i32
    %c0_i32_0 = arith.constant 0 : i32
    %c0_i32_1 = arith.constant 0 : i32
    return %c0_i32, %c0_i32_0 : i32, i32
  }
  func.func @transform_10(%arg0: i32) -> (i32, i32) {
    %c0_i32 = arith.constant 0 : i32
    %c0_i32_0 = arith.constant 0 : i32
    %c0_i32_1 = arith.constant 0 : i32
    return %c0_i32, %c0_i32_0 : i32, i32
  }
  func.func @transform_11(%arg0: i32) -> (i32, i32) {
    %c0_i32 = arith.constant 0 : i32
    %c0_i32_0 = arith.constant 0 : i32
    %c0_i32_1 = arith.constant 0 : i32
    return %c0_i32, %c0_i32_0 : i32, i32
  }
  func.func @transform_12(%arg0: i32) -> (i32, i32) {
    %c0_i32 = arith.constant 0 : i32
    %c0_i32_0 = arith.constant 0 : i32
    %c0_i32_1 = arith.constant 0 : i32
    return %c0_i32, %c0_i32_0 : i32, i32
  }
  func.func @transform_13(%arg0: i32) -> (i32, i32) {
    %c0_i32 = arith.constant 0 : i32
    %c0_i32_0 = arith.constant 0 : i32
    return %arg0, %c0_i32 : i32, i32
  }
  func.func @transform_14(%arg0: i32) -> (i32, i32) {
    %c0_i32 = arith.constant 0 : i32
    %c0_i32_0 = arith.constant 0 : i32
    return %arg0, %c0_i32 : i32, i32
  }
}

</mosaic_0001>

<llo_original>
// kernel: convddqn_forward.2
$region0: #{convddqn_forward.2}
  #allocation0 [shape = 'u32[]', space=smem, size = 0x4, offset = 0x4, fixed_abs, tag = 'smem constant byte address 0x4 - core index']
  #allocation1 [shape = 'u32[144,128]{1,0:T(1,128)}', space=vmem, size = 0x12000, scoped, tag = 'internal scratch']
  %s0 = inlined_call_operand.vmem [shape: bf16[128,256], index: 0, kind: input, shape index: {}]
  %s1 = inlined_call_operand.vmem [shape: bf16[256,32], index: 1, kind: input, shape index: {}]
  %s2 = inlined_call_operand.vmem [shape: f32[1,32], index: 2, kind: input, shape index: {}]
  %s3 = inlined_call_operand.vmem [shape: bf16[128,32], index: 3, kind: output, shape index: {}]
  %s4 = sld [smem:[#allocation0]]
  $region22: #{convddqn_forward.2} parent=0
    _
  %s6 = ssub.s32 1, %s4
  %s7 = scalar_select 0, %s6, %s4
  // Predicated region
  $region2: #{convddqn_forward.2} parent=0 // pred_check
    _
  $region3: #{convddqn_forward.2} parent=0 // pred_check_branch
    %9 = sbr.rel (0) target = $region5
  $region4: #{convddqn_forward.2} parent=0 // pred_region
    _
  $region5: #{convddqn_forward.2} parent=0 // pred_fallthru
    _
  // Predicated region
  $region6: #{convddqn_forward.2} parent=0 // pred_check
    _
  $region7: #{convddqn_forward.2} parent=0 // pred_check_branch
    %11 = sbr.rel (0) target = $region9
  $region8: #{convddqn_forward.2} parent=0 // pred_region
    _
  $region9: #{convddqn_forward.2} parent=0 // pred_fallthru
    _
  // Predicated region
  $region10: #{convddqn_forward.2} parent=0 // pred_check
    _
  $region11: #{convddqn_forward.2} parent=0 // pred_check_branch
    %13 = sbr.rel (0) target = $region13
  $region12: #{convddqn_forward.2} parent=0 // pred_region
    _
  $region13: #{convddqn_forward.2} parent=0 // pred_fallthru
    _
  %v15 = vld [vmem:[%s0] sm:$0xff]
  %v16 = vld [vmem:[%s0 + $0x8] sm:$0xff]
  %v17 = vld [vmem:[%s0 + $0x10] sm:$0xff]
  %v18 = vld [vmem:[%s0 + $0x18] sm:$0xff]
  %v19 = vld [vmem:[%s0 + $0x20] sm:$0xff]
  %v20 = vld [vmem:[%s0 + $0x28] sm:$0xff]
  %v21 = vld [vmem:[%s0 + $0x30] sm:$0xff]
  %v22 = vld [vmem:[%s0 + $0x38] sm:$0xff]
  %v23 = vld [vmem:[%s0 + $0x40] sm:$0xff]
  %v24 = vld [vmem:[%s0 + $0x48] sm:$0xff]
  %v25 = vld [vmem:[%s0 + $0x50] sm:$0xff]
  %v26 = vld [vmem:[%s0 + $0x58] sm:$0xff]
  %v27 = vld [vmem:[%s0 + $0x60] sm:$0xff]
  %v28 = vld [vmem:[%s0 + $0x68] sm:$0xff]
  %v29 = vld [vmem:[%s0 + $0x70] sm:$0xff]
  %v30 = vld [vmem:[%s0 + $0x78] sm:$0xff]
  %v31 = vld [vmem:[%s1] sm:$0xf]
  %v32 = vld [vmem:[%s1 + $0x4] sm:$0xf]
  %v33 = vld [vmem:[%s1 + $0x8] sm:$0xf]
  %v34 = vld [vmem:[%s1 + $0xc] sm:$0xf]
  %v35 = vld [vmem:[%s1 + $0x10] sm:$0xf]
  %v36 = vld [vmem:[%s1 + $0x14] sm:$0xf]
  %v37 = vld [vmem:[%s1 + $0x18] sm:$0xf]
  %v38 = vld [vmem:[%s1 + $0x1c] sm:$0xf]
  %v39 = vld [vmem:[%s1 + $0x20] sm:$0xf]
  %v40 = vld [vmem:[%s1 + $0x24] sm:$0xf]
  %v41 = vld [vmem:[%s1 + $0x28] sm:$0xf]
  %v42 = vld [vmem:[%s1 + $0x2c] sm:$0xf]
  %v43 = vld [vmem:[%s1 + $0x30] sm:$0xf]
  %v44 = vld [vmem:[%s1 + $0x34] sm:$0xf]
  %v45 = vld [vmem:[%s1 + $0x38] sm:$0xf]
  %v46 = vld [vmem:[%s1 + $0x3c] sm:$0xf]
  %v47 = vld [vmem:[%s1 + $0x40] sm:$0xf]
  %v48 = vld [vmem:[%s1 + $0x44] sm:$0xf]
  %v49 = vld [vmem:[%s1 + $0x48] sm:$0xf]
  %v50 = vld [vmem:[%s1 + $0x4c] sm:$0xf]
  %v51 = vld [vmem:[%s1 + $0x50] sm:$0xf]
  %v52 = vld [vmem:[%s1 + $0x54] sm:$0xf]
  %v53 = vld [vmem:[%s1 + $0x58] sm:$0xf]
  %v54 = vld [vmem:[%s1 + $0x5c] sm:$0xf]
  %v55 = vld [vmem:[%s1 + $0x60] sm:$0xf]
  %v56 = vld [vmem:[%s1 + $0x64] sm:$0xf]
  %v57 = vld [vmem:[%s1 + $0x68] sm:$0xf]
  %v58 = vld [vmem:[%s1 + $0x6c] sm:$0xf]
  %v59 = vld [vmem:[%s1 + $0x70] sm:$0xf]
  %v60 = vld [vmem:[%s1 + $0x74] sm:$0xf]
  %v61 = vld [vmem:[%s1 + $0x78] sm:$0xf]
  %v62 = vld [vmem:[%s1 + $0x7c] sm:$0xf]
  %v63 = vld [vmem:[%s2] sm:$0x1]
  %v65 = vlaneseq
  %v66 = vshrl.u32 %v65, 7
  %v67 = vsub.s32 0, %v66
  %v68 = vrot.slane %v63, %v67
  %v86 = vunpack.c.l.b16 %v15
  %v87 = vunpack.c.h.b16 %v15
  %v88 = vunpack.c.l.b16 %v16
  %v89 = vunpack.c.h.b16 %v16
  %v90 = vunpack.c.l.b16 %v17
  %v91 = vunpack.c.h.b16 %v17
  %v92 = vunpack.c.l.b16 %v18
  %v93 = vunpack.c.h.b16 %v18
  %v94 = vunpack.c.l.b16 %v19
  %v95 = vunpack.c.h.b16 %v19
  %v96 = vunpack.c.l.b16 %v20
  %v97 = vunpack.c.h.b16 %v20
  %v98 = vunpack.c.l.b16 %v21
  %v99 = vunpack.c.h.b16 %v21
  %v100 = vunpack.c.l.b16 %v22
  %v101 = vunpack.c.h.b16 %v22
  %v102 = vunpack.c.l.b16 %v23
  %v103 = vunpack.c.h.b16 %v23
  %v104 = vunpack.c.l.b16 %v24
  %v105 = vunpack.c.h.b16 %v24
  %v106 = vunpack.c.l.b16 %v25
  %v107 = vunpack.c.h.b16 %v25
  %v108 = vunpack.c.l.b16 %v26
  %v109 = vunpack.c.h.b16 %v26
  %v110 = vunpack.c.l.b16 %v27
  %v111 = vunpack.c.h.b16 %v27
  %v112 = vunpack.c.l.b16 %v28
  %v113 = vunpack.c.h.b16 %v28
  %v114 = vunpack.c.l.b16 %v29
  %v115 = vunpack.c.h.b16 %v29
  %v116 = vunpack.c.l.b16 %v30
  %v117 = vunpack.c.h.b16 %v30
  %v118 = vpack.c.b16 %v88, %v86
  %v119 = vpack.c.b16 %v89, %v87
  %v120 = vpack.c.b16 %v92, %v90
  %v121 = vpack.c.b16 %v93, %v91
  %v122 = vpack.c.b16 %v96, %v94
  %v123 = vpack.c.b16 %v97, %v95
  %v124 = vpack.c.b16 %v100, %v98
  %v125 = vpack.c.b16 %v101, %v99
  %v126 = vpack.c.b16 %v104, %v102
  %v127 = vpack.c.b16 %v105, %v103
  %v128 = vpack.c.b16 %v108, %v106
  %v129 = vpack.c.b16 %v109, %v107
  %v130 = vpack.c.b16 %v112, %v110
  %v131 = vpack.c.b16 %v113, %v111
  %v132 = vpack.c.b16 %v116, %v114
  %v133 = vpack.c.b16 %v117, %v115
  %v182 = vunpack.c.l.b16 %v31
  %v183 = vunpack.c.l.b16 %v32
  %v184 = vunpack.c.l.b16 %v33
  %v185 = vunpack.c.l.b16 %v34
  %v186 = vunpack.c.l.b16 %v35
  %v187 = vunpack.c.l.b16 %v36
  %v188 = vunpack.c.l.b16 %v37
  %v189 = vunpack.c.l.b16 %v38
  %v190 = vunpack.c.l.b16 %v39
  %v191 = vunpack.c.l.b16 %v40
  %v192 = vunpack.c.l.b16 %v41
  %v193 = vunpack.c.l.b16 %v42
  %v194 = vunpack.c.l.b16 %v43
  %v195 = vunpack.c.l.b16 %v44
  %v196 = vunpack.c.l.b16 %v45
  %v197 = vunpack.c.l.b16 %v46
  %v198 = vunpack.c.l.b16 %v47
  %v199 = vunpack.c.l.b16 %v48
  %v200 = vunpack.c.l.b16 %v49
  %v201 = vunpack.c.l.b16 %v50
  %v202 = vunpack.c.l.b16 %v51
  %v203 = vunpack.c.l.b16 %v52
  %v204 = vunpack.c.l.b16 %v53
  %v205 = vunpack.c.l.b16 %v54
  %v206 = vunpack.c.l.b16 %v55
  %v207 = vunpack.c.l.b16 %v56
  %v208 = vunpack.c.l.b16 %v57
  %v209 = vunpack.c.l.b16 %v58
  %v210 = vunpack.c.l.b16 %v59
  %v211 = vunpack.c.l.b16 %v60
  %v212 = vunpack.c.l.b16 %v61
  %v213 = vunpack.c.l.b16 %v62
  %v214 = vpack.c.b16 %v183, %v182
  %v215 = vpack.c.b16 %v185, %v184
  %v216 = vpack.c.b16 %v187, %v186
  %v217 = vpack.c.b16 %v189, %v188
  %v218 = vpack.c.b16 %v191, %v190
  %v219 = vpack.c.b16 %v193, %v192
  %v220 = vpack.c.b16 %v195, %v194
  %v221 = vpack.c.b16 %v197, %v196
  %v222 = vpack.c.b16 %v199, %v198
  %v223 = vpack.c.b16 %v201, %v200
  %v224 = vpack.c.b16 %v203, %v202
  %v225 = vpack.c.b16 %v205, %v204
  %v226 = vpack.c.b16 %v207, %v206
  %v227 = vpack.c.b16 %v209, %v208
  %v228 = vpack.c.b16 %v211, %v210
  %v229 = vpack.c.b16 %v213, %v212
  %246 = vmatprep.subr.bf16.mxu0 0
  %247 = vmatpush1.bf16.msra.mxu0 %v214
  %248 = vmatprep.subr.bf16.mxu0 0
  %249 = vmatpush1.bf16.msra.mxu0 %v215
  %250 = vmatprep.subr.bf16.mxu0 0
  %251 = vmatpush1.bf16.msra.mxu0 %v216
  %252 = vmatprep.subr.bf16.mxu0 0
  %253 = vmatpush1.bf16.msra.mxu0 %v217
  %254 = vmatprep.subr.bf16.mxu0 0
  %255 = vmatpush1.bf16.msra.mxu0 %v218
  %256 = vmatprep.subr.bf16.mxu0 0
  %257 = vmatpush1.bf16.msra.mxu0 %v219
  %258 = vmatprep.subr.bf16.mxu0 0
  %259 = vmatpush1.bf16.msra.mxu0 %v220
  %260 = vmatprep.subr.bf16.mxu0 0
  %261 = vmatpush1.bf16.msra.mxu0 %v221
  %262 = vmatprep.subr.bf16.mxu0 0
  %263 = vmatpush1.bf16.msra.mxu0 %v222
  %264 = vmatprep.subr.bf16.mxu0 0
  %265 = vmatpush1.bf16.msra.mxu0 %v223
  %266 = vmatprep.subr.bf16.mxu0 0
  %267 = vmatpush1.bf16.msra.mxu0 %v224
  %268 = vmatprep.subr.bf16.mxu0 0
  %269 = vmatpush1.bf16.msra.mxu0 %v225
  %270 = vmatprep.subr.bf16.mxu0 0
  %271 = vmatpush1.bf16.msra.mxu0 %v226
  %272 = vmatprep.subr.bf16.mxu0 0
  %273 = vmatpush1.bf16.msra.mxu0 %v227
  %274 = vmatprep.subr.bf16.mxu0 0
  %275 = vmatpush1.bf16.msra.mxu0 %v228
  %276 = vmatprep.subr.bf16.mxu0 0
  %277 = vmatpush1.bf16.msra.mxu0 %v229
  %278 = vmatprep.mubr.bf16.mxu0 %v119
  %279 = vmatmul.mubr.bf16.gmra.mrb[0].mxu0 %v118
  %v280 = vpop.f32.mrb[0].mxu0
  %v281 = vadd.f32 %v68, %v280
  %v282 = vpop.f32.mrb[0].mxu0
  %v283 = vpop.f32.mrb[0].mxu0
  %v284 = vadd.f32 %v68, %v283
  %v285 = vpop.f32.mrb[0].mxu0
  %286 = vmatprep.mubr.bf16.mxu0 %v121
  %287 = vmatmul.mubr.bf16.gmra.mrb[0].mxu0 %v120
  %v288 = vpop.f32.mrb[0].mxu0
  %v289 = vadd.f32 %v68, %v288
  %v290 = vpop.f32.mrb[0].mxu0
  %v291 = vpop.f32.mrb[0].mxu0
  %v292 = vadd.f32 %v68, %v291
  %v293 = vpop.f32.mrb[0].mxu0
  %294 = vmatprep.mubr.bf16.mxu0 %v123
  %295 = vmatmul.mubr.bf16.gmra.mrb[0].mxu0 %v122
  %v296 = vpop.f32.mrb[0].mxu0
  %v297 = vadd.f32 %v68, %v296
  %v298 = vpop.f32.mrb[0].mxu0
  %v299 = vpop.f32.mrb[0].mxu0
  %v300 = vadd.f32 %v68, %v299
  %v301 = vpop.f32.mrb[0].mxu0
  %302 = vmatprep.mubr.bf16.mxu0 %v125
  %303 = vmatmul.mubr.bf16.gmra.mrb[0].mxu0 %v124
  %v304 = vpop.f32.mrb[0].mxu0
  %v305 = vadd.f32 %v68, %v304
  %v306 = vpop.f32.mrb[0].mxu0
  %v307 = vpop.f32.mrb[0].mxu0
  %v308 = vadd.f32 %v68, %v307
  %v309 = vpop.f32.mrb[0].mxu0
  %310 = vmatprep.mubr.bf16.mxu0 %v127
  %311 = vmatmul.mubr.bf16.gmra.mrb[0].mxu0 %v126
  %v312 = vpop.f32.mrb[0].mxu0
  %v313 = vadd.f32 %v68, %v312
  %v314 = vpop.f32.mrb[0].mxu0
  %v315 = vpop.f32.mrb[0].mxu0
  %v316 = vadd.f32 %v68, %v315
  %v317 = vpop.f32.mrb[0].mxu0
  %318 = vmatprep.mubr.bf16.mxu0 %v129
  %319 = vmatmul.mubr.bf16.gmra.mrb[0].mxu0 %v128
  %v320 = vpop.f32.mrb[0].mxu0
  %v321 = vadd.f32 %v68, %v320
  %v322 = vpop.f32.mrb[0].mxu0
  %v323 = vpop.f32.mrb[0].mxu0
  %v324 = vadd.f32 %v68, %v323
  %v325 = vpop.f32.mrb[0].mxu0
  %326 = vmatprep.mubr.bf16.mxu0 %v131
  %327 = vmatmul.mubr.bf16.gmra.mrb[0].mxu0 %v130
  %v328 = vpop.f32.mrb[0].mxu0
  %v329 = vadd.f32 %v68, %v328
  %v330 = vpop.f32.mrb[0].mxu0
  %v331 = vpop.f32.mrb[0].mxu0
  %v332 = vadd.f32 %v68, %v331
  %v333 = vpop.f32.mrb[0].mxu0
  %334 = vmatprep.mubr.bf16.mxu0 %v133
  %335 = vmatmul.mubr.bf16.gmra.mrb[0].mxu0 %v132
  %v336 = vpop.f32.mrb[0].mxu0
  %v337 = vadd.f32 %v68, %v336
  %v338 = vpop.f32.mrb[0].mxu0
  %v339 = vpop.f32.mrb[0].mxu0
  %v340 = vadd.f32 %v68, %v339
  %v341 = vpop.f32.mrb[0].mxu0
  %342 = vdwg.mxu0
  %v343 = vmax.f32 %v281, 0.0
  %v344 = vmax.f32 %v284, 0.0
  %v345 = vmax.f32 %v289, 0.0
  %v346 = vmax.f32 %v292, 0.0
  %v347 = vmax.f32 %v297, 0.0
  %v348 = vmax.f32 %v300, 0.0
  %v349 = vmax.f32 %v305, 0.0
  %v350 = vmax.f32 %v308, 0.0
  %v351 = vmax.f32 %v313, 0.0
  %v352 = vmax.f32 %v316, 0.0
  %v353 = vmax.f32 %v321, 0.0
  %v354 = vmax.f32 %v324, 0.0
  %v355 = vmax.f32 %v329, 0.0
  %v356 = vmax.f32 %v332, 0.0
  %v357 = vmax.f32 %v337, 0.0
  %v358 = vmax.f32 %v340, 0.0
  %v359 = vpack.c.bf16 %v344, %v343
  %v360 = vpack.c.bf16 %v346, %v345
  %v361 = vpack.c.bf16 %v348, %v347
  %v362 = vpack.c.bf16 %v350, %v349
  %v363 = vpack.c.bf16 %v352, %v351
  %v364 = vpack.c.bf16 %v354, %v353
  %v365 = vpack.c.bf16 %v356, %v355
  %v366 = vpack.c.bf16 %v358, %v357
  %v375 = vunpack.c.l.b16 %v359
  %v376 = vunpack.c.h.b16 %v359
  %v377 = vunpack.c.l.b16 %v360
  %v378 = vunpack.c.h.b16 %v360
  %v379 = vunpack.c.l.b16 %v361
  %v380 = vunpack.c.h.b16 %v361
  %v381 = vunpack.c.l.b16 %v362
  %v382 = vunpack.c.h.b16 %v362
  %v383 = vunpack.c.l.b16 %v363
  %v384 = vunpack.c.h.b16 %v363
  %v385 = vunpack.c.l.b16 %v364
  %v386 = vunpack.c.h.b16 %v364
  %v387 = vunpack.c.l.b16 %v365
  %v388 = vunpack.c.h.b16 %v365
  %v389 = vunpack.c.l.b16 %v366
  %v390 = vunpack.c.h.b16 %v366
  %v391 = vpack.c.b16 %v375, %v375
  %v392 = vpack.c.b16 %v376, %v376
  %v393 = vpack.c.b16 %v377, %v377
  %v394 = vpack.c.b16 %v378, %v378
  %v395 = vpack.c.b16 %v379, %v379
  %v396 = vpack.c.b16 %v380, %v380
  %v397 = vpack.c.b16 %v381, %v381
  %v398 = vpack.c.b16 %v382, %v382
  %v399 = vpack.c.b16 %v383, %v383
  %v400 = vpack.c.b16 %v384, %v384
  %v401 = vpack.c.b16 %v385, %v385
  %v402 = vpack.c.b16 %v386, %v386
  %v403 = vpack.c.b16 %v387, %v387
  %v404 = vpack.c.b16 %v388, %v388
  %v405 = vpack.c.b16 %v389, %v389
  %v406 = vpack.c.b16 %v390, %v390
  %vm423 = vcmask 257024
  %424 = vst.msk [vmem:[%s3] sm:$0xf] %vm423, %v391
  %425 = vst.msk [vmem:[%s3 + $0x4] sm:$0xf] %vm423, %v392
  %426 = vst.msk [vmem:[%s3 + $0x8] sm:$0xf] %vm423, %v393
  %427 = vst.msk [vmem:[%s3 + $0xc] sm:$0xf] %vm423, %v394
  %428 = vst.msk [vmem:[%s3 + $0x10] sm:$0xf] %vm423, %v395
  %429 = vst.msk [vmem:[%s3 + $0x14] sm:$0xf] %vm423, %v396
  %430 = vst.msk [vmem:[%s3 + $0x18] sm:$0xf] %vm423, %v397
  %431 = vst.msk [vmem:[%s3 + $0x1c] sm:$0xf] %vm423, %v398
  %432 = vst.msk [vmem:[%s3 + $0x20] sm:$0xf] %vm423, %v399
  %433 = vst.msk [vmem:[%s3 + $0x24] sm:$0xf] %vm423, %v400
  %434 = vst.msk [vmem:[%s3 + $0x28] sm:$0xf] %vm423, %v401
  %435 = vst.msk [vmem:[%s3 + $0x2c] sm:$0xf] %vm423, %v402
  %436 = vst.msk [vmem:[%s3 + $0x30] sm:$0xf] %vm423, %v403
  %437 = vst.msk [vmem:[%s3 + $0x34] sm:$0xf] %vm423, %v404
  %438 = vst.msk [vmem:[%s3 + $0x38] sm:$0xf] %vm423, %v405
  %439 = vst.msk [vmem:[%s3 + $0x3c] sm:$0xf] %vm423, %v406
  // Predicated region
  $region14: #{convddqn_forward.2} parent=0 // pred_check
    _
  $region15: #{convddqn_forward.2} parent=0 // pred_check_branch
    %441 = sbr.rel (0) target = $region17
  $region16: #{convddqn_forward.2} parent=0 // pred_region
    _
  $region17: #{convddqn_forward.2} parent=0 // pred_fallthru
    _
  // Predicated region
  $region18: #{convddqn_forward.2} parent=0 // pred_check
    _
  $region19: #{convddqn_forward.2} parent=0 // pred_check_branch
    %443 = sbr.rel (0) target = $region21
  $region20: #{convddqn_forward.2} parent=0 // pred_region
    _
  $region21: #{convddqn_forward.2} parent=0 // pred_fallthru
    _

// kernel: convddqn_forward.3
$region0: #{convddqn_forward.3}
  #allocation0 [shape = 'u32[]', space=smem, size = 0x4, offset = 0x4, fixed_abs, tag = 'smem constant byte address 0x4 - core index']
  #allocation1 [shape = 'u32[144,128]{1,0:T(1,128)}', space=vmem, size = 0x12000, scoped, tag = 'internal scratch']
  %s0 = inlined_call_operand.vmem [shape: bf16[9,2,512], index: 0, kind: input, shape index: {}]
  %s1 = inlined_call_operand.vmem [shape: bf16[512,64], index: 1, kind: input, shape index: {}]
  %s2 = inlined_call_operand.vmem [shape: f32[1,64], index: 2, kind: input, shape index: {}]
  %s3 = inlined_call_operand.vmem [shape: bf16[9,64,128], index: 3, kind: input, shape index: {}]
  %s4 = inlined_call_operand.vmem [shape: f32[1,128], index: 4, kind: input, shape index: {}]
  %s5 = inlined_call_operand.vmem [shape: bf16[128,512], index: 5, kind: input, shape index: {}]
  %s6 = inlined_call_operand.vmem [shape: f32[1,512], index: 6, kind: input, shape index: {}]
  %s7 = inlined_call_operand.vmem [shape: bf16[512,128], index: 7, kind: input, shape index: {}]
  %s8 = inlined_call_operand.vmem [shape: f32[1,128], index: 8, kind: input, shape index: {}]
  %s9 = inlined_call_operand.vmem [shape: bf16[128,512], index: 9, kind: input, shape index: {}]
  %s10 = inlined_call_operand.vmem [shape: f32[1,512], index: 10, kind: input, shape index: {}]
  %s11 = inlined_call_operand.vmem [shape: bf16[512,128], index: 11, kind: input, shape index: {}]
  %s12 = inlined_call_operand.vmem [shape: f32[1,128], index: 12, kind: input, shape index: {}]
  %s13 = inlined_call_operand.vmem [shape: f32[2,128], index: 13, kind: output, shape index: {0}]
  %s14 = inlined_call_operand.vmem [shape: f32[2,128], index: 14, kind: output, shape index: {1}]
  %15 = xla_tuple %s13, %s14
  %s16 = sld [smem:[#allocation0]]
  $region70: #{convddqn_forward.3} parent=0
    _
  %s18 = ssub.s32 1, %s16
  %s19 = scalar_select 0, %s18, %s16
  // Predicated region
  $region2: #{convddqn_forward.3} parent=0 // pred_check
    _
  $region3: #{convddqn_forward.3} parent=0 // pred_check_branch
    %21 = sbr.rel (0) target = $region5
  $region4: #{convddqn_forward.3} parent=0 // pred_region
    _
  $region5: #{convddqn_forward.3} parent=0 // pred_fallthru
    _
  // Predicated region
  $region6: #{convddqn_forward.3} parent=0 // pred_check
    _
  $region7: #{convddqn_forward.3} parent=0 // pred_check_branch
    %23 = sbr.rel (0) target = $region9
  $region8: #{convddqn_forward.3} parent=0 // pred_region
    _
  $region9: #{convddqn_forward.3} parent=0 // pred_fallthru
    _
  // Predicated region
  $region10: #{convddqn_forward.3} parent=0 // pred_check
    _
  $region11: #{convddqn_forward.3} parent=0 // pred_check_branch
    %25 = sbr.rel (0) target = $region13
  $region12: #{convddqn_forward.3} parent=0 // pred_region
    _
  $region13: #{convddqn_forward.3} parent=0 // pred_fallthru
    _
  // Predicated region
  $region14: #{convddqn_forward.3} parent=0 // pred_check
    _
  $region15: #{convddqn_forward.3} parent=0 // pred_check_branch
    %27 = sbr.rel (0) target = $region17
  $region16: #{convddqn_forward.3} parent=0 // pred_region
    _
  $region17: #{convddqn_forward.3} parent=0 // pred_fallthru
    _
  // Predicated region
  $region18: #{convddqn_forward.3} parent=0 // pred_check
    _
  $region19: #{convddqn_forward.3} parent=0 // pred_check_branch
    %29 = sbr.rel (0) target = $region21
  $region20: #{convddqn_forward.3} parent=0 // pred_region
    _
  $region21: #{convddqn_forward.3} parent=0 // pred_fallthru
    _
  // Predicated region
  $region22: #{convddqn_forward.3} parent=0 // pred_check
    _
  $region23: #{convddqn_forward.3} parent=0 // pred_check_branch
    %31 = sbr.rel (0) target = $region25
  $region24: #{convddqn_forward.3} parent=0 // pred_region
    _
  $region25: #{convddqn_forward.3} parent=0 // pred_fallthru
    _
  // Predicated region
  $region26: #{convddqn_forward.3} parent=0 // pred_check
    _
  $region27: #{convddqn_forward.3} parent=0 // pred_check_branch
    %33 = sbr.rel (0) target = $region29
  $region28: #{convddqn_forward.3} parent=0 // pred_region
    _
  $region29: #{convddqn_forward.3} parent=0 // pred_fallthru
    _
  // Predicated region
  $region30: #{convddqn_forward.3} parent=0 // pred_check
    _
  $region31: #{convddqn_forward.3} parent=0 // pred_check_branch
    %35 = sbr.rel (0) target = $region33
  $region32: #{convddqn_forward.3} parent=0 // pred_region
    _
  $region33: #{convddqn_forward.3} parent=0 // pred_fallthru
    _
  // Predicated region
  $region34: #{convddqn_forward.3} parent=0 // pred_check
    _
  $region35: #{convddqn_forward.3} parent=0 // pred_check_branch
    %37 = sbr.rel (0) target = $region37
  $region36: #{convddqn_forward.3} parent=0 // pred_region
    _
  $region37: #{convddqn_forward.3} parent=0 // pred_fallthru
    _
  // Predicated region
  $region38: #{convddqn_forward.3} parent=0 // pred_check
    _
  $region39: #{convddqn_forward.3} parent=0 // pred_check_branch
    %39 = sbr.rel (0) target = $region41
  $region40: #{convddqn_forward.3} parent=0 // pred_region
    _
  $region41: #{convddqn_forward.3} parent=0 // pred_fallthru
    _
  // Predicated region
  $region42: #{convddqn_forward.3} parent=0 // pred_check
    _
  $region43: #{convddqn_forward.3} parent=0 // pred_check_branch
    %41 = sbr.rel (0) target = $region45
  $region44: #{convddqn_forward.3} parent=0 // pred_region
    _
  $region45: #{convddqn_forward.3} parent=0 // pred_fallthru
    _
  // Predicated region
  $region46: #{convddqn_forward.3} parent=0 // pred_check
    _
  $region47: #{convddqn_forward.3} parent=0 // pred_check_branch
    %43 = sbr.rel (0) target = $region49
  $region48: #{convddqn_forward.3} parent=0 // pred_region
    _
  $region49: #{convddqn_forward.3} parent=0 // pred_fallthru
    _
  // Predicated region
  $region50: #{convddqn_forward.3} parent=0 // pred_check
    _
  $region51: #{convddqn_forward.3} parent=0 // pred_check_branch
    %45 = sbr.rel (0) target = $region53
  $region52: #{convddqn_forward.3} parent=0 // pred_region
    _
  $region53: #{convddqn_forward.3} parent=0 // pred_fallthru
    _
  %v47 = vld [vmem:[%s0] sm:$0xf]
  %v48 = vld [vmem:[%s1] sm:$0xf]
  %v49 = vld [vmem:[%s1 + $0x4] sm:$0xf]
  %v50 = vld [vmem:[%s1 + $0x8] sm:$0xf]
  %v51 = vld [vmem:[%s1 + $0xc] sm:$0xf]
  %v52 = vld [vmem:[%s1 + $0x10] sm:$0xf]
  %v53 = vld [vmem:[%s1 + $0x14] sm:$0xf]
  %v54 = vld [vmem:[%s1 + $0x18] sm:$0xf]
  %v55 = vld [vmem:[%s1 + $0x1c] sm:$0xf]
  %v56 = vld [vmem:[%s1 + $0x20] sm:$0xf]
  %v57 = vld [vmem:[%s1 + $0x24] sm:$0xf]
  %v58 = vld [vmem:[%s1 + $0x28] sm:$0xf]
  %v59 = vld [vmem:[%s1 + $0x2c] sm:$0xf]
  %v60 = vld [vmem:[%s1 + $0x30] sm:$0xf]
  %v61 = vld [vmem:[%s1 + $0x34] sm:$0xf]
  %v62 = vld [vmem:[%s1 + $0x38] sm:$0xf]
  %v63 = vld [vmem:[%s1 + $0x3c] sm:$0xf]
  %v64 = vld [vmem:[%s1 + $0x40] sm:$0xf]
  %v65 = vld [vmem:[%s1 + $0x44] sm:$0xf]
  %v66 = vld [vmem:[%s1 + $0x48] sm:$0xf]
  %v67 = vld [vmem:[%s1 + $0x4c] sm:$0xf]
  %v68 = vld [vmem:[%s1 + $0x50] sm:$0xf]
  %v69 = vld [vmem:[%s1 + $0x54] sm:$0xf]
  %v70 = vld [vmem:[%s1 + $0x58] sm:$0xf]
  %v71 = vld [vmem:[%s1 + $0x5c] sm:$0xf]
  %v72 = vld [vmem:[%s1 + $0x60] sm:$0xf]
  %v73 = vld [vmem:[%s1 + $0x64] sm:$0xf]
  %v74 = vld [vmem:[%s1 + $0x68] sm:$0xf]
  %v75 = vld [vmem:[%s1 + $0x6c] sm:$0xf]
  %v76 = vld [vmem:[%s1 + $0x70] sm:$0xf]
  %v77 = vld [vmem:[%s1 + $0x74] sm:$0xf]
  %v78 = vld [vmem:[%s1 + $0x78] sm:$0xf]
  %v79 = vld [vmem:[%s1 + $0x7c] sm:$0xf]
  %v80 = vld [vmem:[%s1 + $0x80] sm:$0xf]
  %v81 = vld [vmem:[%s1 + $0x84] sm:$0xf]
  %v82 = vld [vmem:[%s1 + $0x88] sm:$0xf]
  %v83 = vld [vmem:[%s1 + $0x8c] sm:$0xf]
  %v84 = vld [vmem:[%s1 + $0x90] sm:$0xf]
  %v85 = vld [vmem:[%s1 + $0x94] sm:$0xf]
  %v86 = vld [vmem:[%s1 + $0x98] sm:$0xf]
  %v87 = vld [vmem:[%s1 + $0x9c] sm:$0xf]
  %v88 = vld [vmem:[%s1 + $0xa0] sm:$0xf]
  %v89 = vld [vmem:[%s1 + $0xa4] sm:$0xf]
  %v90 = vld [vmem:[%s1 + $0xa8] sm:$0xf]
  %v91 = vld [vmem:[%s1 + $0xac] sm:$0xf]
  %v92 = vld [vmem:[%s1 + $0xb0] sm:$0xf]
  %v93 = vld [vmem:[%s1 + $0xb4] sm:$0xf]
  %v94 = vld [vmem:[%s1 + $0xb8] sm:$0xf]
  %v95 = vld [vmem:[%s1 + $0xbc] sm:$0xf]
  %v96 = vld [vmem:[%s1 + $0xc0] sm:$0xf]
  %v97 = vld [vmem:[%s1 + $0xc4] sm:$0xf]
  %v98 = vld [vmem:[%s1 + $0xc8] sm:$0xf]
  %v99 = vld [vmem:[%s1 + $0xcc] sm:$0xf]
  %v100 = vld [vmem:[%s1 + $0xd0] sm:$0xf]
  %v101 = vld [vmem:[%s1 + $0xd4] sm:$0xf]
  %v102 = vld [vmem:[%s1 + $0xd8] sm:$0xf]
  %v103 = vld [vmem:[%s1 + $0xdc] sm:$0xf]
  %v104 = vld [vmem:[%s1 + $0xe0] sm:$0xf]
  %v105 = vld [vmem:[%s1 + $0xe4] sm:$0xf]
  %v106 = vld [vmem:[%s1 + $0xe8] sm:$0xf]
  %v107 = vld [vmem:[%s1 + $0xec] sm:$0xf]
  %v108 = vld [vmem:[%s1 + $0xf0] sm:$0xf]
  %v109 = vld [vmem:[%s1 + $0xf4] sm:$0xf]
  %v110 = vld [vmem:[%s1 + $0xf8] sm:$0xf]
  %v111 = vld [vmem:[%s1 + $0xfc] sm:$0xf]
  %v112 = vld [vmem:[%s2] sm:$0x1]
  %v114 = vlaneseq
  %v115 = vshrl.u32 %v114, 7
  %v116 = vsub.s32 0, %v115
  %v117 = vrot.slane %v112, %v116
  %v121 = vunpack.c.l.s4 1966171168
  %v122 = vunpack.c.0.s8 %v121
  %v123 = vlaneseq
  %v124 = vshrl.u32 %v123, 7
  %v125 = vsub.s32 %v122, %v124
  %v126 = vrot.slane %v47, %v125
  %v127 = vcombine.high %v126, %v126
  %v129 = vunpack.c.l.s4 1966171168
  %v130 = vunpack.c.0.s8 %v129
  %v131 = vlaneseq
  %v132 = vshrl.u32 %v131, 7
  %v133 = vsub.s32 %v130, %v132
  %v134 = vrot.slane %v126, %v133
  %v136 = vunpack.c.l.s4 1966171168
  %v137 = vunpack.c.0.s8 %v136
  %v138 = vlaneseq
  %v139 = vshrl.u32 %v138, 7
  %v140 = vsub.s32 %v137, %v139
  %v141 = vrot.slane %v127, %v140
  %v142 = vcombine.high %v134, %v134
  %v143 = vcombine.high %v141, %v141
  %v212 = vunpack.c.l.b16 %v48
  %v213 = vunpack.c.l.b16 %v49
  %v214 = vunpack.c.l.b16 %v50
  %v215 = vunpack.c.l.b16 %v51
  %v216 = vunpack.c.l.b16 %v52
  %v217 = vunpack.c.l.b16 %v53
  %v218 = vunpack.c.l.b16 %v54
  %v219 = vunpack.c.l.b16 %v55
  %v220 = vunpack.c.l.b16 %v56
  %v221 = vunpack.c.l.b16 %v57
  %v222 = vunpack.c.l.b16 %v58
  %v223 = vunpack.c.l.b16 %v59
  %v224 = vunpack.c.l.b16 %v60
  %v225 = vunpack.c.l.b16 %v61
  %v226 = vunpack.c.l.b16 %v62
  %v227 = vunpack.c.l.b16 %v63
  %v228 = vunpack.c.l.b16 %v64
  %v229 = vunpack.c.l.b16 %v65
  %v230 = vunpack.c.l.b16 %v66
  %v231 = vunpack.c.l.b16 %v67
  %v232 = vunpack.c.l.b16 %v68
  %v233 = vunpack.c.l.b16 %v69
  %v234 = vunpack.c.l.b16 %v70
  %v235 = vunpack.c.l.b16 %v71
  %v236 = vunpack.c.l.b16 %v72
  %v237 = vunpack.c.l.b16 %v73
  %v238 = vunpack.c.l.b16 %v74
  %v239 = vunpack.c.l.b16 %v75
  %v240 = vunpack.c.l.b16 %v76
  %v241 = vunpack.c.l.b16 %v77
  %v242 = vunpack.c.l.b16 %v78
  %v243 = vunpack.c.l.b16 %v79
  %v244 = vunpack.c.l.b16 %v80
  %v245 = vunpack.c.l.b16 %v81
  %v246 = vunpack.c.l.b16 %v82
  %v247 = vunpack.c.l.b16 %v83
  %v248 = vunpack.c.l.b16 %v84
  %v249 = vunpack.c.l.b16 %v85
  %v250 = vunpack.c.l.b16 %v86
  %v251 = vunpack.c.l.b16 %v87
  %v252 = vunpack.c.l.b16 %v88
  %v253 = vunpack.c.l.b16 %v89
  %v254 = vunpack.c.l.b16 %v90
  %v255 = vunpack.c.l.b16 %v91
  %v256 = vunpack.c.l.b16 %v92
  %v257 = vunpack.c.l.b16 %v93
  %v258 = vunpack.c.l.b16 %v94
  %v259 = vunpack.c.l.b16 %v95
  %v260 = vunpack.c.l.b16 %v96
  %v261 = vunpack.c.l.b16 %v97
  %v262 = vunpack.c.l.b16 %v98
  %v263 = vunpack.c.l.b16 %v99
  %v264 = vunpack.c.l.b16 %v100
  %v265 = vunpack.c.l.b16 %v101
  %v266 = vunpack.c.l.b16 %v102
  %v267 = vunpack.c.l.b16 %v103
  %v268 = vunpack.c.l.b16 %v104
  %v269 = vunpack.c.l.b16 %v105
  %v270 = vunpack.c.l.b16 %v106
  %v271 = vunpack.c.l.b16 %v107
  %v272 = vunpack.c.l.b16 %v108
  %v273 = vunpack.c.l.b16 %v109
  %v274 = vunpack.c.l.b16 %v110
  %v275 = vunpack.c.l.b16 %v111
  %v276 = vpack.c.b16 %v213, %v212
  %v277 = vpack.c.b16 %v215, %v214
  %v278 = vpack.c.b16 %v217, %v216
  %v279 = vpack.c.b16 %v219, %v218
  %v280 = vpack.c.b16 %v221, %v220
  %v281 = vpack.c.b16 %v223, %v222
  %v282 = vpack.c.b16 %v225, %v224
  %v283 = vpack.c.b16 %v227, %v226
  %v284 = vpack.c.b16 %v229, %v228
  %v285 = vpack.c.b16 %v231, %v230
  %v286 = vpack.c.b16 %v233, %v232
  %v287 = vpack.c.b16 %v235, %v234
  %v288 = vpack.c.b16 %v237, %v236
  %v289 = vpack.c.b16 %v239, %v238
  %v290 = vpack.c.b16 %v241, %v240
  %v291 = vpack.c.b16 %v243, %v242
  %v292 = vpack.c.b16 %v245, %v244
  %v293 = vpack.c.b16 %v247, %v246
  %v294 = vpack.c.b16 %v249, %v248
  %v295 = vpack.c.b16 %v251, %v250
  %v296 = vpack.c.b16 %v253, %v252
  %v297 = vpack.c.b16 %v255, %v254
  %v298 = vpack.c.b16 %v257, %v256
  %v299 = vpack.c.b16 %v259, %v258
  %v300 = vpack.c.b16 %v261, %v260
  %v301 = vpack.c.b16 %v263, %v262
  %v302 = vpack.c.b16 %v265, %v264
  %v303 = vpack.c.b16 %v267, %v266
  %v304 = vpack.c.b16 %v269, %v268
  %v305 = vpack.c.b16 %v271, %v270
  %v306 = vpack.c.b16 %v273, %v272
  %v307 = vpack.c.b16 %v275, %v274
  %340 = vmatprep.subr.bf16.mxu0 0
  %341 = vmatpush1.bf16.msra.mxu0 %v276
  %342 = vmatprep.subr.bf16.mxu0 0
  %343 = vmatpush1.bf16.msra.mxu0 %v277
  %344 = vmatprep.subr.bf16.mxu0 0
  %345 = vmatpush1.bf16.msra.mxu0 %v278
  %346 = vmatprep.subr.bf16.mxu0 0
  %347 = vmatpush1.bf16.msra.mxu0 %v279
  %348 = vmatprep.subr.bf16.mxu0 0
  %349 = vmatpush1.bf16.msra.mxu0 %v280
  %350 = vmatprep.subr.bf16.mxu0 0
  %351 = vmatpush1.bf16.msra.mxu0 %v281
  %352 = vmatprep.subr.bf16.mxu0 0
  %353 = vmatpush1.bf16.msra.mxu0 %v282
  %354 = vmatprep.subr.bf16.mxu0 0
  %355 = vmatpush1.bf16.msra.mxu0 %v283
  %356 = vmatprep.subr.bf16.mxu0 0
  %357 = vmatpush1.bf16.msra.mxu0 %v284
  %358 = vmatprep.subr.bf16.mxu0 0
  %359 = vmatpush1.bf16.msra.mxu0 %v285
  %360 = vmatprep.subr.bf16.mxu0 0
  %361 = vmatpush1.bf16.msra.mxu0 %v286
  %362 = vmatprep.subr.bf16.mxu0 0
  %363 = vmatpush1.bf16.msra.mxu0 %v287
  %364 = vmatprep.subr.bf16.mxu0 0
  %365 = vmatpush1.bf16.msra.mxu0 %v288
  %366 = vmatprep.subr.bf16.mxu0 0
  %367 = vmatpush1.bf16.msra.mxu0 %v289
  %368 = vmatprep.subr.bf16.mxu0 0
  %369 = vmatpush1.bf16.msra.mxu0 %v290
  %370 = vmatprep.subr.bf16.mxu0 0
  %371 = vmatpush1.bf16.msra.mxu0 %v291
  %372 = vmatprep.mubr.bf16.mxu0 %v141
  %373 = vmatmul.mubr.bf16.gmra.mrb[0].mxu0 %v134
  %v374 = vpop.f32.mrb[0].mxu0
  %v375 = vadd.f32 %v117, %v374
  %v376 = vpop.f32.mrb[0].mxu0
  %v377 = vpop.f32.mrb[0].mxu0
  %v378 = vpop.f32.mrb[0].mxu0
  %379 = vdwg.mxu0
  %380 = vmatprep.subr.bf16.mxu0 0
  %381 = vmatpush1.bf16.msra.mxu0 %v292
  %382 = vmatprep.subr.bf16.mxu0 0
  %383 = vmatpush1.bf16.msra.mxu0 %v293
  %384 = vmatprep.subr.bf16.mxu0 0
  %385 = vmatpush1.bf16.msra.mxu0 %v294
  %386 = vmatprep.subr.bf16.mxu0 0
  %387 = vmatpush1.bf16.msra.mxu0 %v295
  %388 = vmatprep.subr.bf16.mxu0 0
  %389 = vmatpush1.bf16.msra.mxu0 %v296
  %390 = vmatprep.subr.bf16.mxu0 0
  %391 = vmatpush1.bf16.msra.mxu0 %v297
  %392 = vmatprep.subr.bf16.mxu0 0
  %393 = vmatpush1.bf16.msra.mxu0 %v298
  %394 = vmatprep.subr.bf16.mxu0 0
  %395 = vmatpush1.bf16.msra.mxu0 %v299
  %396 = vmatprep.subr.bf16.mxu0 0
  %397 = vmatpush1.bf16.msra.mxu0 %v300
  %398 = vmatprep.subr.bf16.mxu0 0
  %399 = vmatpush1.bf16.msra.mxu0 %v301
  %400 = vmatprep.subr.bf16.mxu0 0
  %401 = vmatpush1.bf16.msra.mxu0 %v302
  %402 = vmatprep.subr.bf16.mxu0 0
  %403 = vmatpush1.bf16.msra.mxu0 %v303
  %404 = vmatprep.subr.bf16.mxu0 0
  %405 = vmatpush1.bf16.msra.mxu0 %v304
  %406 = vmatprep.subr.bf16.mxu0 0
  %407 = vmatpush1.bf16.msra.mxu0 %v305
  %408 = vmatprep.subr.bf16.mxu0 0
  %409 = vmatpush1.bf16.msra.mxu0 %v306
  %410 = vmatprep.subr.bf16.mxu0 0
  %411 = vmatpush1.bf16.msra.mxu0 %v307
  %412 = vmatprep.mubr.bf16.mxu0 %v143
  %413 = vmatmul.mubr.bf16.gmra.mrb[0].mxu0 %v142
  %v414 = vpop.f32.mrb[0].mxu0
  %v415 = vadd.f32 %v375, %v414
  %v416 = vpop.f32.mrb[0].mxu0
  %v417 = vpop.f32.mrb[0].mxu0
  %v418 = vpop.f32.mrb[0].mxu0
  %419 = vdwg.mxu0
  %v420 = vmax.f32 %v415, 0.0
  %v421 = vpack.c.bf16 %v420, %v420
  %v422 = vld [vmem:[%s3] sm:$0xf]
  %v423 = vld [vmem:[%s3 + $0x4] sm:$0xf]
  %v424 = vld [vmem:[%s3 + $0x8] sm:$0xf]
  %v425 = vld [vmem:[%s3 + $0xc] sm:$0xf]
  %v426 = vld [vmem:[%s3 + $0x10] sm:$0xf]
  %v427 = vld [vmem:[%s3 + $0x14] sm:$0xf]
  %v428 = vld [vmem:[%s3 + $0x18] sm:$0xf]
  %v429 = vld [vmem:[%s3 + $0x1c] sm:$0xf]
  %s430 = scalar_lea.vmem %s0, 4
  %v431 = vld [vmem:[%s430] sm:$0xf]
  %v434 = vunpack.c.l.s4 1966171168
  %v435 = vunpack.c.0.s8 %v434
  %v436 = vlaneseq
  %v437 = vshrl.u32 %v436, 7
  %v438 = vsub.s32 %v435, %v437
  %v439 = vrot.slane %v431, %v438
  %v440 = vcombine.high %v439, %v439
  %v442 = vunpack.c.l.s4 1966171168
  %v443 = vunpack.c.0.s8 %v442
  %v444 = vlaneseq
  %v445 = vshrl.u32 %v444, 7
  %v446 = vsub.s32 %v443, %v445
  %v447 = vrot.slane %v439, %v446
  %v449 = vunpack.c.l.s4 1966171168
  %v450 = vunpack.c.0.s8 %v449
  %v451 = vlaneseq
  %v452 = vshrl.u32 %v451, 7
  %v453 = vsub.s32 %v450, %v452
  %v454 = vrot.slane %v440, %v453
  %v455 = vcombine.high %v447, %v447
  %v456 = vcombine.high %v454, %v454
  %461 = vmatprep.subr.bf16.mxu0 0
  %462 = vmatpush1.bf16.msra.mxu0 %v276
  %463 = vmatprep.subr.bf16.mxu0 0
  %464 = vmatpush1.bf16.msra.mxu0 %v277
  %465 = vmatprep.subr.bf16.mxu0 0
  %466 = vmatpush1.bf16.msra.mxu0 %v278
  %467 = vmatprep.subr.bf16.mxu0 0
  %468 = vmatpush1.bf16.msra.mxu0 %v279
  %469 = vmatprep.subr.bf16.mxu0 0
  %470 = vmatpush1.bf16.msra.mxu0 %v280
  %471 = vmatprep.subr.bf16.mxu0 0
  %472 = vmatpush1.bf16.msra.mxu0 %v281
  %473 = vmatprep.subr.bf16.mxu0 0
  %474 = vmatpush1.bf16.msra.mxu0 %v282
  %475 = vmatprep.subr.bf16.mxu0 0
  %476 = vmatpush1.bf16.msra.mxu0 %v283
  %477 = vmatprep.subr.bf16.mxu0 0
  %478 = vmatpush1.bf16.msra.mxu0 %v284
  %479 = vmatprep.subr.bf16.mxu0 0
  %480 = vmatpush1.bf16.msra.mxu0 %v285
  %481 = vmatprep.subr.bf16.mxu0 0
  %482 = vmatpush1.bf16.msra.mxu0 %v286
  %483 = vmatprep.subr.bf16.mxu0 0
  %484 = vmatpush1.bf16.msra.mxu0 %v287
  %485 = vmatprep.subr.bf16.mxu0 0
  %486 = vmatpush1.bf16.msra.mxu0 %v288
  %487 = vmatprep.subr.bf16.mxu0 0
  %488 = vmatpush1.bf16.msra.mxu0 %v289
  %489 = vmatprep.subr.bf16.mxu0 0
  %490 = vmatpush1.bf16.msra.mxu0 %v290
  %491 = vmatprep.subr.bf16.mxu0 0
  %492 = vmatpush1.bf16.msra.mxu0 %v291
  %493 = vmatprep.mubr.bf16.mxu0 %v454
  %494 = vmatmul.mubr.bf16.gmra.mrb[0].mxu0 %v447
  %v495 = vpop.f32.mrb[0].mxu0
  %v496 = vadd.f32 %v117, %v495
  %v497 = vpop.f32.mrb[0].mxu0
  %v498 = vpop.f32.mrb[0].mxu0
  %v499 = vpop.f32.mrb[0].mxu0
  %500 = vdwg.mxu0
  %501 = vmatprep.subr.bf16.mxu0 0
  %502 = vmatpush1.bf16.msra.mxu0 %v292
  %503 = vmatprep.subr.bf16.mxu0 0
  %504 = vmatpush1.bf16.msra.mxu0 %v293
  %505 = vmatprep.subr.bf16.mxu0 0
  %506 = vmatpush1.bf16.msra.mxu0 %v294
  %507 = vmatprep.subr.bf16.mxu0 0
  %508 = vmatpush1.bf16.msra.mxu0 %v295
  %509 = vmatprep.subr.bf16.mxu0 0
  %510 = vmatpush1.bf16.msra.mxu0 %v296
  %511 = vmatprep.subr.bf16.mxu0 0
  %512 = vmatpush1.bf16.msra.mxu0 %v297
  %513 = vmatprep.subr.bf16.mxu0 0
  %514 = vmatpush1.bf16.msra.mxu0 %v298
  %515 = vmatprep.subr.bf16.mxu0 0
  %516 = vmatpush1.bf16.msra.mxu0 %v299
  %517 = vmatprep.subr.bf16.mxu0 0
  %518 = vmatpush1.bf16.msra.mxu0 %v300
  %519 = vmatprep.subr.bf16.mxu0 0
  %520 = vmatpush1.bf16.msra.mxu0 %v301
  %521 = vmatprep.subr.bf16.mxu0 0
  %522 = vmatpush1.bf16.msra.mxu0 %v302
  %523 = vmatprep.subr.bf16.mxu0 0
  %524 = vmatpush1.bf16.msra.mxu0 %v303
  %525 = vmatprep.subr.bf16.mxu0 0
  %526 = vmatpush1.bf16.msra.mxu0 %v304
  %527 = vmatprep.subr.bf16.mxu0 0
  %528 = vmatpush1.bf16.msra.mxu0 %v305
  %529 = vmatprep.subr.bf16.mxu0 0
  %530 = vmatpush1.bf16.msra.mxu0 %v306
  %531 = vmatprep.subr.bf16.mxu0 0
  %532 = vmatpush1.bf16.msra.mxu0 %v307
  %533 = vmatprep.mubr.bf16.mxu0 %v456
  %534 = vmatmul.mubr.bf16.gmra.mrb[0].mxu0 %v455
  %v535 = vpop.f32.mrb[0].mxu0
  %v536 = vadd.f32 %v496, %v535
  %v537 = vpop.f32.mrb[0].mxu0
  %v538 = vpop.f32.mrb[0].mxu0
  %v539 = vpop.f32.mrb[0].mxu0
  %540 = vdwg.mxu0
  %v541 = vmax.f32 %v536, 0.0
  %v542 = vpack.c.bf16 %v541, %v541
  %s543 = scalar_lea.vmem %s3, 32
  %v544 = vld [vmem:[%s543] sm:$0xf]
  %v545 = vld [vmem:[%s543 + $0x4] sm:$0xf]
  %v546 = vld [vmem:[%s543 + $0x8] sm:$0xf]
  %v547 = vld [vmem:[%s543 + $0xc] sm:$0xf]
  %v548 = vld [vmem:[%s543 + $0x10] sm:$0xf]
  %v549 = vld [vmem:[%s543 + $0x14] sm:$0xf]
  %v550 = vld [vmem:[%s543 + $0x18] sm:$0xf]
  %v551 = vld [vmem:[%s543 + $0x1c] sm:$0xf]
  %v560 = vunpack.c.l.b16 %v544
  %v561 = vunpack.c.l.b16 %v545
  %v562 = vunpack.c.l.b16 %v546
  %v563 = vunpack.c.l.b16 %v547
  %v564 = vunpack.c.l.b16 %v548
  %v565 = vunpack.c.l.b16 %v549
  %v566 = vunpack.c.l.b16 %v550
  %v567 = vunpack.c.l.b16 %v551
  %v568 = vpack.c.b16 %v561, %v560
  %v569 = vpack.c.b16 %v563, %v562
  %v570 = vpack.c.b16 %v565, %v564
  %v571 = vpack.c.b16 %v567, %v566
  %vm576 = vcmask 523264
  %v578 = vsel %vm576, %v542, 0
  %580 = vmatprep.subr.bf16.mxu0 0
  %581 = vmatpush1.bf16.msra.mxu0 %v568
  %582 = vmatprep.subr.bf16.mxu0 0
  %583 = vmatpush1.bf16.msra.mxu0 %v569
  %584 = vmatprep.subr.bf16.mxu0 0
  %585 = vmatpush1.bf16.msra.mxu0 %v570
  %586 = vmatprep.subr.bf16.mxu0 0
  %587 = vmatpush1.bf16.msra.mxu0 %v571
  %588 = vmatprep.subr.bf16.mxu0 0
  %589 = vmatpush1.bf16.msra.mxu0 0
  %590 = vmatprep.subr.bf16.mxu0 0
  %591 = vmatpush1.bf16.msra.mxu0 0
  %592 = vmatprep.subr.bf16.mxu0 0
  %593 = vmatpush1.bf16.msra.mxu0 0
  %594 = vmatprep.subr.bf16.mxu0 0
  %595 = vmatpush1.bf16.msra.mxu0 0
  %596 = vmatprep.subr.bf16.mxu0 0
  %597 = vmatpush1.bf16.msra.mxu0 0
  %598 = vmatprep.subr.bf16.mxu0 0
  %599 = vmatpush1.bf16.msra.mxu0 0
  %600 = vmatprep.subr.bf16.mxu0 0
  %601 = vmatpush1.bf16.msra.mxu0 0
  %602 = vmatprep.subr.bf16.mxu0 0
  %603 = vmatpush1.bf16.msra.mxu0 0
  %604 = vmatprep.subr.bf16.mxu0 0
  %605 = vmatpush1.bf16.msra.mxu0 0
  %606 = vmatprep.subr.bf16.mxu0 0
  %607 = vmatpush1.bf16.msra.mxu0 0
  %608 = vmatprep.subr.bf16.mxu0 0
  %609 = vmatpush1.bf16.msra.mxu0 0
  %610 = vmatprep.subr.bf16.mxu0 0
  %611 = vmatpush1.bf16.msra.mxu0 0
  %612 = vmatprep.mubr.bf16.mxu0 0
  %613 = vmatmul.mubr.bf16.gmra.mrb[0].mxu0 %v578
  %v614 = vpop.f32.mrb[0].mxu0
  %v615 = vadd.f32 0.0, %v614
  %v616 = vpop.f32.mrb[0].mxu0
  %v617 = vpop.f32.mrb[0].mxu0
  %v618 = vpop.f32.mrb[0].mxu0
  %619 = vdwg.mxu0
  %v628 = vunpack.c.l.b16 %v422
  %v629 = vunpack.c.l.b16 %v423
  %v630 = vunpack.c.l.b16 %v424
  %v631 = vunpack.c.l.b16 %v425
  %v632 = vunpack.c.l.b16 %v426
  %v633 = vunpack.c.l.b16 %v427
  %v634 = vunpack.c.l.b16 %v428
  %v635 = vunpack.c.l.b16 %v429
  %v636 = vpack.c.b16 %v629, %v628
  %v637 = vpack.c.b16 %v631, %v630
  %v638 = vpack.c.b16 %v633, %v632
  %v639 = vpack.c.b16 %v635, %v634
  %v645 = vsel %vm576, %v421, 0
  %647 = vmatprep.subr.bf16.mxu0 0
  %648 = vmatpush1.bf16.msra.mxu0 %v636
  %649 = vmatprep.subr.bf16.mxu0 0
  %650 = vmatpush1.bf16.msra.mxu0 %v637
  %651 = vmatprep.subr.bf16.mxu0 0
  %652 = vmatpush1.bf16.msra.mxu0 %v638
  %653 = vmatprep.subr.bf16.mxu0 0
  %654 = vmatpush1.bf16.msra.mxu0 %v639
  %655 = vmatprep.subr.bf16.mxu0 0
  %656 = vmatpush1.bf16.msra.mxu0 0
  %657 = vmatprep.subr.bf16.mxu0 0
  %658 = vmatpush1.bf16.msra.mxu0 0
  %659 = vmatprep.subr.bf16.mxu0 0
  %660 = vmatpush1.bf16.msra.mxu0 0
  %661 = vmatprep.subr.bf16.mxu0 0
  %662 = vmatpush1.bf16.msra.mxu0 0
  %663 = vmatprep.subr.bf16.mxu0 0
  %664 = vmatpush1.bf16.msra.mxu0 0
  %665 = vmatprep.subr.bf16.mxu0 0
  %666 = vmatpush1.bf16.msra.mxu0 0
  %667 = vmatprep.subr.bf16.mxu0 0
  %668 = vmatpush1.bf16.msra.mxu0 0
  %669 = vmatprep.subr.bf16.mxu0 0
  %670 = vmatpush1.bf16.msra.mxu0 0
  %671 = vmatprep.subr.bf16.mxu0 0
  %672 = vmatpush1.bf16.msra.mxu0 0
  %673 = vmatprep.subr.bf16.mxu0 0
  %674 = vmatpush1.bf16.msra.mxu0 0
  %675 = vmatprep.subr.bf16.mxu0 0
  %676 = vmatpush1.bf16.msra.mxu0 0
  %677 = vmatprep.subr.bf16.mxu0 0
  %678 = vmatpush1.bf16.msra.mxu0 0
  %679 = vmatprep.mubr.bf16.mxu0 0
  %680 = vmatmul.mubr.bf16.gmra.mrb[0].mxu0 %v645
  %v681 = vpop.f32.mrb[0].mxu0
  %v682 = vadd.f32 %v615, %v681
  %v683 = vpop.f32.mrb[0].mxu0
  %v684 = vpop.f32.mrb[0].mxu0
  %v685 = vpop.f32.mrb[0].mxu0
  %686 = vdwg.mxu0
  %s687 = scalar_lea.vmem %s0, 8
  %v688 = vld [vmem:[%s687] sm:$0xf]
  %v691 = vunpack.c.l.s4 1966171168
  %v692 = vunpack.c.0.s8 %v691
  %v693 = vlaneseq
  %v694 = vshrl.u32 %v693, 7
  %v695 = vsub.s32 %v692, %v694
  %v696 = vrot.slane %v688, %v695
  %v697 = vcombine.high %v696, %v696
  %v699 = vunpack.c.l.s4 1966171168
  %v700 = vunpack.c.0.s8 %v699
  %v701 = vlaneseq
  %v702 = vshrl.u32 %v701, 7
  %v703 = vsub.s32 %v700, %v702
  %v704 = vrot.slane %v696, %v703
  %v706 = vunpack.c.l.s4 1966171168
  %v707 = vunpack.c.0.s8 %v706
  %v708 = vlaneseq
  %v709 = vshrl.u32 %v708, 7
  %v710 = vsub.s32 %v707, %v709
  %v711 = vrot.slane %v697, %v710
  %v712 = vcombine.high %v704, %v704
  %v713 = vcombine.high %v711, %v711
  %718 = vmatprep.subr.bf16.mxu0 0
  %719 = vmatpush1.bf16.msra.mxu0 %v276
  %720 = vmatprep.subr.bf16.mxu0 0
  %721 = vmatpush1.bf16.msra.mxu0 %v277
  %722 = vmatprep.subr.bf16.mxu0 0
  %723 = vmatpush1.bf16.msra.mxu0 %v278
  %724 = vmatprep.subr.bf16.mxu0 0
  %725 = vmatpush1.bf16.msra.mxu0 %v279
  %726 = vmatprep.subr.bf16.mxu0 0
  %727 = vmatpush1.bf16.msra.mxu0 %v280
  %728 = vmatprep.subr.bf16.mxu0 0
  %729 = vmatpush1.bf16.msra.mxu0 %v281
  %730 = vmatprep.subr.bf16.mxu0 0
  %731 = vmatpush1.bf16.msra.mxu0 %v282
  %732 = vmatprep.subr.bf16.mxu0 0
  %733 = vmatpush1.bf16.msra.mxu0 %v283
  %734 = vmatprep.subr.bf16.mxu0 0
  %735 = vmatpush1.bf16.msra.mxu0 %v284
  %736 = vmatprep.subr.bf16.mxu0 0
  %737 = vmatpush1.bf16.msra.mxu0 %v285
  %738 = vmatprep.subr.bf16.mxu0 0
  %739 = vmatpush1.bf16.msra.mxu0 %v286
  %740 = vmatprep.subr.bf16.mxu0 0
  %741 = vmatpush1.bf16.msra.mxu0 %v287
  %742 = vmatprep.subr.bf16.mxu0 0
  %743 = vmatpush1.bf16.msra.mxu0 %v288
  %744 = vmatprep.subr.bf16.mxu0 0
  %745 = vmatpush1.bf16.msra.mxu0 %v289
  %746 = vmatprep.subr.bf16.mxu0 0
  %747 = vmatpush1.bf16.msra.mxu0 %v290
  %748 = vmatprep.subr.bf16.mxu0 0
  %749 = vmatpush1.bf16.msra.mxu0 %v291
  %750 = vmatprep.mubr.bf16.mxu0 %v711
  %751 = vmatmul.mubr.bf16.gmra.mrb[0].mxu0 %v704
  %v752 = vpop.f32.mrb[0].mxu0
  %v753 = vadd.f32 %v117, %v752
  %v754 = vpop.f32.mrb[0].mxu0
  %v755 = vpop.f32.mrb[0].mxu0
  %v756 = vpop.f32.mrb[0].mxu0
  %757 = vdwg.mxu0
  %758 = vmatprep.subr.bf16.mxu0 0
  %759 = vmatpush1.bf16.msra.mxu0 %v292
  %760 = vmatprep.subr.bf16.mxu0 0
  %761 = vmatpush1.bf16.msra.mxu0 %v293
  %762 = vmatprep.subr.bf16.mxu0 0
  %763 = vmatpush1.bf16.msra.mxu0 %v294
  %764 = vmatprep.subr.bf16.mxu0 0
  %765 = vmatpush1.bf16.msra.mxu0 %v295
  %766 = vmatprep.subr.bf16.mxu0 0
  %767 = vmatpush1.bf16.msra.mxu0 %v296
  %768 = vmatprep.subr.bf16.mxu0 0
  %769 = vmatpush1.bf16.msra.mxu0 %v297
  %770 = vmatprep.subr.bf16.mxu0 0
  %771 = vmatpush1.bf16.msra.mxu0 %v298
  %772 = vmatprep.subr.bf16.mxu0 0
  %773 = vmatpush1.bf16.msra.mxu0 %v299
  %774 = vmatprep.subr.bf16.mxu0 0
  %775 = vmatpush1.bf16.msra.mxu0 %v300
  %776 = vmatprep.subr.bf16.mxu0 0
  %777 = vmatpush1.bf16.msra.mxu0 %v301
  %778 = vmatprep.subr.bf16.mxu0 0
  %779 = vmatpush1.bf16.msra.mxu0 %v302
  %780 = vmatprep.subr.bf16.mxu0 0
  %781 = vmatpush1.bf16.msra.mxu0 %v303
  %782 = vmatprep.subr.bf16.mxu0 0
  %783 = vmatpush1.bf16.msra.mxu0 %v304
  %784 = vmatprep.subr.bf16.mxu0 0
  %785 = vmatpush1.bf16.msra.mxu0 %v305
  %786 = vmatprep.subr.bf16.mxu0 0
  %787 = vmatpush1.bf16.msra.mxu0 %v306
  %788 = vmatprep.subr.bf16.mxu0 0
  %789 = vmatpush1.bf16.msra.mxu0 %v307
  %790 = vmatprep.mubr.bf16.mxu0 %v713
  %791 = vmatmul.mubr.bf16.gmra.mrb[0].mxu0 %v712
  %v792 = vpop.f32.mrb[0].mxu0
  %v793 = vadd.f32 %v753, %v792
  %v794 = vpop.f32.mrb[0].mxu0
  %v795 = vpop.f32.mrb[0].mxu0
  %v796 = vpop.f32.mrb[0].mxu0
  %797 = vdwg.mxu0
  %v798 = vmax.f32 %v793, 0.0
  %v799 = vpack.c.bf16 %v798, %v798
  %s800 = scalar_lea.vmem %s3, 64
  %v801 = vld [vmem:[%s800] sm:$0xf]
  %v802 = vld [vmem:[%s800 + $0x4] sm:$0xf]
  %v803 = vld [vmem:[%s800 + $0x8] sm:$0xf]
  %v804 = vld [vmem:[%s800 + $0xc] sm:$0xf]
  %v805 = vld [vmem:[%s800 + $0x10] sm:$0xf]
  %v806 = vld [vmem:[%s800 + $0x14] sm:$0xf]
  %v807 = vld [vmem:[%s800 + $0x18] sm:$0xf]
  %v808 = vld [vmem:[%s800 + $0x1c] sm:$0xf]
  %v817 = vunpack.c.l.b16 %v801
  %v818 = vunpack.c.l.b16 %v802
  %v819 = vunpack.c.l.b16 %v803
  %v820 = vunpack.c.l.b16 %v804
  %v821 = vunpack.c.l.b16 %v805
  %v822 = vunpack.c.l.b16 %v806
  %v823 = vunpack.c.l.b16 %v807
  %v824 = vunpack.c.l.b16 %v808
  %v825 = vpack.c.b16 %v818, %v817
  %v826 = vpack.c.b16 %v820, %v819
  %v827 = vpack.c.b16 %v822, %v821
  %v828 = vpack.c.b16 %v824, %v823
  %v834 = vsel %vm576, %v799, 0
  %836 = vmatprep.subr.bf16.mxu0 0
  %837 = vmatpush1.bf16.msra.mxu0 %v825
  %838 = vmatprep.subr.bf16.mxu0 0
  %839 = vmatpush1.bf16.msra.mxu0 %v826
  %840 = vmatprep.subr.bf16.mxu0 0
  %841 = vmatpush1.bf16.msra.mxu0 %v827
  %842 = vmatprep.subr.bf16.mxu0 0
  %843 = vmatpush1.bf16.msra.mxu0 %v828
  %844 = vmatprep.subr.bf16.mxu0 0
  %845 = vmatpush1.bf16.msra.mxu0 0
  %846 = vmatprep.subr.bf16.mxu0 0
  %847 = vmatpush1.bf16.msra.mxu0 0
  %848 = vmatprep.subr.bf16.mxu0 0
  %849 = vmatpush1.bf16.msra.mxu0 0
  %850 = vmatprep.subr.bf16.mxu0 0
  %851 = vmatpush1.bf16.msra.mxu0 0
  %852 = vmatprep.subr.bf16.mxu0 0
  %853 = vmatpush1.bf16.msra.mxu0 0
  %854 = vmatprep.subr.bf16.mxu0 0
  %855 = vmatpush1.bf16.msra.mxu0 0
  %856 = vmatprep.subr.bf16.mxu0 0
  %857 = vmatpush1.bf16.msra.mxu0 0
  %858 = vmatprep.subr.bf16.mxu0 0
  %859 = vmatpush1.bf16.msra.mxu0 0
  %860 = vmatprep.subr.bf16.mxu0 0
  %861 = vmatpush1.bf16.msra.mxu0 0
  %862 = vmatprep.subr.bf16.mxu0 0
  %863 = vmatpush1.bf16.msra.mxu0 0
  %864 = vmatprep.subr.bf16.mxu0 0
  %865 = vmatpush1.bf16.msra.mxu0 0
  %866 = vmatprep.subr.bf16.mxu0 0
  %867 = vmatpush1.bf16.msra.mxu0 0
  %868 = vmatprep.mubr.bf16.mxu0 0
  %869 = vmatmul.mubr.bf16.gmra.mrb[0].mxu0 %v834
  %v870 = vpop.f32.mrb[0].mxu0
  %v871 = vadd.f32 0.0, %v870
  %v872 = vpop.f32.mrb[0].mxu0
  %v873 = vpop.f32.mrb[0].mxu0
  %v874 = vpop.f32.mrb[0].mxu0
  %875 = vdwg.mxu0
  %v876 = vadd.f32 %v682, %v871
  %s877 = scalar_lea.vmem %s0, 12
  %v878 = vld [vmem:[%s877] sm:$0xf]
  %v881 = vunpack.c.l.s4 1966171168
  %v882 = vunpack.c.0.s8 %v881
  %v883 = vlaneseq
  %v884 = vshrl.u32 %v883, 7
  %v885 = vsub.s32 %v882, %v884
  %v886 = vrot.slane %v878, %v885
  %v887 = vcombine.high %v886, %v886
  %v889 = vunpack.c.l.s4 1966171168
  %v890 = vunpack.c.0.s8 %v889
  %v891 = vlaneseq
  %v892 = vshrl.u32 %v891, 7
  %v893 = vsub.s32 %v890, %v892
  %v894 = vrot.slane %v886, %v893
  %v896 = vunpack.c.l.s4 1966171168
  %v897 = vunpack.c.0.s8 %v896
  %v898 = vlaneseq
  %v899 = vshrl.u32 %v898, 7
  %v900 = vsub.s32 %v897, %v899
  %v901 = vrot.slane %v887, %v900
  %v902 = vcombine.high %v894, %v894
  %v903 = vcombine.high %v901, %v901
  %908 = vmatprep.subr.bf16.mxu0 0
  %909 = vmatpush1.bf16.msra.mxu0 %v276
  %910 = vmatprep.subr.bf16.mxu0 0
  %911 = vmatpush1.bf16.msra.mxu0 %v277
  %912 = vmatprep.subr.bf16.mxu0 0
  %913 = vmatpush1.bf16.msra.mxu0 %v278
  %914 = vmatprep.subr.bf16.mxu0 0
  %915 = vmatpush1.bf16.msra.mxu0 %v279
  %916 = vmatprep.subr.bf16.mxu0 0
  %917 = vmatpush1.bf16.msra.mxu0 %v280
  %918 = vmatprep.subr.bf16.mxu0 0
  %919 = vmatpush1.bf16.msra.mxu0 %v281
  %920 = vmatprep.subr.bf16.mxu0 0
  %921 = vmatpush1.bf16.msra.mxu0 %v282
  %922 = vmatprep.subr.bf16.mxu0 0
  %923 = vmatpush1.bf16.msra.mxu0 %v283
  %924 = vmatprep.subr.bf16.mxu0 0
  %925 = vmatpush1.bf16.msra.mxu0 %v284
  %926 = vmatprep.subr.bf16.mxu0 0
  %927 = vmatpush1.bf16.msra.mxu0 %v285
  %928 = vmatprep.subr.bf16.mxu0 0
  %929 = vmatpush1.bf16.msra.mxu0 %v286
  %930 = vmatprep.subr.bf16.mxu0 0
  %931 = vmatpush1.bf16.msra.mxu0 %v287
  %932 = vmatprep.subr.bf16.mxu0 0
  %933 = vmatpush1.bf16.msra.mxu0 %v288
  %934 = vmatprep.subr.bf16.mxu0 0
  %935 = vmatpush1.bf16.msra.mxu0 %v289
  %936 = vmatprep.subr.bf16.mxu0 0
  %937 = vmatpush1.bf16.msra.mxu0 %v290
  %938 = vmatprep.subr.bf16.mxu0 0
  %939 = vmatpush1.bf16.msra.mxu0 %v291
  %940 = vmatprep.mubr.bf16.mxu0 %v901
  %941 = vmatmul.mubr.bf16.gmra.mrb[0].mxu0 %v894
  %v942 = vpop.f32.mrb[0].mxu0
  %v943 = vadd.f32 %v117, %v942
  %v944 = vpop.f32.mrb[0].mxu0
  %v945 = vpop.f32.mrb[0].mxu0
  %v946 = vpop.f32.mrb[0].mxu0
  %947 = vdwg.mxu0
  %948 = vmatprep.subr.bf16.mxu0 0
  %949 = vmatpush1.bf16.msra.mxu0 %v292
  %950 = vmatprep.subr.bf16.mxu0 0
  %951 = vmatpush1.bf16.msra.mxu0 %v293
  %952 = vmatprep.subr.bf16.mxu0 0
  %953 = vmatpush1.bf16.msra.mxu0 %v294
  %954 = vmatprep.subr.bf16.mxu0 0
  %955 = vmatpush1.bf16.msra.mxu0 %v295
  %956 = vmatprep.subr.bf16.mxu0 0
  %957 = vmatpush1.bf16.msra.mxu0 %v296
  %958 = vmatprep.subr.bf16.mxu0 0
  %959 = vmatpush1.bf16.msra.mxu0 %v297
  %960 = vmatprep.subr.bf16.mxu0 0
  %961 = vmatpush1.bf16.msra.mxu0 %v298
  %962 = vmatprep.subr.bf16.mxu0 0
  %963 = vmatpush1.bf16.msra.mxu0 %v299
  %964 = vmatprep.subr.bf16.mxu0 0
  %965 = vmatpush1.bf16.msra.mxu0 %v300
  %966 = vmatprep.subr.bf16.mxu0 0
  %967 = vmatpush1.bf16.msra.mxu0 %v301
  %968 = vmatprep.subr.bf16.mxu0 0
  %969 = vmatpush1.bf16.msra.mxu0 %v302
  %970 = vmatprep.subr.bf16.mxu0 0
  %971 = vmatpush1.bf16.msra.mxu0 %v303
  %972 = vmatprep.subr.bf16.mxu0 0
  %973 = vmatpush1.bf16.msra.mxu0 %v304
  %974 = vmatprep.subr.bf16.mxu0 0
  %975 = vmatpush1.bf16.msra.mxu0 %v305
  %976 = vmatprep.subr.bf16.mxu0 0
  %977 = vmatpush1.bf16.msra.mxu0 %v306
  %978 = vmatprep.subr.bf16.mxu0 0
  %979 = vmatpush1.bf16.msra.mxu0 %v307
  %980 = vmatprep.mubr.bf16.mxu0 %v903
  %981 = vmatmul.mubr.bf16.gmra.mrb[0].mxu0 %v902
  %v982 = vpop.f32.mrb[0].mxu0
  %v983 = vadd.f32 %v943, %v982
  %v984 = vpop.f32.mrb[0].mxu0
  %v985 = vpop.f32.mrb[0].mxu0
  %v986 = vpop.f32.mrb[0].mxu0
  %987 = vdwg.mxu0
  %v988 = vmax.f32 %v983, 0.0
  %v989 = vpack.c.bf16 %v988, %v988
  %s990 = scalar_lea.vmem %s3, 96
  %v991 = vld [vmem:[%s990] sm:$0xf]
  %v992 = vld [vmem:[%s990 + $0x4] sm:$0xf]
  %v993 = vld [vmem:[%s990 + $0x8] sm:$0xf]
  %v994 = vld [vmem:[%s990 + $0xc] sm:$0xf]
  %v995 = vld [vmem:[%s990 + $0x10] sm:$0xf]
  %v996 = vld [vmem:[%s990 + $0x14] sm:$0xf]
  %v997 = vld [vmem:[%s990 + $0x18] sm:$0xf]
  %v998 = vld [vmem:[%s990 + $0x1c] sm:$0xf]
  %v1007 = vunpack.c.l.b16 %v991
  %v1008 = vunpack.c.l.b16 %v992
  %v1009 = vunpack.c.l.b16 %v993
  %v1010 = vunpack.c.l.b16 %v994
  %v1011 = vunpack.c.l.b16 %v995
  %v1012 = vunpack.c.l.b16 %v996
  %v1013 = vunpack.c.l.b16 %v997
  %v1014 = vunpack.c.l.b16 %v998
  %v1015 = vpack.c.b16 %v1008, %v1007
  %v1016 = vpack.c.b16 %v1010, %v1009
  %v1017 = vpack.c.b16 %v1012, %v1011
  %v1018 = vpack.c.b16 %v1014, %v1013
  %v1024 = vsel %vm576, %v989, 0
  %1026 = vmatprep.subr.bf16.mxu0 0
  %1027 = vmatpush1.bf16.msra.mxu0 %v1015
  %1028 = vmatprep.subr.bf16.mxu0 0
  %1029 = vmatpush1.bf16.msra.mxu0 %v1016
  %1030 = vmatprep.subr.bf16.mxu0 0
  %1031 = vmatpush1.bf16.msra.mxu0 %v1017
  %1032 = vmatprep.subr.bf16.mxu0 0
  %1033 = vmatpush1.bf16.msra.mxu0 %v1018
  %1034 = vmatprep.subr.bf16.mxu0 0
  %1035 = vmatpush1.bf16.msra.mxu0 0
  %1036 = vmatprep.subr.bf16.mxu0 0
  %1037 = vmatpush1.bf16.msra.mxu0 0
  %1038 = vmatprep.subr.bf16.mxu0 0
  %1039 = vmatpush1.bf16.msra.mxu0 0
  %1040 = vmatprep.subr.bf16.mxu0 0
  %1041 = vmatpush1.bf16.msra.mxu0 0
  %1042 = vmatprep.subr.bf16.mxu0 0
  %1043 = vmatpush1.bf16.msra.mxu0 0
  %1044 = vmatprep.subr.bf16.mxu0 0
  %1045 = vmatpush1.bf16.msra.mxu0 0
  %1046 = vmatprep.subr.bf16.mxu0 0
  %1047 = vmatpush1.bf16.msra.mxu0 0
  %1048 = vmatprep.subr.bf16.mxu0 0
  %1049 = vmatpush1.bf16.msra.mxu0 0
  %1050 = vmatprep.subr.bf16.mxu0 0
  %1051 = vmatpush1.bf16.msra.mxu0 0
  %1052 = vmatprep.subr.bf16.mxu0 0
  %1053 = vmatpush1.bf16.msra.mxu0 0
  %1054 = vmatprep.subr.bf16.mxu0 0
  %1055 = vmatpush1.bf16.msra.mxu0 0
  %1056 = vmatprep.subr.bf16.mxu0 0
  %1057 = vmatpush1.bf16.msra.mxu0 0
  %1058 = vmatprep.mubr.bf16.mxu0 0
  %1059 = vmatmul.mubr.bf16.gmra.mrb[0].mxu0 %v1024
  %v1060 = vpop.f32.mrb[0].mxu0
  %v1061 = vadd.f32 0.0, %v1060
  %v1062 = vpop.f32.mrb[0].mxu0
  %v1063 = vpop.f32.mrb[0].mxu0
  %v1064 = vpop.f32.mrb[0].mxu0
  %1065 = vdwg.mxu0
  %v1066 = vadd.f32 %v876, %v1061
  %s1067 = scalar_lea.vmem %s0, 16
  %v1068 = vld [vmem:[%s1067] sm:$0xf]
  %v1071 = vunpack.c.l.s4 1966171168
  %v1072 = vunpack.c.0.s8 %v1071
  %v1073 = vlaneseq
  %v1074 = vshrl.u32 %v1073, 7
  %v1075 = vsub.s32 %v1072, %v1074
  %v1076 = vrot.slane %v1068, %v1075
  %v1077 = vcombine.high %v1076, %v1076
  %v1079 = vunpack.c.l.s4 1966171168
  %v1080 = vunpack.c.0.s8 %v1079
  %v1081 = vlaneseq
  %v1082 = vshrl.u32 %v1081, 7
  %v1083 = vsub.s32 %v1080, %v1082
  %v1084 = vrot.slane %v1076, %v1083
  %v1086 = vunpack.c.l.s4 1966171168
  %v1087 = vunpack.c.0.s8 %v1086
  %v1088 = vlaneseq
  %v1089 = vshrl.u32 %v1088, 7
  %v1090 = vsub.s32 %v1087, %v1089
  %v1091 = vrot.slane %v1077, %v1090
  %v1092 = vcombine.high %v1084, %v1084
  %v1093 = vcombine.high %v1091, %v1091
  %1098 = vmatprep.subr.bf16.mxu0 0
  %1099 = vmatpush1.bf16.msra.mxu0 %v276
  %1100 = vmatprep.subr.bf16.mxu0 0
  %1101 = vmatpush1.bf16.msra.mxu0 %v277
  %1102 = vmatprep.subr.bf16.mxu0 0
  %1103 = vmatpush1.bf16.msra.mxu0 %v278
  %1104 = vmatprep.subr.bf16.mxu0 0
  %1105 = vmatpush1.bf16.msra.mxu0 %v279
  %1106 = vmatprep.subr.bf16.mxu0 0
  %1107 = vmatpush1.bf16.msra.mxu0 %v280
  %1108 = vmatprep.subr.bf16.mxu0 0
  %1109 = vmatpush1.bf16.msra.mxu0 %v281
  %1110 = vmatprep.subr.bf16.mxu0 0
  %1111 = vmatpush1.bf16.msra.mxu0 %v282
  %1112 = vmatprep.subr.bf16.mxu0 0
  %1113 = vmatpush1.bf16.msra.mxu0 %v283
  %1114 = vmatprep.subr.bf16.mxu0 0
  %1115 = vmatpush1.bf16.msra.mxu0 %v284
  %1116 = vmatprep.subr.bf16.mxu0 0
  %1117 = vmatpush1.bf16.msra.mxu0 %v285
  %1118 = vmatprep.subr.bf16.mxu0 0
  %1119 = vmatpush1.bf16.msra.mxu0 %v286
  %1120 = vmatprep.subr.bf16.mxu0 0
  %1121 = vmatpush1.bf16.msra.mxu0 %v287
  %1122 = vmatprep.subr.bf16.mxu0 0
  %1123 = vmatpush1.bf16.msra.mxu0 %v288
  %1124 = vmatprep.subr.bf16.mxu0 0
  %1125 = vmatpush1.bf16.msra.mxu0 %v289
  %1126 = vmatprep.subr.bf16.mxu0 0
  %1127 = vmatpush1.bf16.msra.mxu0 %v290
  %1128 = vmatprep.subr.bf16.mxu0 0
  %1129 = vmatpush1.bf16.msra.mxu0 %v291
  %1130 = vmatprep.mubr.bf16.mxu0 %v1091
  %1131 = vmatmul.mubr.bf16.gmra.mrb[0].mxu0 %v1084
  %v1132 = vpop.f32.mrb[0].mxu0
  %v1133 = vadd.f32 %v117, %v1132
  %v1134 = vpop.f32.mrb[0].mxu0
  %v1135 = vpop.f32.mrb[0].mxu0
  %v1136 = vpop.f32.mrb[0].mxu0
  %1137 = vdwg.mxu0
  %1138 = vmatprep.subr.bf16.mxu0 0
  %1139 = vmatpush1.bf16.msra.mxu0 %v292
  %1140 = vmatprep.subr.bf16.mxu0 0
  %1141 = vmatpush1.bf16.msra.mxu0 %v293
  %1142 = vmatprep.subr.bf16.mxu0 0
  %1143 = vmatpush1.bf16.msra.mxu0 %v294
  %1144 = vmatprep.subr.bf16.mxu0 0
  %1145 = vmatpush1.bf16.msra.mxu0 %v295
  %1146 = vmatprep.subr.bf16.mxu0 0
  %1147 = vmatpush1.bf16.msra.mxu0 %v296
  %1148 = vmatprep.subr.bf16.mxu0 0
  %1149 = vmatpush1.bf16.msra.mxu0 %v297
  %1150 = vmatprep.subr.bf16.mxu0 0
  %1151 = vmatpush1.bf16.msra.mxu0 %v298
  %1152 = vmatprep.subr.bf16.mxu0 0
  %1153 = vmatpush1.bf16.msra.mxu0 %v299
  %1154 = vmatprep.subr.bf16.mxu0 0
  %1155 = vmatpush1.bf16.msra.mxu0 %v300
  %1156 = vmatprep.subr.bf16.mxu0 0
  %1157 = vmatpush1.bf16.msra.mxu0 %v301
  %1158 = vmatprep.subr.bf16.mxu0 0
  %1159 = vmatpush1.bf16.msra.mxu0 %v302
  %1160 = vmatprep.subr.bf16.mxu0 0
  %1161 = vmatpush1.bf16.msra.mxu0 %v303
  %1162 = vmatprep.subr.bf16.mxu0 0
  %1163 = vmatpush1.bf16.msra.mxu0 %v304
  %1164 = vmatprep.subr.bf16.mxu0 0
  %1165 = vmatpush1.bf16.msra.mxu0 %v305
  %1166 = vmatprep.subr.bf16.mxu0 0
  %1167 = vmatpush1.bf16.msra.mxu0 %v306
  %1168 = vmatprep.subr.bf16.mxu0 0
  %1169 = vmatpush1.bf16.msra.mxu0 %v307
  %1170 = vmatprep.mubr.bf16.mxu0 %v1093
  %1171 = vmatmul.mubr.bf16.gmra.mrb[0].mxu0 %v1092
  %v1172 = vpop.f32.mrb[0].mxu0
  %v1173 = vadd.f32 %v1133, %v1172
  %v1174 = vpop.f32.mrb[0].mxu0
  %v1175 = vpop.f32.mrb[0].mxu0
  %v1176 = vpop.f32.mrb[0].mxu0
  %1177 = vdwg.mxu0
  %v1178 = vmax.f32 %v1173, 0.0
  %v1179 = vpack.c.bf16 %v1178, %v1178
  %s1180 = scalar_lea.vmem %s3, 128
  %v1181 = vld [vmem:[%s1180] sm:$0xf]
  %v1182 = vld [vmem:[%s1180 + $0x4] sm:$0xf]
  %v1183 = vld [vmem:[%s1180 + $0x8] sm:$0xf]
  %v1184 = vld [vmem:[%s1180 + $0xc] sm:$0xf]
  %v1185 = vld [vmem:[%s1180 + $0x10] sm:$0xf]
  %v1186 = vld [vmem:[%s1180 + $0x14] sm:$0xf]
  %v1187 = vld [vmem:[%s1180 + $0x18] sm:$0xf]
  %v1188 = vld [vmem:[%s1180 + $0x1c] sm:$0xf]
  %v1197 = vunpack.c.l.b16 %v1181
  %v1198 = vunpack.c.l.b16 %v1182
  %v1199 = vunpack.c.l.b16 %v1183
  %v1200 = vunpack.c.l.b16 %v1184
  %v1201 = vunpack.c.l.b16 %v1185
  %v1202 = vunpack.c.l.b16 %v1186
  %v1203 = vunpack.c.l.b16 %v1187
  %v1204 = vunpack.c.l.b16 %v1188
  %v1205 = vpack.c.b16 %v1198, %v1197
  %v1206 = vpack.c.b16 %v1200, %v1199
  %v1207 = vpack.c.b16 %v1202, %v1201
  %v1208 = vpack.c.b16 %v1204, %v1203
  %v1214 = vsel %vm576, %v1179, 0
  %1216 = vmatprep.subr.bf16.mxu0 0
  %1217 = vmatpush1.bf16.msra.mxu0 %v1205
  %1218 = vmatprep.subr.bf16.mxu0 0
  %1219 = vmatpush1.bf16.msra.mxu0 %v1206
  %1220 = vmatprep.subr.bf16.mxu0 0
  %1221 = vmatpush1.bf16.msra.mxu0 %v1207
  %1222 = vmatprep.subr.bf16.mxu0 0
  %1223 = vmatpush1.bf16.msra.mxu0 %v1208
  %1224 = vmatprep.subr.bf16.mxu0 0
  %1225 = vmatpush1.bf16.msra.mxu0 0
  %1226 = vmatprep.subr.bf16.mxu0 0
  %1227 = vmatpush1.bf16.msra.mxu0 0
  %1228 = vmatprep.subr.bf16.mxu0 0
  %1229 = vmatpush1.bf16.msra.mxu0 0
  %1230 = vmatprep.subr.bf16.mxu0 0
  %1231 = vmatpush1.bf16.msra.mxu0 0
  %1232 = vmatprep.subr.bf16.mxu0 0
  %1233 = vmatpush1.bf16.msra.mxu0 0
  %1234 = vmatprep.subr.bf16.mxu0 0
  %1235 = vmatpush1.bf16.msra.mxu0 0
  %1236 = vmatprep.subr.bf16.mxu0 0
  %1237 = vmatpush1.bf16.msra.mxu0 0
  %1238 = vmatprep.subr.bf16.mxu0 0
  %1239 = vmatpush1.bf16.msra.mxu0 0
  %1240 = vmatprep.subr.bf16.mxu0 0
  %1241 = vmatpush1.bf16.msra.mxu0 0
  %1242 = vmatprep.subr.bf16.mxu0 0
  %1243 = vmatpush1.bf16.msra.mxu0 0
  %1244 = vmatprep.subr.bf16.mxu0 0
  %1245 = vmatpush1.bf16.msra.mxu0 0
  %1246 = vmatprep.subr.bf16.mxu0 0
  %1247 = vmatpush1.bf16.msra.mxu0 0
  %1248 = vmatprep.mubr.bf16.mxu0 0
  %1249 = vmatmul.mubr.bf16.gmra.mrb[0].mxu0 %v1214
  %v1250 = vpop.f32.mrb[0].mxu0
  %v1251 = vadd.f32 0.0, %v1250
  %v1252 = vpop.f32.mrb[0].mxu0
  %v1253 = vpop.f32.mrb[0].mxu0
  %v1254 = vpop.f32.mrb[0].mxu0
  %1255 = vdwg.mxu0
  %v1256 = vadd.f32 %v1066, %v1251
  %s1257 = scalar_lea.vmem %s0, 20
  %v1258 = vld [vmem:[%s1257] sm:$0xf]
  %v1261 = vunpack.c.l.s4 1966171168
  %v1262 = vunpack.c.0.s8 %v1261
  %v1263 = vlaneseq
  %v1264 = vshrl.u32 %v1263, 7
  %v1265 = vsub.s32 %v1262, %v1264
  %v1266 = vrot.slane %v1258, %v1265
  %v1267 = vcombine.high %v1266, %v1266
  %v1269 = vunpack.c.l.s4 1966171168
  %v1270 = vunpack.c.0.s8 %v1269
  %v1271 = vlaneseq
  %v1272 = vshrl.u32 %v1271, 7
  %v1273 = vsub.s32 %v1270, %v1272
  %v1274 = vrot.slane %v1266, %v1273
  %v1276 = vunpack.c.l.s4 1966171168
  %v1277 = vunpack.c.0.s8 %v1276
  %v1278 = vlaneseq
  %v1279 = vshrl.u32 %v1278, 7
  %v1280 = vsub.s32 %v1277, %v1279
  %v1281 = vrot.slane %v1267, %v1280
  %v1282 = vcombine.high %v1274, %v1274
  %v1283 = vcombine.high %v1281, %v1281
  %1288 = vmatprep.subr.bf16.mxu0 0
  %1289 = vmatpush1.bf16.msra.mxu0 %v276
  %1290 = vmatprep.subr.bf16.mxu0 0
  %1291 = vmatpush1.bf16.msra.mxu0 %v277
  %1292 = vmatprep.subr.bf16.mxu0 0
  %1293 = vmatpush1.bf16.msra.mxu0 %v278
  %1294 = vmatprep.subr.bf16.mxu0 0
  %1295 = vmatpush1.bf16.msra.mxu0 %v279
  %1296 = vmatprep.subr.bf16.mxu0 0
  %1297 = vmatpush1.bf16.msra.mxu0 %v280
  %1298 = vmatprep.subr.bf16.mxu0 0
  %1299 = vmatpush1.bf16.msra.mxu0 %v281
  %1300 = vmatprep.subr.bf16.mxu0 0
  %1301 = vmatpush1.bf16.msra.mxu0 %v282
  %1302 = vmatprep.subr.bf16.mxu0 0
  %1303 = vmatpush1.bf16.msra.mxu0 %v283
  %1304 = vmatprep.subr.bf16.mxu0 0
  %1305 = vmatpush1.bf16.msra.mxu0 %v284
  %1306 = vmatprep.subr.bf16.mxu0 0
  %1307 = vmatpush1.bf16.msra.mxu0 %v285
  %1308 = vmatprep.subr.bf16.mxu0 0
  %1309 = vmatpush1.bf16.msra.mxu0 %v286
  %1310 = vmatprep.subr.bf16.mxu0 0
  %1311 = vmatpush1.bf16.msra.mxu0 %v287
  %1312 = vmatprep.subr.bf16.mxu0 0
  %1313 = vmatpush1.bf16.msra.mxu0 %v288
  %1314 = vmatprep.subr.bf16.mxu0 0
  %1315 = vmatpush1.bf16.msra.mxu0 %v289
  %1316 = vmatprep.subr.bf16.mxu0 0
  %1317 = vmatpush1.bf16.msra.mxu0 %v290
  %1318 = vmatprep.subr.bf16.mxu0 0
  %1319 = vmatpush1.bf16.msra.mxu0 %v291
  %1320 = vmatprep.mubr.bf16.mxu0 %v1281
  %1321 = vmatmul.mubr.bf16.gmra.mrb[0].mxu0 %v1274
  %v1322 = vpop.f32.mrb[0].mxu0
  %v1323 = vadd.f32 %v117, %v1322
  %v1324 = vpop.f32.mrb[0].mxu0
  %v1325 = vpop.f32.mrb[0].mxu0
  %v1326 = vpop.f32.mrb[0].mxu0
  %1327 = vdwg.mxu0
  %1328 = vmatprep.subr.bf16.mxu0 0
  %1329 = vmatpush1.bf16.msra.mxu0 %v292
  %1330 = vmatprep.subr.bf16.mxu0 0
  %1331 = vmatpush1.bf16.msra.mxu0 %v293
  %1332 = vmatprep.subr.bf16.mxu0 0
  %1333 = vmatpush1.bf16.msra.mxu0 %v294
  %1334 = vmatprep.subr.bf16.mxu0 0
  %1335 = vmatpush1.bf16.msra.mxu0 %v295
  %1336 = vmatprep.subr.bf16.mxu0 0
  %1337 = vmatpush1.bf16.msra.mxu0 %v296
  %1338 = vmatprep.subr.bf16.mxu0 0
  %1339 = vmatpush1.bf16.msra.mxu0 %v297
  %1340 = vmatprep.subr.bf16.mxu0 0
  %1341 = vmatpush1.bf16.msra.mxu0 %v298
  %1342 = vmatprep.subr.bf16.mxu0 0
  %1343 = vmatpush1.bf16.msra.mxu0 %v299
  %1344 = vmatprep.subr.bf16.mxu0 0
  %1345 = vmatpush1.bf16.msra.mxu0 %v300
  %1346 = vmatprep.subr.bf16.mxu0 0
  %1347 = vmatpush1.bf16.msra.mxu0 %v301
  %1348 = vmatprep.subr.bf16.mxu0 0
  %1349 = vmatpush1.bf16.msra.mxu0 %v302
  %1350 = vmatprep.subr.bf16.mxu0 0
  %1351 = vmatpush1.bf16.msra.mxu0 %v303
  %1352 = vmatprep.subr.bf16.mxu0 0
  %1353 = vmatpush1.bf16.msra.mxu0 %v304
  %1354 = vmatprep.subr.bf16.mxu0 0
  %1355 = vmatpush1.bf16.msra.mxu0 %v305
  %1356 = vmatprep.subr.bf16.mxu0 0
  %1357 = vmatpush1.bf16.msra.mxu0 %v306
  %1358 = vmatprep.subr.bf16.mxu0 0
  %1359 = vmatpush1.bf16.msra.mxu0 %v307
  %1360 = vmatprep.mubr.bf16.mxu0 %v1283
  %1361 = vmatmul.mubr.bf16.gmra.mrb[0].mxu0 %v1282
  %v1362 = vpop.f32.mrb[0].mxu0
  %v1363 = vadd.f32 %v1323, %v1362
  %v1364 = vpop.f32.mrb[0].mxu0
  %v1365 = vpop.f32.mrb[0].mxu0
  %v1366 = vpop.f32.mrb[0].mxu0
  %1367 = vdwg.mxu0
  %v1368 = vmax.f32 %v1363, 0.0
  %v1369 = vpack.c.bf16 %v1368, %v1368
  %s1370 = scalar_lea.vmem %s3, 160
  %v1371 = vld [vmem:[%s1370] sm:$0xf]
  %v1372 = vld [vmem:[%s1370 + $0x4] sm:$0xf]
  %v1373 = vld [vmem:[%s1370 + $0x8] sm:$0xf]
  %v1374 = vld [vmem:[%s1370 + $0xc] sm:$0xf]
  %v1375 = vld [vmem:[%s1370 + $0x10] sm:$0xf]
  %v1376 = vld [vmem:[%s1370 + $0x14] sm:$0xf]
  %v1377 = vld [vmem:[%s1370 + $0x18] sm:$0xf]
  %v1378 = vld [vmem:[%s1370 + $0x1c] sm:$0xf]
  %v1387 = vunpack.c.l.b16 %v1371
  %v1388 = vunpack.c.l.b16 %v1372
  %v1389 = vunpack.c.l.b16 %v1373
  %v1390 = vunpack.c.l.b16 %v1374
  %v1391 = vunpack.c.l.b16 %v1375
  %v1392 = vunpack.c.l.b16 %v1376
  %v1393 = vunpack.c.l.b16 %v1377
  %v1394 = vunpack.c.l.b16 %v1378
  %v1395 = vpack.c.b16 %v1388, %v1387
  %v1396 = vpack.c.b16 %v1390, %v1389
  %v1397 = vpack.c.b16 %v1392, %v1391
  %v1398 = vpack.c.b16 %v1394, %v1393
  %v1404 = vsel %vm576, %v1369, 0
  %1406 = vmatprep.subr.bf16.mxu0 0
  %1407 = vmatpush1.bf16.msra.mxu0 %v1395
  %1408 = vmatprep.subr.bf16.mxu0 0
  %1409 = vmatpush1.bf16.msra.mxu0 %v1396
  %1410 = vmatprep.subr.bf16.mxu0 0
  %1411 = vmatpush1.bf16.msra.mxu0 %v1397
  %1412 = vmatprep.subr.bf16.mxu0 0
  %1413 = vmatpush1.bf16.msra.mxu0 %v1398
  %1414 = vmatprep.subr.bf16.mxu0 0
  %1415 = vmatpush1.bf16.msra.mxu0 0
  %1416 = vmatprep.subr.bf16.mxu0 0
  %1417 = vmatpush1.bf16.msra.mxu0 0
  %1418 = vmatprep.subr.bf16.mxu0 0
  %1419 = vmatpush1.bf16.msra.mxu0 0
  %1420 = vmatprep.subr.bf16.mxu0 0
  %1421 = vmatpush1.bf16.msra.mxu0 0
  %1422 = vmatprep.subr.bf16.mxu0 0
  %1423 = vmatpush1.bf16.msra.mxu0 0
  %1424 = vmatprep.subr.bf16.mxu0 0
  %1425 = vmatpush1.bf16.msra.mxu0 0
  %1426 = vmatprep.subr.bf16.mxu0 0
  %1427 = vmatpush1.bf16.msra.mxu0 0
  %1428 = vmatprep.subr.bf16.mxu0 0
  %1429 = vmatpush1.bf16.msra.mxu0 0
  %1430 = vmatprep.subr.bf16.mxu0 0
  %1431 = vmatpush1.bf16.msra.mxu0 0
  %1432 = vmatprep.subr.bf16.mxu0 0
  %1433 = vmatpush1.bf16.msra.mxu0 0
  %1434 = vmatprep.subr.bf16.mxu0 0
  %1435 = vmatpush1.bf16.msra.mxu0 0
  %1436 = vmatprep.subr.bf16.mxu0 0
  %1437 = vmatpush1.bf16.msra.mxu0 0
  %1438 = vmatprep.mubr.bf16.mxu0 0
  %1439 = vmatmul.mubr.bf16.gmra.mrb[0].mxu0 %v1404
  %v1440 = vpop.f32.mrb[0].mxu0
  %v1441 = vadd.f32 0.0, %v1440
  %v1442 = vpop.f32.mrb[0].mxu0
  %v1443 = vpop.f32.mrb[0].mxu0
  %v1444 = vpop.f32.mrb[0].mxu0
  %1445 = vdwg.mxu0
  %v1446 = vadd.f32 %v1256, %v1441
  %s1447 = scalar_lea.vmem %s0, 24
  %v1448 = vld [vmem:[%s1447] sm:$0xf]
  %v1451 = vunpack.c.l.s4 1966171168
  %v1452 = vunpack.c.0.s8 %v1451
  %v1453 = vlaneseq
  %v1454 = vshrl.u32 %v1453, 7
  %v1455 = vsub.s32 %v1452, %v1454
  %v1456 = vrot.slane %v1448, %v1455
  %v1457 = vcombine.high %v1456, %v1456
  %v1459 = vunpack.c.l.s4 1966171168
  %v1460 = vunpack.c.0.s8 %v1459
  %v1461 = vlaneseq
  %v1462 = vshrl.u32 %v1461, 7
  %v1463 = vsub.s32 %v1460, %v1462
  %v1464 = vrot.slane %v1456, %v1463
  %v1466 = vunpack.c.l.s4 1966171168
  %v1467 = vunpack.c.0.s8 %v1466
  %v1468 = vlaneseq
  %v1469 = vshrl.u32 %v1468, 7
  %v1470 = vsub.s32 %v1467, %v1469
  %v1471 = vrot.slane %v1457, %v1470
  %v1472 = vcombine.high %v1464, %v1464
  %v1473 = vcombine.high %v1471, %v1471
  %1478 = vmatprep.subr.bf16.mxu0 0
  %1479 = vmatpush1.bf16.msra.mxu0 %v276
  %1480 = vmatprep.subr.bf16.mxu0 0
  %1481 = vmatpush1.bf16.msra.mxu0 %v277
  %1482 = vmatprep.subr.bf16.mxu0 0
  %1483 = vmatpush1.bf16.msra.mxu0 %v278
  %1484 = vmatprep.subr.bf16.mxu0 0
  %1485 = vmatpush1.bf16.msra.mxu0 %v279
  %1486 = vmatprep.subr.bf16.mxu0 0
  %1487 = vmatpush1.bf16.msra.mxu0 %v280
  %1488 = vmatprep.subr.bf16.mxu0 0
  %1489 = vmatpush1.bf16.msra.mxu0 %v281
  %1490 = vmatprep.subr.bf16.mxu0 0
  %1491 = vmatpush1.bf16.msra.mxu0 %v282
  %1492 = vmatprep.subr.bf16.mxu0 0
  %1493 = vmatpush1.bf16.msra.mxu0 %v283
  %1494 = vmatprep.subr.bf16.mxu0 0
  %1495 = vmatpush1.bf16.msra.mxu0 %v284
  %1496 = vmatprep.subr.bf16.mxu0 0
  %1497 = vmatpush1.bf16.msra.mxu0 %v285
  %1498 = vmatprep.subr.bf16.mxu0 0
  %1499 = vmatpush1.bf16.msra.mxu0 %v286
  %1500 = vmatprep.subr.bf16.mxu0 0
  %1501 = vmatpush1.bf16.msra.mxu0 %v287
  %1502 = vmatprep.subr.bf16.mxu0 0
  %1503 = vmatpush1.bf16.msra.mxu0 %v288
  %1504 = vmatprep.subr.bf16.mxu0 0
  %1505 = vmatpush1.bf16.msra.mxu0 %v289
  %1506 = vmatprep.subr.bf16.mxu0 0
  %1507 = vmatpush1.bf16.msra.mxu0 %v290
  %1508 = vmatprep.subr.bf16.mxu0 0
  %1509 = vmatpush1.bf16.msra.mxu0 %v291
  %1510 = vmatprep.mubr.bf16.mxu0 %v1471
  %1511 = vmatmul.mubr.bf16.gmra.mrb[0].mxu0 %v1464
  %v1512 = vpop.f32.mrb[0].mxu0
  %v1513 = vadd.f32 %v117, %v1512
  %v1514 = vpop.f32.mrb[0].mxu0
  %v1515 = vpop.f32.mrb[0].mxu0
  %v1516 = vpop.f32.mrb[0].mxu0
  %1517 = vdwg.mxu0
  %1518 = vmatprep.subr.bf16.mxu0 0
  %1519 = vmatpush1.bf16.msra.mxu0 %v292
  %1520 = vmatprep.subr.bf16.mxu0 0
  %1521 = vmatpush1.bf16.msra.mxu0 %v293
  %1522 = vmatprep.subr.bf16.mxu0 0
  %1523 = vmatpush1.bf16.msra.mxu0 %v294
  %1524 = vmatprep.subr.bf16.mxu0 0
  %1525 = vmatpush1.bf16.msra.mxu0 %v295
  %1526 = vmatprep.subr.bf16.mxu0 0
  %1527 = vmatpush1.bf16.msra.mxu0 %v296
  %1528 = vmatprep.subr.bf16.mxu0 0
  %1529 = vmatpush1.bf16.msra.mxu0 %v297
  %1530 = vmatprep.subr.bf16.mxu0 0
  %1531 = vmatpush1.bf16.msra.mxu0 %v298
  %1532 = vmatprep.subr.bf16.mxu0 0
  %1533 = vmatpush1.bf16.msra.mxu0 %v299
  %1534 = vmatprep.subr.bf16.mxu0 0
  %1535 = vmatpush1.bf16.msra.mxu0 %v300
  %1536 = vmatprep.subr.bf16.mxu0 0
  %1537 = vmatpush1.bf16.msra.mxu0 %v301
  %1538 = vmatprep.subr.bf16.mxu0 0
  %1539 = vmatpush1.bf16.msra.mxu0 %v302
  %1540 = vmatprep.subr.bf16.mxu0 0
  %1541 = vmatpush1.bf16.msra.mxu0 %v303
  %1542 = vmatprep.subr.bf16.mxu0 0
  %1543 = vmatpush1.bf16.msra.mxu0 %v304
  %1544 = vmatprep.subr.bf16.mxu0 0
  %1545 = vmatpush1.bf16.msra.mxu0 %v305
  %1546 = vmatprep.subr.bf16.mxu0 0
  %1547 = vmatpush1.bf16.msra.mxu0 %v306
  %1548 = vmatprep.subr.bf16.mxu0 0
  %1549 = vmatpush1.bf16.msra.mxu0 %v307
  %1550 = vmatprep.mubr.bf16.mxu0 %v1473
  %1551 = vmatmul.mubr.bf16.gmra.mrb[0].mxu0 %v1472
  %v1552 = vpop.f32.mrb[0].mxu0
  %v1553 = vadd.f32 %v1513, %v1552
  %v1554 = vpop.f32.mrb[0].mxu0
  %v1555 = vpop.f32.mrb[0].mxu0
  %v1556 = vpop.f32.mrb[0].mxu0
  %1557 = vdwg.mxu0
  %v1558 = vmax.f32 %v1553, 0.0
  %v1559 = vpack.c.bf16 %v1558, %v1558
  %s1560 = scalar_lea.vmem %s3, 192
  %v1561 = vld [vmem:[%s1560] sm:$0xf]
  %v1562 = vld [vmem:[%s1560 + $0x4] sm:$0xf]
  %v1563 = vld [vmem:[%s1560 + $0x8] sm:$0xf]
  %v1564 = vld [vmem:[%s1560 + $0xc] sm:$0xf]
  %v1565 = vld [vmem:[%s1560 + $0x10] sm:$0xf]
  %v1566 = vld [vmem:[%s1560 + $0x14] sm:$0xf]
  %v1567 = vld [vmem:[%s1560 + $0x18] sm:$0xf]
  %v1568 = vld [vmem:[%s1560 + $0x1c] sm:$0xf]
  %v1577 = vunpack.c.l.b16 %v1561
  %v1578 = vunpack.c.l.b16 %v1562
  %v1579 = vunpack.c.l.b16 %v1563
  %v1580 = vunpack.c.l.b16 %v1564
  %v1581 = vunpack.c.l.b16 %v1565
  %v1582 = vunpack.c.l.b16 %v1566
  %v1583 = vunpack.c.l.b16 %v1567
  %v1584 = vunpack.c.l.b16 %v1568
  %v1585 = vpack.c.b16 %v1578, %v1577
  %v1586 = vpack.c.b16 %v1580, %v1579
  %v1587 = vpack.c.b16 %v1582, %v1581
  %v1588 = vpack.c.b16 %v1584, %v1583
  %v1594 = vsel %vm576, %v1559, 0
  %1596 = vmatprep.subr.bf16.mxu0 0
  %1597 = vmatpush1.bf16.msra.mxu0 %v1585
  %1598 = vmatprep.subr.bf16.mxu0 0
  %1599 = vmatpush1.bf16.msra.mxu0 %v1586
  %1600 = vmatprep.subr.bf16.mxu0 0
  %1601 = vmatpush1.bf16.msra.mxu0 %v1587
  %1602 = vmatprep.subr.bf16.mxu0 0
  %1603 = vmatpush1.bf16.msra.mxu0 %v1588
  %1604 = vmatprep.subr.bf16.mxu0 0
  %1605 = vmatpush1.bf16.msra.mxu0 0
  %1606 = vmatprep.subr.bf16.mxu0 0
  %1607 = vmatpush1.bf16.msra.mxu0 0
  %1608 = vmatprep.subr.bf16.mxu0 0
  %1609 = vmatpush1.bf16.msra.mxu0 0
  %1610 = vmatprep.subr.bf16.mxu0 0
  %1611 = vmatpush1.bf16.msra.mxu0 0
  %1612 = vmatprep.subr.bf16.mxu0 0
  %1613 = vmatpush1.bf16.msra.mxu0 0
  %1614 = vmatprep.subr.bf16.mxu0 0
  %1615 = vmatpush1.bf16.msra.mxu0 0
  %1616 = vmatprep.subr.bf16.mxu0 0
  %1617 = vmatpush1.bf16.msra.mxu0 0
  %1618 = vmatprep.subr.bf16.mxu0 0
  %1619 = vmatpush1.bf16.msra.mxu0 0
  %1620 = vmatprep.subr.bf16.mxu0 0
  %1621 = vmatpush1.bf16.msra.mxu0 0
  %1622 = vmatprep.subr.bf16.mxu0 0
  %1623 = vmatpush1.bf16.msra.mxu0 0
  %1624 = vmatprep.subr.bf16.mxu0 0
  %1625 = vmatpush1.bf16.msra.mxu0 0
  %1626 = vmatprep.subr.bf16.mxu0 0
  %1627 = vmatpush1.bf16.msra.mxu0 0
  %1628 = vmatprep.mubr.bf16.mxu0 0
  %1629 = vmatmul.mubr.bf16.gmra.mrb[0].mxu0 %v1594
  %v1630 = vpop.f32.mrb[0].mxu0
  %v1631 = vadd.f32 0.0, %v1630
  %v1632 = vpop.f32.mrb[0].mxu0
  %v1633 = vpop.f32.mrb[0].mxu0
  %v1634 = vpop.f32.mrb[0].mxu0
  %1635 = vdwg.mxu0
  %v1636 = vadd.f32 %v1446, %v1631
  %s1637 = scalar_lea.vmem %s0, 28
  %v1638 = vld [vmem:[%s1637] sm:$0xf]
  %v1641 = vunpack.c.l.s4 1966171168
  %v1642 = vunpack.c.0.s8 %v1641
  %v1643 = vlaneseq
  %v1644 = vshrl.u32 %v1643, 7
  %v1645 = vsub.s32 %v1642, %v1644
  %v1646 = vrot.slane %v1638, %v1645
  %v1647 = vcombine.high %v1646, %v1646
  %v1649 = vunpack.c.l.s4 1966171168
  %v1650 = vunpack.c.0.s8 %v1649
  %v1651 = vlaneseq
  %v1652 = vshrl.u32 %v1651, 7
  %v1653 = vsub.s32 %v1650, %v1652
  %v1654 = vrot.slane %v1646, %v1653
  %v1656 = vunpack.c.l.s4 1966171168
  %v1657 = vunpack.c.0.s8 %v1656
  %v1658 = vlaneseq
  %v1659 = vshrl.u32 %v1658, 7
  %v1660 = vsub.s32 %v1657, %v1659
  %v1661 = vrot.slane %v1647, %v1660
  %v1662 = vcombine.high %v1654, %v1654
  %v1663 = vcombine.high %v1661, %v1661
  %1668 = vmatprep.subr.bf16.mxu0 0
  %1669 = vmatpush1.bf16.msra.mxu0 %v276
  %1670 = vmatprep.subr.bf16.mxu0 0
  %1671 = vmatpush1.bf16.msra.mxu0 %v277
  %1672 = vmatprep.subr.bf16.mxu0 0
  %1673 = vmatpush1.bf16.msra.mxu0 %v278
  %1674 = vmatprep.subr.bf16.mxu0 0
  %1675 = vmatpush1.bf16.msra.mxu0 %v279
  %1676 = vmatprep.subr.bf16.mxu0 0
  %1677 = vmatpush1.bf16.msra.mxu0 %v280
  %1678 = vmatprep.subr.bf16.mxu0 0
  %1679 = vmatpush1.bf16.msra.mxu0 %v281
  %1680 = vmatprep.subr.bf16.mxu0 0
  %1681 = vmatpush1.bf16.msra.mxu0 %v282
  %1682 = vmatprep.subr.bf16.mxu0 0
  %1683 = vmatpush1.bf16.msra.mxu0 %v283
  %1684 = vmatprep.subr.bf16.mxu0 0
  %1685 = vmatpush1.bf16.msra.mxu0 %v284
  %1686 = vmatprep.subr.bf16.mxu0 0
  %1687 = vmatpush1.bf16.msra.mxu0 %v285
  %1688 = vmatprep.subr.bf16.mxu0 0
  %1689 = vmatpush1.bf16.msra.mxu0 %v286
  %1690 = vmatprep.subr.bf16.mxu0 0
  %1691 = vmatpush1.bf16.msra.mxu0 %v287
  %1692 = vmatprep.subr.bf16.mxu0 0
  %1693 = vmatpush1.bf16.msra.mxu0 %v288
  %1694 = vmatprep.subr.bf16.mxu0 0
  %1695 = vmatpush1.bf16.msra.mxu0 %v289
  %1696 = vmatprep.subr.bf16.mxu0 0
  %1697 = vmatpush1.bf16.msra.mxu0 %v290
  %1698 = vmatprep.subr.bf16.mxu0 0
  %1699 = vmatpush1.bf16.msra.mxu0 %v291
  %1700 = vmatprep.mubr.bf16.mxu0 %v1661
  %1701 = vmatmul.mubr.bf16.gmra.mrb[0].mxu0 %v1654
  %v1702 = vpop.f32.mrb[0].mxu0
  %v1703 = vadd.f32 %v117, %v1702
  %v1704 = vpop.f32.mrb[0].mxu0
  %v1705 = vpop.f32.mrb[0].mxu0
  %v1706 = vpop.f32.mrb[0].mxu0
  %1707 = vdwg.mxu0
  %1708 = vmatprep.subr.bf16.mxu0 0
  %1709 = vmatpush1.bf16.msra.mxu0 %v292
  %1710 = vmatprep.subr.bf16.mxu0 0
  %1711 = vmatpush1.bf16.msra.mxu0 %v293
  %1712 = vmatprep.subr.bf16.mxu0 0
  %1713 = vmatpush1.bf16.msra.mxu0 %v294
  %1714 = vmatprep.subr.bf16.mxu0 0
  %1715 = vmatpush1.bf16.msra.mxu0 %v295
  %1716 = vmatprep.subr.bf16.mxu0 0
  %1717 = vmatpush1.bf16.msra.mxu0 %v296
  %1718 = vmatprep.subr.bf16.mxu0 0
  %1719 = vmatpush1.bf16.msra.mxu0 %v297
  %1720 = vmatprep.subr.bf16.mxu0 0
  %1721 = vmatpush1.bf16.msra.mxu0 %v298
  %1722 = vmatprep.subr.bf16.mxu0 0
  %1723 = vmatpush1.bf16.msra.mxu0 %v299
  %1724 = vmatprep.subr.bf16.mxu0 0
  %1725 = vmatpush1.bf16.msra.mxu0 %v300
  %1726 = vmatprep.subr.bf16.mxu0 0
  %1727 = vmatpush1.bf16.msra.mxu0 %v301
  %1728 = vmatprep.subr.bf16.mxu0 0
  %1729 = vmatpush1.bf16.msra.mxu0 %v302
  %1730 = vmatprep.subr.bf16.mxu0 0
  %1731 = vmatpush1.bf16.msra.mxu0 %v303
  %1732 = vmatprep.subr.bf16.mxu0 0
  %1733 = vmatpush1.bf16.msra.mxu0 %v304
  %1734 = vmatprep.subr.bf16.mxu0 0
  %1735 = vmatpush1.bf16.msra.mxu0 %v305
  %1736 = vmatprep.subr.bf16.mxu0 0
  %1737 = vmatpush1.bf16.msra.mxu0 %v306
  %1738 = vmatprep.subr.bf16.mxu0 0
  %1739 = vmatpush1.bf16.msra.mxu0 %v307
  %1740 = vmatprep.mubr.bf16.mxu0 %v1663
  %1741 = vmatmul.mubr.bf16.gmra.mrb[0].mxu0 %v1662
  %v1742 = vpop.f32.mrb[0].mxu0
  %v1743 = vadd.f32 %v1703, %v1742
  %v1744 = vpop.f32.mrb[0].mxu0
  %v1745 = vpop.f32.mrb[0].mxu0
  %v1746 = vpop.f32.mrb[0].mxu0
  %1747 = vdwg.mxu0
  %v1748 = vmax.f32 %v1743, 0.0
  %v1749 = vpack.c.bf16 %v1748, %v1748
  %s1750 = scalar_lea.vmem %s3, 224
  %v1751 = vld [vmem:[%s1750] sm:$0xf]
  %v1752 = vld [vmem:[%s1750 + $0x4] sm:$0xf]
  %v1753 = vld [vmem:[%s1750 + $0x8] sm:$0xf]
  %v1754 = vld [vmem:[%s1750 + $0xc] sm:$0xf]
  %v1755 = vld [vmem:[%s1750 + $0x10] sm:$0xf]
  %v1756 = vld [vmem:[%s1750 + $0x14] sm:$0xf]
  %v1757 = vld [vmem:[%s1750 + $0x18] sm:$0xf]
  %v1758 = vld [vmem:[%s1750 + $0x1c] sm:$0xf]
  %v1767 = vunpack.c.l.b16 %v1751
  %v1768 = vunpack.c.l.b16 %v1752
  %v1769 = vunpack.c.l.b16 %v1753
  %v1770 = vunpack.c.l.b16 %v1754
  %v1771 = vunpack.c.l.b16 %v1755
  %v1772 = vunpack.c.l.b16 %v1756
  %v1773 = vunpack.c.l.b16 %v1757
  %v1774 = vunpack.c.l.b16 %v1758
  %v1775 = vpack.c.b16 %v1768, %v1767
  %v1776 = vpack.c.b16 %v1770, %v1769
  %v1777 = vpack.c.b16 %v1772, %v1771
  %v1778 = vpack.c.b16 %v1774, %v1773
  %v1784 = vsel %vm576, %v1749, 0
  %1786 = vmatprep.subr.bf16.mxu0 0
  %1787 = vmatpush1.bf16.msra.mxu0 %v1775
  %1788 = vmatprep.subr.bf16.mxu0 0
  %1789 = vmatpush1.bf16.msra.mxu0 %v1776
  %1790 = vmatprep.subr.bf16.mxu0 0
  %1791 = vmatpush1.bf16.msra.mxu0 %v1777
  %1792 = vmatprep.subr.bf16.mxu0 0
  %1793 = vmatpush1.bf16.msra.mxu0 %v1778
  %1794 = vmatprep.subr.bf16.mxu0 0
  %1795 = vmatpush1.bf16.msra.mxu0 0
  %1796 = vmatprep.subr.bf16.mxu0 0
  %1797 = vmatpush1.bf16.msra.mxu0 0
  %1798 = vmatprep.subr.bf16.mxu0 0
  %1799 = vmatpush1.bf16.msra.mxu0 0
  %1800 = vmatprep.subr.bf16.mxu0 0
  %1801 = vmatpush1.bf16.msra.mxu0 0
  %1802 = vmatprep.subr.bf16.mxu0 0
  %1803 = vmatpush1.bf16.msra.mxu0 0
  %1804 = vmatprep.subr.bf16.mxu0 0
  %1805 = vmatpush1.bf16.msra.mxu0 0
  %1806 = vmatprep.subr.bf16.mxu0 0
  %1807 = vmatpush1.bf16.msra.mxu0 0
  %1808 = vmatprep.subr.bf16.mxu0 0
  %1809 = vmatpush1.bf16.msra.mxu0 0
  %1810 = vmatprep.subr.bf16.mxu0 0
  %1811 = vmatpush1.bf16.msra.mxu0 0
  %1812 = vmatprep.subr.bf16.mxu0 0
  %1813 = vmatpush1.bf16.msra.mxu0 0
  %1814 = vmatprep.subr.bf16.mxu0 0
  %1815 = vmatpush1.bf16.msra.mxu0 0
  %1816 = vmatprep.subr.bf16.mxu0 0
  %1817 = vmatpush1.bf16.msra.mxu0 0
  %1818 = vmatprep.mubr.bf16.mxu0 0
  %1819 = vmatmul.mubr.bf16.gmra.mrb[0].mxu0 %v1784
  %v1820 = vpop.f32.mrb[0].mxu0
  %v1821 = vadd.f32 0.0, %v1820
  %v1822 = vpop.f32.mrb[0].mxu0
  %v1823 = vpop.f32.mrb[0].mxu0
  %v1824 = vpop.f32.mrb[0].mxu0
  %1825 = vdwg.mxu0
  %v1826 = vadd.f32 %v1636, %v1821
  %s1827 = scalar_lea.vmem %s0, 32
  %v1828 = vld [vmem:[%s1827] sm:$0xf]
  %v1831 = vunpack.c.l.s4 1966171168
  %v1832 = vunpack.c.0.s8 %v1831
  %v1833 = vlaneseq
  %v1834 = vshrl.u32 %v1833, 7
  %v1835 = vsub.s32 %v1832, %v1834
  %v1836 = vrot.slane %v1828, %v1835
  %v1837 = vcombine.high %v1836, %v1836
  %v1839 = vunpack.c.l.s4 1966171168
  %v1840 = vunpack.c.0.s8 %v1839
  %v1841 = vlaneseq
  %v1842 = vshrl.u32 %v1841, 7
  %v1843 = vsub.s32 %v1840, %v1842
  %v1844 = vrot.slane %v1836, %v1843
  %v1846 = vunpack.c.l.s4 1966171168
  %v1847 = vunpack.c.0.s8 %v1846
  %v1848 = vlaneseq
  %v1849 = vshrl.u32 %v1848, 7
  %v1850 = vsub.s32 %v1847, %v1849
  %v1851 = vrot.slane %v1837, %v1850
  %v1852 = vcombine.high %v1844, %v1844
  %v1853 = vcombine.high %v1851, %v1851
  %1858 = vmatprep.subr.bf16.mxu0 0
  %1859 = vmatpush1.bf16.msra.mxu0 %v276
  %1860 = vmatprep.subr.bf16.mxu0 0
  %1861 = vmatpush1.bf16.msra.mxu0 %v277
  %1862 = vmatprep.subr.bf16.mxu0 0
  %1863 = vmatpush1.bf16.msra.mxu0 %v278
  %1864 = vmatprep.subr.bf16.mxu0 0
  %1865 = vmatpush1.bf16.msra.mxu0 %v279
  %1866 = vmatprep.subr.bf16.mxu0 0
  %1867 = vmatpush1.bf16.msra.mxu0 %v280
  %1868 = vmatprep.subr.bf16.mxu0 0
  %1869 = vmatpush1.bf16.msra.mxu0 %v281
  %1870 = vmatprep.subr.bf16.mxu0 0
  %1871 = vmatpush1.bf16.msra.mxu0 %v282
  %1872 = vmatprep.subr.bf16.mxu0 0
  %1873 = vmatpush1.bf16.msra.mxu0 %v283
  %1874 = vmatprep.subr.bf16.mxu0 0
  %1875 = vmatpush1.bf16.msra.mxu0 %v284
  %1876 = vmatprep.subr.bf16.mxu0 0
  %1877 = vmatpush1.bf16.msra.mxu0 %v285
  %1878 = vmatprep.subr.bf16.mxu0 0
  %1879 = vmatpush1.bf16.msra.mxu0 %v286
  %1880 = vmatprep.subr.bf16.mxu0 0
  %1881 = vmatpush1.bf16.msra.mxu0 %v287
  %1882 = vmatprep.subr.bf16.mxu0 0
  %1883 = vmatpush1.bf16.msra.mxu0 %v288
  %1884 = vmatprep.subr.bf16.mxu0 0
  %1885 = vmatpush1.bf16.msra.mxu0 %v289
  %1886 = vmatprep.subr.bf16.mxu0 0
  %1887 = vmatpush1.bf16.msra.mxu0 %v290
  %1888 = vmatprep.subr.bf16.mxu0 0
  %1889 = vmatpush1.bf16.msra.mxu0 %v291
  %1890 = vmatprep.mubr.bf16.mxu0 %v1851
  %1891 = vmatmul.mubr.bf16.gmra.mrb[0].mxu0 %v1844
  %v1892 = vpop.f32.mrb[0].mxu0
  %v1893 = vadd.f32 %v117, %v1892
  %v1894 = vpop.f32.mrb[0].mxu0
  %v1895 = vpop.f32.mrb[0].mxu0
  %v1896 = vpop.f32.mrb[0].mxu0
  %1897 = vdwg.mxu0
  %1898 = vmatprep.subr.bf16.mxu0 0
  %1899 = vmatpush1.bf16.msra.mxu0 %v292
  %1900 = vmatprep.subr.bf16.mxu0 0
  %1901 = vmatpush1.bf16.msra.mxu0 %v293
  %1902 = vmatprep.subr.bf16.mxu0 0
  %1903 = vmatpush1.bf16.msra.mxu0 %v294
  %1904 = vmatprep.subr.bf16.mxu0 0
  %1905 = vmatpush1.bf16.msra.mxu0 %v295
  %1906 = vmatprep.subr.bf16.mxu0 0
  %1907 = vmatpush1.bf16.msra.mxu0 %v296
  %1908 = vmatprep.subr.bf16.mxu0 0
  %1909 = vmatpush1.bf16.msra.mxu0 %v297
  %1910 = vmatprep.subr.bf16.mxu0 0
  %1911 = vmatpush1.bf16.msra.mxu0 %v298
  %1912 = vmatprep.subr.bf16.mxu0 0
  %1913 = vmatpush1.bf16.msra.mxu0 %v299
  %1914 = vmatprep.subr.bf16.mxu0 0
  %1915 = vmatpush1.bf16.msra.mxu0 %v300
  %1916 = vmatprep.subr.bf16.mxu0 0
  %1917 = vmatpush1.bf16.msra.mxu0 %v301
  %1918 = vmatprep.subr.bf16.mxu0 0
  %1919 = vmatpush1.bf16.msra.mxu0 %v302
  %1920 = vmatprep.subr.bf16.mxu0 0
  %1921 = vmatpush1.bf16.msra.mxu0 %v303
  %1922 = vmatprep.subr.bf16.mxu0 0
  %1923 = vmatpush1.bf16.msra.mxu0 %v304
  %1924 = vmatprep.subr.bf16.mxu0 0
  %1925 = vmatpush1.bf16.msra.mxu0 %v305
  %1926 = vmatprep.subr.bf16.mxu0 0
  %1927 = vmatpush1.bf16.msra.mxu0 %v306
  %1928 = vmatprep.subr.bf16.mxu0 0
  %1929 = vmatpush1.bf16.msra.mxu0 %v307
  %1930 = vmatprep.mubr.bf16.mxu0 %v1853
  %1931 = vmatmul.mubr.bf16.gmra.mrb[0].mxu0 %v1852
  %v1932 = vpop.f32.mrb[0].mxu0
  %v1933 = vadd.f32 %v1893, %v1932
  %v1934 = vpop.f32.mrb[0].mxu0
  %v1935 = vpop.f32.mrb[0].mxu0
  %v1936 = vpop.f32.mrb[0].mxu0
  %1937 = vdwg.mxu0
  %v1938 = vmax.f32 %v1933, 0.0
  %v1939 = vpack.c.bf16 %v1938, %v1938
  %s1940 = scalar_lea.vmem %s3, 256
  %v1941 = vld [vmem:[%s1940] sm:$0xf]
  %v1942 = vld [vmem:[%s1940 + $0x4] sm:$0xf]
  %v1943 = vld [vmem:[%s1940 + $0x8] sm:$0xf]
  %v1944 = vld [vmem:[%s1940 + $0xc] sm:$0xf]
  %v1945 = vld [vmem:[%s1940 + $0x10] sm:$0xf]
  %v1946 = vld [vmem:[%s1940 + $0x14] sm:$0xf]
  %v1947 = vld [vmem:[%s1940 + $0x18] sm:$0xf]
  %v1948 = vld [vmem:[%s1940 + $0x1c] sm:$0xf]
  %v1957 = vunpack.c.l.b16 %v1941
  %v1958 = vunpack.c.l.b16 %v1942
  %v1959 = vunpack.c.l.b16 %v1943
  %v1960 = vunpack.c.l.b16 %v1944
  %v1961 = vunpack.c.l.b16 %v1945
  %v1962 = vunpack.c.l.b16 %v1946
  %v1963 = vunpack.c.l.b16 %v1947
  %v1964 = vunpack.c.l.b16 %v1948
  %v1965 = vpack.c.b16 %v1958, %v1957
  %v1966 = vpack.c.b16 %v1960, %v1959
  %v1967 = vpack.c.b16 %v1962, %v1961
  %v1968 = vpack.c.b16 %v1964, %v1963
  %v1974 = vsel %vm576, %v1939, 0
  %1976 = vmatprep.subr.bf16.mxu0 0
  %1977 = vmatpush1.bf16.msra.mxu0 %v1965
  %1978 = vmatprep.subr.bf16.mxu0 0
  %1979 = vmatpush1.bf16.msra.mxu0 %v1966
  %1980 = vmatprep.subr.bf16.mxu0 0
  %1981 = vmatpush1.bf16.msra.mxu0 %v1967
  %1982 = vmatprep.subr.bf16.mxu0 0
  %1983 = vmatpush1.bf16.msra.mxu0 %v1968
  %1984 = vmatprep.subr.bf16.mxu0 0
  %1985 = vmatpush1.bf16.msra.mxu0 0
  %1986 = vmatprep.subr.bf16.mxu0 0
  %1987 = vmatpush1.bf16.msra.mxu0 0
  %1988 = vmatprep.subr.bf16.mxu0 0
  %1989 = vmatpush1.bf16.msra.mxu0 0
  %1990 = vmatprep.subr.bf16.mxu0 0
  %1991 = vmatpush1.bf16.msra.mxu0 0
  %1992 = vmatprep.subr.bf16.mxu0 0
  %1993 = vmatpush1.bf16.msra.mxu0 0
  %1994 = vmatprep.subr.bf16.mxu0 0
  %1995 = vmatpush1.bf16.msra.mxu0 0
  %1996 = vmatprep.subr.bf16.mxu0 0
  %1997 = vmatpush1.bf16.msra.mxu0 0
  %1998 = vmatprep.subr.bf16.mxu0 0
  %1999 = vmatpush1.bf16.msra.mxu0 0
  %2000 = vmatprep.subr.bf16.mxu0 0
  %2001 = vmatpush1.bf16.msra.mxu0 0
  %2002 = vmatprep.subr.bf16.mxu0 0
  %2003 = vmatpush1.bf16.msra.mxu0 0
  %2004 = vmatprep.subr.bf16.mxu0 0
  %2005 = vmatpush1.bf16.msra.mxu0 0
  %2006 = vmatprep.subr.bf16.mxu0 0
  %2007 = vmatpush1.bf16.msra.mxu0 0
  %2008 = vmatprep.mubr.bf16.mxu0 0
  %2009 = vmatmul.mubr.bf16.gmra.mrb[0].mxu0 %v1974
  %v2010 = vpop.f32.mrb[0].mxu0
  %v2011 = vadd.f32 0.0, %v2010
  %v2012 = vpop.f32.mrb[0].mxu0
  %v2013 = vpop.f32.mrb[0].mxu0
  %v2014 = vpop.f32.mrb[0].mxu0
  %2015 = vdwg.mxu0
  %v2016 = vadd.f32 %v1826, %v2011
  %v2017 = vld [vmem:[%s4] sm:$0x1]
  %v2019 = vlaneseq
  %v2020 = vshrl.u32 %v2019, 7
  %v2021 = vsub.s32 0, %v2020
  %v2022 = vrot.slane %v2017, %v2021
  %v2024 = vadd.f32 %v2016, %v2022
  %v2025 = vmax.f32 %v2024, 0.0
  %v2026 = vpack.c.bf16 %v2025, %v2025
  %v2027 = vld [vmem:[%s5] sm:$0xff]
  %v2028 = vld [vmem:[%s5 + $0x8] sm:$0xff]
  %v2029 = vld [vmem:[%s5 + $0x10] sm:$0xff]
  %v2030 = vld [vmem:[%s5 + $0x18] sm:$0xff]
  %v2031 = vld [vmem:[%s5 + $0x20] sm:$0xff]
  %v2032 = vld [vmem:[%s5 + $0x28] sm:$0xff]
  %v2033 = vld [vmem:[%s5 + $0x30] sm:$0xff]
  %v2034 = vld [vmem:[%s5 + $0x38] sm:$0xff]
  %v2035 = vld [vmem:[%s5 + $0x40] sm:$0xff]
  %v2036 = vld [vmem:[%s5 + $0x48] sm:$0xff]
  %v2037 = vld [vmem:[%s5 + $0x50] sm:$0xff]
  %v2038 = vld [vmem:[%s5 + $0x58] sm:$0xff]
  %v2039 = vld [vmem:[%s5 + $0x60] sm:$0xff]
  %v2040 = vld [vmem:[%s5 + $0x68] sm:$0xff]
  %v2041 = vld [vmem:[%s5 + $0x70] sm:$0xff]
  %v2042 = vld [vmem:[%s5 + $0x78] sm:$0xff]
  %v2043 = vld [vmem:[%s5 + $0x80] sm:$0xff]
  %v2044 = vld [vmem:[%s5 + $0x88] sm:$0xff]
  %v2045 = vld [vmem:[%s5 + $0x90] sm:$0xff]
  %v2046 = vld [vmem:[%s5 + $0x98] sm:$0xff]
  %v2047 = vld [vmem:[%s5 + $0xa0] sm:$0xff]
  %v2048 = vld [vmem:[%s5 + $0xa8] sm:$0xff]
  %v2049 = vld [vmem:[%s5 + $0xb0] sm:$0xff]
  %v2050 = vld [vmem:[%s5 + $0xb8] sm:$0xff]
  %v2051 = vld [vmem:[%s5 + $0xc0] sm:$0xff]
  %v2052 = vld [vmem:[%s5 + $0xc8] sm:$0xff]
  %v2053 = vld [vmem:[%s5 + $0xd0] sm:$0xff]
  %v2054 = vld [vmem:[%s5 + $0xd8] sm:$0xff]
  %v2055 = vld [vmem:[%s5 + $0xe0] sm:$0xff]
  %v2056 = vld [vmem:[%s5 + $0xe8] sm:$0xff]
  %v2057 = vld [vmem:[%s5 + $0xf0] sm:$0xff]
  %v2058 = vld [vmem:[%s5 + $0xf8] sm:$0xff]
  %v2059 = vld [vmem:[%s6] sm:$0xf]
  %v2061 = vlaneseq
  %v2062 = vshrl.u32 %v2061, 7
  %v2063 = vsub.s32 0, %v2062
  %v2064 = vrot.slane %v2059, %v2063
  %v2065 = vlaneseq
  %v2066 = vshrl.u32 %v2065, 7
  %v2067 = vsub.s32 1, %v2066
  %v2068 = vrot.slane %v2059, %v2067
  %v2069 = vlaneseq
  %v2070 = vshrl.u32 %v2069, 7
  %v2071 = vsub.s32 2, %v2070
  %v2072 = vrot.slane %v2059, %v2071
  %v2073 = vlaneseq
  %v2074 = vshrl.u32 %v2073, 7
  %v2075 = vsub.s32 3, %v2074
  %v2076 = vrot.slane %v2059, %v2075
  %v2113 = vunpack.c.l.b16 %v2027
  %v2114 = vunpack.c.h.b16 %v2027
  %v2115 = vunpack.c.l.b16 %v2028
  %v2116 = vunpack.c.h.b16 %v2028
  %v2117 = vunpack.c.l.b16 %v2029
  %v2118 = vunpack.c.h.b16 %v2029
  %v2119 = vunpack.c.l.b16 %v2030
  %v2120 = vunpack.c.h.b16 %v2030
  %v2121 = vunpack.c.l.b16 %v2031
  %v2122 = vunpack.c.h.b16 %v2031
  %v2123 = vunpack.c.l.b16 %v2032
  %v2124 = vunpack.c.h.b16 %v2032
  %v2125 = vunpack.c.l.b16 %v2033
  %v2126 = vunpack.c.h.b16 %v2033
  %v2127 = vunpack.c.l.b16 %v2034
  %v2128 = vunpack.c.h.b16 %v2034
  %v2129 = vunpack.c.l.b16 %v2035
  %v2130 = vunpack.c.h.b16 %v2035
  %v2131 = vunpack.c.l.b16 %v2036
  %v2132 = vunpack.c.h.b16 %v2036
  %v2133 = vunpack.c.l.b16 %v2037
  %v2134 = vunpack.c.h.b16 %v2037
  %v2135 = vunpack.c.l.b16 %v2038
  %v2136 = vunpack.c.h.b16 %v2038
  %v2137 = vunpack.c.l.b16 %v2039
  %v2138 = vunpack.c.h.b16 %v2039
  %v2139 = vunpack.c.l.b16 %v2040
  %v2140 = vunpack.c.h.b16 %v2040
  %v2141 = vunpack.c.l.b16 %v2041
  %v2142 = vunpack.c.h.b16 %v2041
  %v2143 = vunpack.c.l.b16 %v2042
  %v2144 = vunpack.c.h.b16 %v2042
  %v2145 = vunpack.c.l.b16 %v2043
  %v2146 = vunpack.c.h.b16 %v2043
  %v2147 = vunpack.c.l.b16 %v2044
  %v2148 = vunpack.c.h.b16 %v2044
  %v2149 = vunpack.c.l.b16 %v2045
  %v2150 = vunpack.c.h.b16 %v2045
  %v2151 = vunpack.c.l.b16 %v2046
  %v2152 = vunpack.c.h.b16 %v2046
  %v2153 = vunpack.c.l.b16 %v2047
  %v2154 = vunpack.c.h.b16 %v2047
  %v2155 = vunpack.c.l.b16 %v2048
  %v2156 = vunpack.c.h.b16 %v2048
  %v2157 = vunpack.c.l.b16 %v2049
  %v2158 = vunpack.c.h.b16 %v2049
  %v2159 = vunpack.c.l.b16 %v2050
  %v2160 = vunpack.c.h.b16 %v2050
  %v2161 = vunpack.c.l.b16 %v2051
  %v2162 = vunpack.c.h.b16 %v2051
  %v2163 = vunpack.c.l.b16 %v2052
  %v2164 = vunpack.c.h.b16 %v2052
  %v2165 = vunpack.c.l.b16 %v2053
  %v2166 = vunpack.c.h.b16 %v2053
  %v2167 = vunpack.c.l.b16 %v2054
  %v2168 = vunpack.c.h.b16 %v2054
  %v2169 = vunpack.c.l.b16 %v2055
  %v2170 = vunpack.c.h.b16 %v2055
  %v2171 = vunpack.c.l.b16 %v2056
  %v2172 = vunpack.c.h.b16 %v2056
  %v2173 = vunpack.c.l.b16 %v2057
  %v2174 = vunpack.c.h.b16 %v2057
  %v2175 = vunpack.c.l.b16 %v2058
  %v2176 = vunpack.c.h.b16 %v2058
  %v2177 = vpack.c.b16 %v2117, %v2113
  %v2178 = vpack.c.b16 %v2118, %v2114
  %v2179 = vpack.c.b16 %v2119, %v2115
  %v2180 = vpack.c.b16 %v2120, %v2116
  %v2181 = vpack.c.b16 %v2125, %v2121
  %v2182 = vpack.c.b16 %v2126, %v2122
  %v2183 = vpack.c.b16 %v2127, %v2123
  %v2184 = vpack.c.b16 %v2128, %v2124
  %v2185 = vpack.c.b16 %v2133, %v2129
  %v2186 = vpack.c.b16 %v2134, %v2130
  %v2187 = vpack.c.b16 %v2135, %v2131
  %v2188 = vpack.c.b16 %v2136, %v2132
  %v2189 = vpack.c.b16 %v2141, %v2137
  %v2190 = vpack.c.b16 %v2142, %v2138
  %v2191 = vpack.c.b16 %v2143, %v2139
  %v2192 = vpack.c.b16 %v2144, %v2140
  %v2193 = vpack.c.b16 %v2149, %v2145
  %v2194 = vpack.c.b16 %v2150, %v2146
  %v2195 = vpack.c.b16 %v2151, %v2147
  %v2196 = vpack.c.b16 %v2152, %v2148
  %v2197 = vpack.c.b16 %v2157, %v2153
  %v2198 = vpack.c.b16 %v2158, %v2154
  %v2199 = vpack.c.b16 %v2159, %v2155
  %v2200 = vpack.c.b16 %v2160, %v2156
  %v2201 = vpack.c.b16 %v2165, %v2161
  %v2202 = vpack.c.b16 %v2166, %v2162
  %v2203 = vpack.c.b16 %v2167, %v2163
  %v2204 = vpack.c.b16 %v2168, %v2164
  %v2205 = vpack.c.b16 %v2173, %v2169
  %v2206 = vpack.c.b16 %v2174, %v2170
  %v2207 = vpack.c.b16 %v2175, %v2171
  %v2208 = vpack.c.b16 %v2176, %v2172
  %2241 = vmatprep.subr.bf16.mxu0 %v2178
  %2242 = vmatpush1.bf16.msra.mxu0 %v2177
  %2243 = vmatprep.subr.bf16.mxu0 %v2182
  %2244 = vmatpush1.bf16.msra.mxu0 %v2181
  %2245 = vmatprep.subr.bf16.mxu0 %v2186
  %2246 = vmatpush1.bf16.msra.mxu0 %v2185
  %2247 = vmatprep.subr.bf16.mxu0 %v2190
  %2248 = vmatpush1.bf16.msra.mxu0 %v2189
  %2249 = vmatprep.subr.bf16.mxu0 %v2194
  %2250 = vmatpush1.bf16.msra.mxu0 %v2193
  %2251 = vmatprep.subr.bf16.mxu0 %v2198
  %2252 = vmatpush1.bf16.msra.mxu0 %v2197
  %2253 = vmatprep.subr.bf16.mxu0 %v2202
  %2254 = vmatpush1.bf16.msra.mxu0 %v2201
  %2255 = vmatprep.subr.bf16.mxu0 %v2206
  %2256 = vmatpush1.bf16.msra.mxu0 %v2205
  %2257 = vmatprep.subr.bf16.mxu0 0
  %2258 = vmatpush1.bf16.msra.mxu0 0
  %2259 = vmatprep.subr.bf16.mxu0 0
  %2260 = vmatpush1.bf16.msra.mxu0 0
  %2261 = vmatprep.subr.bf16.mxu0 0
  %2262 = vmatpush1.bf16.msra.mxu0 0
  %2263 = vmatprep.subr.bf16.mxu0 0
  %2264 = vmatpush1.bf16.msra.mxu0 0
  %2265 = vmatprep.subr.bf16.mxu0 0
  %2266 = vmatpush1.bf16.msra.mxu0 0
  %2267 = vmatprep.subr.bf16.mxu0 0
  %2268 = vmatpush1.bf16.msra.mxu0 0
  %2269 = vmatprep.subr.bf16.mxu0 0
  %2270 = vmatpush1.bf16.msra.mxu0 0
  %2271 = vmatprep.subr.bf16.mxu0 0
  %2272 = vmatpush1.bf16.msra.mxu0 0
  %2273 = vmatprep.mubr.bf16.mxu0 0
  %2274 = vmatmul.mubr.bf16.gmra.mrb[0].mxu0 %v2026
  %v2275 = vpop.f32.mrb[0].mxu0
  %v2276 = vadd.f32 %v2064, %v2275
  %v2277 = vpop.f32.mrb[0].mxu0
  %v2278 = vadd.f32 %v2068, %v2277
  %v2279 = vpop.f32.mrb[0].mxu0
  %v2280 = vpop.f32.mrb[0].mxu0
  %2281 = vdwg.mxu0
  %2282 = vmatprep.subr.bf16.mxu0 %v2180
  %2283 = vmatpush1.bf16.msra.mxu0 %v2179
  %2284 = vmatprep.subr.bf16.mxu0 %v2184
  %2285 = vmatpush1.bf16.msra.mxu0 %v2183
  %2286 = vmatprep.subr.bf16.mxu0 %v2188
  %2287 = vmatpush1.bf16.msra.mxu0 %v2187
  %2288 = vmatprep.subr.bf16.mxu0 %v2192
  %2289 = vmatpush1.bf16.msra.mxu0 %v2191
  %2290 = vmatprep.subr.bf16.mxu0 %v2196
  %2291 = vmatpush1.bf16.msra.mxu0 %v2195
  %2292 = vmatprep.subr.bf16.mxu0 %v2200
  %2293 = vmatpush1.bf16.msra.mxu0 %v2199
  %2294 = vmatprep.subr.bf16.mxu0 %v2204
  %2295 = vmatpush1.bf16.msra.mxu0 %v2203
  %2296 = vmatprep.subr.bf16.mxu0 %v2208
  %2297 = vmatpush1.bf16.msra.mxu0 %v2207
  %2298 = vmatprep.subr.bf16.mxu0 0
  %2299 = vmatpush1.bf16.msra.mxu0 0
  %2300 = vmatprep.subr.bf16.mxu0 0
  %2301 = vmatpush1.bf16.msra.mxu0 0
  %2302 = vmatprep.subr.bf16.mxu0 0
  %2303 = vmatpush1.bf16.msra.mxu0 0
  %2304 = vmatprep.subr.bf16.mxu0 0
  %2305 = vmatpush1.bf16.msra.mxu0 0
  %2306 = vmatprep.subr.bf16.mxu0 0
  %2307 = vmatpush1.bf16.msra.mxu0 0
  %2308 = vmatprep.subr.bf16.mxu0 0
  %2309 = vmatpush1.bf16.msra.mxu0 0
  %2310 = vmatprep.subr.bf16.mxu0 0
  %2311 = vmatpush1.bf16.msra.mxu0 0
  %2312 = vmatprep.subr.bf16.mxu0 0
  %2313 = vmatpush1.bf16.msra.mxu0 0
  %2314 = vmatprep.mubr.bf16.mxu0 0
  %2315 = vmatmul.mubr.bf16.gmra.mrb[0].mxu0 %v2026
  %v2316 = vpop.f32.mrb[0].mxu0
  %v2317 = vadd.f32 %v2072, %v2316
  %v2318 = vpop.f32.mrb[0].mxu0
  %v2319 = vadd.f32 %v2076, %v2318
  %v2320 = vpop.f32.mrb[0].mxu0
  %v2321 = vpop.f32.mrb[0].mxu0
  %2322 = vdwg.mxu0
  %v2323 = vmax.f32 %v2276, 0.0
  %v2324 = vmax.f32 %v2278, 0.0
  %v2325 = vmax.f32 %v2317, 0.0
  %v2326 = vmax.f32 %v2319, 0.0
  %v2327 = vpack.c.bf16 %v2323, %v2323
  %v2328 = vpack.c.bf16 %v2324, %v2324
  %v2329 = vpack.c.bf16 %v2325, %v2325
  %v2330 = vpack.c.bf16 %v2326, %v2326
  %v2331 = vld [vmem:[%s7] sm:$0xf]
  %v2332 = vld [vmem:[%s7 + $0x4] sm:$0xf]
  %v2333 = vld [vmem:[%s7 + $0x8] sm:$0xf]
  %v2334 = vld [vmem:[%s7 + $0xc] sm:$0xf]
  %v2335 = vld [vmem:[%s7 + $0x10] sm:$0xf]
  %v2336 = vld [vmem:[%s7 + $0x14] sm:$0xf]
  %v2337 = vld [vmem:[%s7 + $0x18] sm:$0xf]
  %v2338 = vld [vmem:[%s7 + $0x1c] sm:$0xf]
  %v2339 = vld [vmem:[%s7 + $0x20] sm:$0xf]
  %v2340 = vld [vmem:[%s7 + $0x24] sm:$0xf]
  %v2341 = vld [vmem:[%s7 + $0x28] sm:$0xf]
  %v2342 = vld [vmem:[%s7 + $0x2c] sm:$0xf]
  %v2343 = vld [vmem:[%s7 + $0x30] sm:$0xf]
  %v2344 = vld [vmem:[%s7 + $0x34] sm:$0xf]
  %v2345 = vld [vmem:[%s7 + $0x38] sm:$0xf]
  %v2346 = vld [vmem:[%s7 + $0x3c] sm:$0xf]
  %v2347 = vld [vmem:[%s7 + $0x40] sm:$0xf]
  %v2348 = vld [vmem:[%s7 + $0x44] sm:$0xf]
  %v2349 = vld [vmem:[%s7 + $0x48] sm:$0xf]
  %v2350 = vld [vmem:[%s7 + $0x4c] sm:$0xf]
  %v2351 = vld [vmem:[%s7 + $0x50] sm:$0xf]
  %v2352 = vld [vmem:[%s7 + $0x54] sm:$0xf]
  %v2353 = vld [vmem:[%s7 + $0x58] sm:$0xf]
  %v2354 = vld [vmem:[%s7 + $0x5c] sm:$0xf]
  %v2355 = vld [vmem:[%s7 + $0x60] sm:$0xf]
  %v2356 = vld [vmem:[%s7 + $0x64] sm:$0xf]
  %v2357 = vld [vmem:[%s7 + $0x68] sm:$0xf]
  %v2358 = vld [vmem:[%s7 + $0x6c] sm:$0xf]
  %v2359 = vld [vmem:[%s7 + $0x70] sm:$0xf]
  %v2360 = vld [vmem:[%s7 + $0x74] sm:$0xf]
  %v2361 = vld [vmem:[%s7 + $0x78] sm:$0xf]
  %v2362 = vld [vmem:[%s7 + $0x7c] sm:$0xf]
  %v2363 = vld [vmem:[%s7 + $0x80] sm:$0xf]
  %v2364 = vld [vmem:[%s7 + $0x84] sm:$0xf]
  %v2365 = vld [vmem:[%s7 + $0x88] sm:$0xf]
  %v2366 = vld [vmem:[%s7 + $0x8c] sm:$0xf]
  %v2367 = vld [vmem:[%s7 + $0x90] sm:$0xf]
  %v2368 = vld [vmem:[%s7 + $0x94] sm:$0xf]
  %v2369 = vld [vmem:[%s7 + $0x98] sm:$0xf]
  %v2370 = vld [vmem:[%s7 + $0x9c] sm:$0xf]
  %v2371 = vld [vmem:[%s7 + $0xa0] sm:$0xf]
  %v2372 = vld [vmem:[%s7 + $0xa4] sm:$0xf]
  %v2373 = vld [vmem:[%s7 + $0xa8] sm:$0xf]
  %v2374 = vld [vmem:[%s7 + $0xac] sm:$0xf]
  %v2375 = vld [vmem:[%s7 + $0xb0] sm:$0xf]
  %v2376 = vld [vmem:[%s7 + $0xb4] sm:$0xf]
  %v2377 = vld [vmem:[%s7 + $0xb8] sm:$0xf]
  %v2378 = vld [vmem:[%s7 + $0xbc] sm:$0xf]
  %v2379 = vld [vmem:[%s7 + $0xc0] sm:$0xf]
  %v2380 = vld [vmem:[%s7 + $0xc4] sm:$0xf]
  %v2381 = vld [vmem:[%s7 + $0xc8] sm:$0xf]
  %v2382 = vld [vmem:[%s7 + $0xcc] sm:$0xf]
  %v2383 = vld [vmem:[%s7 + $0xd0] sm:$0xf]
  %v2384 = vld [vmem:[%s7 + $0xd4] sm:$0xf]
  %v2385 = vld [vmem:[%s7 + $0xd8] sm:$0xf]
  %v2386 = vld [vmem:[%s7 + $0xdc] sm:$0xf]
  %v2387 = vld [vmem:[%s7 + $0xe0] sm:$0xf]
  %v2388 = vld [vmem:[%s7 + $0xe4] sm:$0xf]
  %v2389 = vld [vmem:[%s7 + $0xe8] sm:$0xf]
  %v2390 = vld [vmem:[%s7 + $0xec] sm:$0xf]
  %v2391 = vld [vmem:[%s7 + $0xf0] sm:$0xf]
  %v2392 = vld [vmem:[%s7 + $0xf4] sm:$0xf]
  %v2393 = vld [vmem:[%s7 + $0xf8] sm:$0xf]
  %v2394 = vld [vmem:[%s7 + $0xfc] sm:$0xf]
  %v2395 = vld [vmem:[%s8] sm:$0x1]
  %v2397 = vlaneseq
  %v2398 = vshrl.u32 %v2397, 7
  %v2399 = vsub.s32 0, %v2398
  %v2400 = vrot.slane %v2395, %v2399
  %v2466 = vunpack.c.l.b16 %v2331
  %v2467 = vunpack.c.l.b16 %v2332
  %v2468 = vunpack.c.l.b16 %v2333
  %v2469 = vunpack.c.l.b16 %v2334
  %v2470 = vunpack.c.l.b16 %v2335
  %v2471 = vunpack.c.l.b16 %v2336
  %v2472 = vunpack.c.l.b16 %v2337
  %v2473 = vunpack.c.l.b16 %v2338
  %v2474 = vunpack.c.l.b16 %v2339
  %v2475 = vunpack.c.l.b16 %v2340
  %v2476 = vunpack.c.l.b16 %v2341
  %v2477 = vunpack.c.l.b16 %v2342
  %v2478 = vunpack.c.l.b16 %v2343
  %v2479 = vunpack.c.l.b16 %v2344
  %v2480 = vunpack.c.l.b16 %v2345
  %v2481 = vunpack.c.l.b16 %v2346
  %v2482 = vunpack.c.l.b16 %v2347
  %v2483 = vunpack.c.l.b16 %v2348
  %v2484 = vunpack.c.l.b16 %v2349
  %v2485 = vunpack.c.l.b16 %v2350
  %v2486 = vunpack.c.l.b16 %v2351
  %v2487 = vunpack.c.l.b16 %v2352
  %v2488 = vunpack.c.l.b16 %v2353
  %v2489 = vunpack.c.l.b16 %v2354
  %v2490 = vunpack.c.l.b16 %v2355
  %v2491 = vunpack.c.l.b16 %v2356
  %v2492 = vunpack.c.l.b16 %v2357
  %v2493 = vunpack.c.l.b16 %v2358
  %v2494 = vunpack.c.l.b16 %v2359
  %v2495 = vunpack.c.l.b16 %v2360
  %v2496 = vunpack.c.l.b16 %v2361
  %v2497 = vunpack.c.l.b16 %v2362
  %v2498 = vunpack.c.l.b16 %v2363
  %v2499 = vunpack.c.l.b16 %v2364
  %v2500 = vunpack.c.l.b16 %v2365
  %v2501 = vunpack.c.l.b16 %v2366
  %v2502 = vunpack.c.l.b16 %v2367
  %v2503 = vunpack.c.l.b16 %v2368
  %v2504 = vunpack.c.l.b16 %v2369
  %v2505 = vunpack.c.l.b16 %v2370
  %v2506 = vunpack.c.l.b16 %v2371
  %v2507 = vunpack.c.l.b16 %v2372
  %v2508 = vunpack.c.l.b16 %v2373
  %v2509 = vunpack.c.l.b16 %v2374
  %v2510 = vunpack.c.l.b16 %v2375
  %v2511 = vunpack.c.l.b16 %v2376
  %v2512 = vunpack.c.l.b16 %v2377
  %v2513 = vunpack.c.l.b16 %v2378
  %v2514 = vunpack.c.l.b16 %v2379
  %v2515 = vunpack.c.l.b16 %v2380
  %v2516 = vunpack.c.l.b16 %v2381
  %v2517 = vunpack.c.l.b16 %v2382
  %v2518 = vunpack.c.l.b16 %v2383
  %v2519 = vunpack.c.l.b16 %v2384
  %v2520 = vunpack.c.l.b16 %v2385
  %v2521 = vunpack.c.l.b16 %v2386
  %v2522 = vunpack.c.l.b16 %v2387
  %v2523 = vunpack.c.l.b16 %v2388
  %v2524 = vunpack.c.l.b16 %v2389
  %v2525 = vunpack.c.l.b16 %v2390
  %v2526 = vunpack.c.l.b16 %v2391
  %v2527 = vunpack.c.l.b16 %v2392
  %v2528 = vunpack.c.l.b16 %v2393
  %v2529 = vunpack.c.l.b16 %v2394
  %v2530 = vpack.c.b16 %v2467, %v2466
  %v2531 = vpack.c.b16 %v2469, %v2468
  %v2532 = vpack.c.b16 %v2471, %v2470
  %v2533 = vpack.c.b16 %v2473, %v2472
  %v2534 = vpack.c.b16 %v2475, %v2474
  %v2535 = vpack.c.b16 %v2477, %v2476
  %v2536 = vpack.c.b16 %v2479, %v2478
  %v2537 = vpack.c.b16 %v2481, %v2480
  %v2538 = vpack.c.b16 %v2483, %v2482
  %v2539 = vpack.c.b16 %v2485, %v2484
  %v2540 = vpack.c.b16 %v2487, %v2486
  %v2541 = vpack.c.b16 %v2489, %v2488
  %v2542 = vpack.c.b16 %v2491, %v2490
  %v2543 = vpack.c.b16 %v2493, %v2492
  %v2544 = vpack.c.b16 %v2495, %v2494
  %v2545 = vpack.c.b16 %v2497, %v2496
  %v2546 = vpack.c.b16 %v2499, %v2498
  %v2547 = vpack.c.b16 %v2501, %v2500
  %v2548 = vpack.c.b16 %v2503, %v2502
  %v2549 = vpack.c.b16 %v2505, %v2504
  %v2550 = vpack.c.b16 %v2507, %v2506
  %v2551 = vpack.c.b16 %v2509, %v2508
  %v2552 = vpack.c.b16 %v2511, %v2510
  %v2553 = vpack.c.b16 %v2513, %v2512
  %v2554 = vpack.c.b16 %v2515, %v2514
  %v2555 = vpack.c.b16 %v2517, %v2516
  %v2556 = vpack.c.b16 %v2519, %v2518
  %v2557 = vpack.c.b16 %v2521, %v2520
  %v2558 = vpack.c.b16 %v2523, %v2522
  %v2559 = vpack.c.b16 %v2525, %v2524
  %v2560 = vpack.c.b16 %v2527, %v2526
  %v2561 = vpack.c.b16 %v2529, %v2528
  %2594 = vmatprep.subr.bf16.mxu0 0
  %2595 = vmatpush1.bf16.msra.mxu0 %v2530
  %2596 = vmatprep.subr.bf16.mxu0 0
  %2597 = vmatpush1.bf16.msra.mxu0 %v2531
  %2598 = vmatprep.subr.bf16.mxu0 0
  %2599 = vmatpush1.bf16.msra.mxu0 %v2532
  %2600 = vmatprep.subr.bf16.mxu0 0
  %2601 = vmatpush1.bf16.msra.mxu0 %v2533
  %2602 = vmatprep.subr.bf16.mxu0 0
  %2603 = vmatpush1.bf16.msra.mxu0 %v2534
  %2604 = vmatprep.subr.bf16.mxu0 0
  %2605 = vmatpush1.bf16.msra.mxu0 %v2535
  %2606 = vmatprep.subr.bf16.mxu0 0
  %2607 = vmatpush1.bf16.msra.mxu0 %v2536
  %2608 = vmatprep.subr.bf16.mxu0 0
  %2609 = vmatpush1.bf16.msra.mxu0 %v2537
  %2610 = vmatprep.subr.bf16.mxu0 0
  %2611 = vmatpush1.bf16.msra.mxu0 %v2538
  %2612 = vmatprep.subr.bf16.mxu0 0
  %2613 = vmatpush1.bf16.msra.mxu0 %v2539
  %2614 = vmatprep.subr.bf16.mxu0 0
  %2615 = vmatpush1.bf16.msra.mxu0 %v2540
  %2616 = vmatprep.subr.bf16.mxu0 0
  %2617 = vmatpush1.bf16.msra.mxu0 %v2541
  %2618 = vmatprep.subr.bf16.mxu0 0
  %2619 = vmatpush1.bf16.msra.mxu0 %v2542
  %2620 = vmatprep.subr.bf16.mxu0 0
  %2621 = vmatpush1.bf16.msra.mxu0 %v2543
  %2622 = vmatprep.subr.bf16.mxu0 0
  %2623 = vmatpush1.bf16.msra.mxu0 %v2544
  %2624 = vmatprep.subr.bf16.mxu0 0
  %2625 = vmatpush1.bf16.msra.mxu0 %v2545
  %2626 = vmatprep.mubr.bf16.mxu0 %v2328
  %2627 = vmatmul.mubr.bf16.gmra.mrb[0].mxu0 %v2327
  %v2628 = vpop.f32.mrb[0].mxu0
  %v2629 = vadd.f32 %v2400, %v2628
  %v2630 = vpop.f32.mrb[0].mxu0
  %v2631 = vpop.f32.mrb[0].mxu0
  %v2632 = vpop.f32.mrb[0].mxu0
  %2633 = vdwg.mxu0
  %2634 = vmatprep.subr.bf16.mxu0 0
  %2635 = vmatpush1.bf16.msra.mxu0 %v2546
  %2636 = vmatprep.subr.bf16.mxu0 0
  %2637 = vmatpush1.bf16.msra.mxu0 %v2547
  %2638 = vmatprep.subr.bf16.mxu0 0
  %2639 = vmatpush1.bf16.msra.mxu0 %v2548
  %2640 = vmatprep.subr.bf16.mxu0 0
  %2641 = vmatpush1.bf16.msra.mxu0 %v2549
  %2642 = vmatprep.subr.bf16.mxu0 0
  %2643 = vmatpush1.bf16.msra.mxu0 %v2550
  %2644 = vmatprep.subr.bf16.mxu0 0
  %2645 = vmatpush1.bf16.msra.mxu0 %v2551
  %2646 = vmatprep.subr.bf16.mxu0 0
  %2647 = vmatpush1.bf16.msra.mxu0 %v2552
  %2648 = vmatprep.subr.bf16.mxu0 0
  %2649 = vmatpush1.bf16.msra.mxu0 %v2553
  %2650 = vmatprep.subr.bf16.mxu0 0
  %2651 = vmatpush1.bf16.msra.mxu0 %v2554
  %2652 = vmatprep.subr.bf16.mxu0 0
  %2653 = vmatpush1.bf16.msra.mxu0 %v2555
  %2654 = vmatprep.subr.bf16.mxu0 0
  %2655 = vmatpush1.bf16.msra.mxu0 %v2556
  %2656 = vmatprep.subr.bf16.mxu0 0
  %2657 = vmatpush1.bf16.msra.mxu0 %v2557
  %2658 = vmatprep.subr.bf16.mxu0 0
  %2659 = vmatpush1.bf16.msra.mxu0 %v2558
  %2660 = vmatprep.subr.bf16.mxu0 0
  %2661 = vmatpush1.bf16.msra.mxu0 %v2559
  %2662 = vmatprep.subr.bf16.mxu0 0
  %2663 = vmatpush1.bf16.msra.mxu0 %v2560
  %2664 = vmatprep.subr.bf16.mxu0 0
  %2665 = vmatpush1.bf16.msra.mxu0 %v2561
  %2666 = vmatprep.mubr.bf16.mxu0 %v2330
  %2667 = vmatmul.mubr.bf16.gmra.mrb[0].mxu0 %v2329
  %v2668 = vpop.f32.mrb[0].mxu0
  %v2669 = vadd.f32 %v2629, %v2668
  %v2670 = vpop.f32.mrb[0].mxu0
  %v2671 = vpop.f32.mrb[0].mxu0
  %v2672 = vpop.f32.mrb[0].mxu0
  %2673 = vdwg.mxu0
  %2674 = vst [vmem:[%s13] sm:$0x3] %v2669
  %v2675 = vld [vmem:[%s9] sm:$0xff]
  %v2676 = vld [vmem:[%s9 + $0x8] sm:$0xff]
  %v2677 = vld [vmem:[%s9 + $0x10] sm:$0xff]
  %v2678 = vld [vmem:[%s9 + $0x18] sm:$0xff]
  %v2679 = vld [vmem:[%s9 + $0x20] sm:$0xff]
  %v2680 = vld [vmem:[%s9 + $0x28] sm:$0xff]
  %v2681 = vld [vmem:[%s9 + $0x30] sm:$0xff]
  %v2682 = vld [vmem:[%s9 + $0x38] sm:$0xff]
  %v2683 = vld [vmem:[%s9 + $0x40] sm:$0xff]
  %v2684 = vld [vmem:[%s9 + $0x48] sm:$0xff]
  %v2685 = vld [vmem:[%s9 + $0x50] sm:$0xff]
  %v2686 = vld [vmem:[%s9 + $0x58] sm:$0xff]
  %v2687 = vld [vmem:[%s9 + $0x60] sm:$0xff]
  %v2688 = vld [vmem:[%s9 + $0x68] sm:$0xff]
  %v2689 = vld [vmem:[%s9 + $0x70] sm:$0xff]
  %v2690 = vld [vmem:[%s9 + $0x78] sm:$0xff]
  %v2691 = vld [vmem:[%s9 + $0x80] sm:$0xff]
  %v2692 = vld [vmem:[%s9 + $0x88] sm:$0xff]
  %v2693 = vld [vmem:[%s9 + $0x90] sm:$0xff]
  %v2694 = vld [vmem:[%s9 + $0x98] sm:$0xff]
  %v2695 = vld [vmem:[%s9 + $0xa0] sm:$0xff]
  %v2696 = vld [vmem:[%s9 + $0xa8] sm:$0xff]
  %v2697 = vld [vmem:[%s9 + $0xb0] sm:$0xff]
  %v2698 = vld [vmem:[%s9 + $0xb8] sm:$0xff]
  %v2699 = vld [vmem:[%s9 + $0xc0] sm:$0xff]
  %v2700 = vld [vmem:[%s9 + $0xc8] sm:$0xff]
  %v2701 = vld [vmem:[%s9 + $0xd0] sm:$0xff]
  %v2702 = vld [vmem:[%s9 + $0xd8] sm:$0xff]
  %v2703 = vld [vmem:[%s9 + $0xe0] sm:$0xff]
  %v2704 = vld [vmem:[%s9 + $0xe8] sm:$0xff]
  %v2705 = vld [vmem:[%s9 + $0xf0] sm:$0xff]
  %v2706 = vld [vmem:[%s9 + $0xf8] sm:$0xff]
  %v2707 = vld [vmem:[%s10] sm:$0xf]
  %v2709 = vlaneseq
  %v2710 = vshrl.u32 %v2709, 7
  %v2711 = vsub.s32 0, %v2710
  %v2712 = vrot.slane %v2707, %v2711
  %v2713 = vlaneseq
  %v2714 = vshrl.u32 %v2713, 7
  %v2715 = vsub.s32 1, %v2714
  %v2716 = vrot.slane %v2707, %v2715
  %v2717 = vlaneseq
  %v2718 = vshrl.u32 %v2717, 7
  %v2719 = vsub.s32 2, %v2718
  %v2720 = vrot.slane %v2707, %v2719
  %v2721 = vlaneseq
  %v2722 = vshrl.u32 %v2721, 7
  %v2723 = vsub.s32 3, %v2722
  %v2724 = vrot.slane %v2707, %v2723
  %v2761 = vunpack.c.l.b16 %v2675
  %v2762 = vunpack.c.h.b16 %v2675
  %v2763 = vunpack.c.l.b16 %v2676
  %v2764 = vunpack.c.h.b16 %v2676
  %v2765 = vunpack.c.l.b16 %v2677
  %v2766 = vunpack.c.h.b16 %v2677
  %v2767 = vunpack.c.l.b16 %v2678
  %v2768 = vunpack.c.h.b16 %v2678
  %v2769 = vunpack.c.l.b16 %v2679
  %v2770 = vunpack.c.h.b16 %v2679
  %v2771 = vunpack.c.l.b16 %v2680
  %v2772 = vunpack.c.h.b16 %v2680
  %v2773 = vunpack.c.l.b16 %v2681
  %v2774 = vunpack.c.h.b16 %v2681
  %v2775 = vunpack.c.l.b16 %v2682
  %v2776 = vunpack.c.h.b16 %v2682
  %v2777 = vunpack.c.l.b16 %v2683
  %v2778 = vunpack.c.h.b16 %v2683
  %v2779 = vunpack.c.l.b16 %v2684
  %v2780 = vunpack.c.h.b16 %v2684
  %v2781 = vunpack.c.l.b16 %v2685
  %v2782 = vunpack.c.h.b16 %v2685
  %v2783 = vunpack.c.l.b16 %v2686
  %v2784 = vunpack.c.h.b16 %v2686
  %v2785 = vunpack.c.l.b16 %v2687
  %v2786 = vunpack.c.h.b16 %v2687
  %v2787 = vunpack.c.l.b16 %v2688
  %v2788 = vunpack.c.h.b16 %v2688
  %v2789 = vunpack.c.l.b16 %v2689
  %v2790 = vunpack.c.h.b16 %v2689
  %v2791 = vunpack.c.l.b16 %v2690
  %v2792 = vunpack.c.h.b16 %v2690
  %v2793 = vunpack.c.l.b16 %v2691
  %v2794 = vunpack.c.h.b16 %v2691
  %v2795 = vunpack.c.l.b16 %v2692
  %v2796 = vunpack.c.h.b16 %v2692
  %v2797 = vunpack.c.l.b16 %v2693
  %v2798 = vunpack.c.h.b16 %v2693
  %v2799 = vunpack.c.l.b16 %v2694
  %v2800 = vunpack.c.h.b16 %v2694
  %v2801 = vunpack.c.l.b16 %v2695
  %v2802 = vunpack.c.h.b16 %v2695
  %v2803 = vunpack.c.l.b16 %v2696
  %v2804 = vunpack.c.h.b16 %v2696
  %v2805 = vunpack.c.l.b16 %v2697
  %v2806 = vunpack.c.h.b16 %v2697
  %v2807 = vunpack.c.l.b16 %v2698
  %v2808 = vunpack.c.h.b16 %v2698
  %v2809 = vunpack.c.l.b16 %v2699
  %v2810 = vunpack.c.h.b16 %v2699
  %v2811 = vunpack.c.l.b16 %v2700
  %v2812 = vunpack.c.h.b16 %v2700
  %v2813 = vunpack.c.l.b16 %v2701
  %v2814 = vunpack.c.h.b16 %v2701
  %v2815 = vunpack.c.l.b16 %v2702
  %v2816 = vunpack.c.h.b16 %v2702
  %v2817 = vunpack.c.l.b16 %v2703
  %v2818 = vunpack.c.h.b16 %v2703
  %v2819 = vunpack.c.l.b16 %v2704
  %v2820 = vunpack.c.h.b16 %v2704
  %v2821 = vunpack.c.l.b16 %v2705
  %v2822 = vunpack.c.h.b16 %v2705
  %v2823 = vunpack.c.l.b16 %v2706
  %v2824 = vunpack.c.h.b16 %v2706
  %v2825 = vpack.c.b16 %v2765, %v2761
  %v2826 = vpack.c.b16 %v2766, %v2762
  %v2827 = vpack.c.b16 %v2767, %v2763
  %v2828 = vpack.c.b16 %v2768, %v2764
  %v2829 = vpack.c.b16 %v2773, %v2769
  %v2830 = vpack.c.b16 %v2774, %v2770
  %v2831 = vpack.c.b16 %v2775, %v2771
  %v2832 = vpack.c.b16 %v2776, %v2772
  %v2833 = vpack.c.b16 %v2781, %v2777
  %v2834 = vpack.c.b16 %v2782, %v2778
  %v2835 = vpack.c.b16 %v2783, %v2779
  %v2836 = vpack.c.b16 %v2784, %v2780
  %v2837 = vpack.c.b16 %v2789, %v2785
  %v2838 = vpack.c.b16 %v2790, %v2786
  %v2839 = vpack.c.b16 %v2791, %v2787
  %v2840 = vpack.c.b16 %v2792, %v2788
  %v2841 = vpack.c.b16 %v2797, %v2793
  %v2842 = vpack.c.b16 %v2798, %v2794
  %v2843 = vpack.c.b16 %v2799, %v2795
  %v2844 = vpack.c.b16 %v2800, %v2796
  %v2845 = vpack.c.b16 %v2805, %v2801
  %v2846 = vpack.c.b16 %v2806, %v2802
  %v2847 = vpack.c.b16 %v2807, %v2803
  %v2848 = vpack.c.b16 %v2808, %v2804
  %v2849 = vpack.c.b16 %v2813, %v2809
  %v2850 = vpack.c.b16 %v2814, %v2810
  %v2851 = vpack.c.b16 %v2815, %v2811
  %v2852 = vpack.c.b16 %v2816, %v2812
  %v2853 = vpack.c.b16 %v2821, %v2817
  %v2854 = vpack.c.b16 %v2822, %v2818
  %v2855 = vpack.c.b16 %v2823, %v2819
  %v2856 = vpack.c.b16 %v2824, %v2820
  %2889 = vmatprep.subr.bf16.mxu0 %v2826
  %2890 = vmatpush1.bf16.msra.mxu0 %v2825
  %2891 = vmatprep.subr.bf16.mxu0 %v2830
  %2892 = vmatpush1.bf16.msra.mxu0 %v2829
  %2893 = vmatprep.subr.bf16.mxu0 %v2834
  %2894 = vmatpush1.bf16.msra.mxu0 %v2833
  %2895 = vmatprep.subr.bf16.mxu0 %v2838
  %2896 = vmatpush1.bf16.msra.mxu0 %v2837
  %2897 = vmatprep.subr.bf16.mxu0 %v2842
  %2898 = vmatpush1.bf16.msra.mxu0 %v2841
  %2899 = vmatprep.subr.bf16.mxu0 %v2846
  %2900 = vmatpush1.bf16.msra.mxu0 %v2845
  %2901 = vmatprep.subr.bf16.mxu0 %v2850
  %2902 = vmatpush1.bf16.msra.mxu0 %v2849
  %2903 = vmatprep.subr.bf16.mxu0 %v2854
  %2904 = vmatpush1.bf16.msra.mxu0 %v2853
  %2905 = vmatprep.subr.bf16.mxu0 0
  %2906 = vmatpush1.bf16.msra.mxu0 0
  %2907 = vmatprep.subr.bf16.mxu0 0
  %2908 = vmatpush1.bf16.msra.mxu0 0
  %2909 = vmatprep.subr.bf16.mxu0 0
  %2910 = vmatpush1.bf16.msra.mxu0 0
  %2911 = vmatprep.subr.bf16.mxu0 0
  %2912 = vmatpush1.bf16.msra.mxu0 0
  %2913 = vmatprep.subr.bf16.mxu0 0
  %2914 = vmatpush1.bf16.msra.mxu0 0
  %2915 = vmatprep.subr.bf16.mxu0 0
  %2916 = vmatpush1.bf16.msra.mxu0 0
  %2917 = vmatprep.subr.bf16.mxu0 0
  %2918 = vmatpush1.bf16.msra.mxu0 0
  %2919 = vmatprep.subr.bf16.mxu0 0
  %2920 = vmatpush1.bf16.msra.mxu0 0
  %2921 = vmatprep.mubr.bf16.mxu0 0
  %2922 = vmatmul.mubr.bf16.gmra.mrb[0].mxu0 %v2026
  %v2923 = vpop.f32.mrb[0].mxu0
  %v2924 = vadd.f32 %v2712, %v2923
  %v2925 = vpop.f32.mrb[0].mxu0
  %v2926 = vadd.f32 %v2716, %v2925
  %v2927 = vpop.f32.mrb[0].mxu0
  %v2928 = vpop.f32.mrb[0].mxu0
  %2929 = vdwg.mxu0
  %2930 = vmatprep.subr.bf16.mxu0 %v2828
  %2931 = vmatpush1.bf16.msra.mxu0 %v2827
  %2932 = vmatprep.subr.bf16.mxu0 %v2832
  %2933 = vmatpush1.bf16.msra.mxu0 %v2831
  %2934 = vmatprep.subr.bf16.mxu0 %v2836
  %2935 = vmatpush1.bf16.msra.mxu0 %v2835
  %2936 = vmatprep.subr.bf16.mxu0 %v2840
  %2937 = vmatpush1.bf16.msra.mxu0 %v2839
  %2938 = vmatprep.subr.bf16.mxu0 %v2844
  %2939 = vmatpush1.bf16.msra.mxu0 %v2843
  %2940 = vmatprep.subr.bf16.mxu0 %v2848
  %2941 = vmatpush1.bf16.msra.mxu0 %v2847
  %2942 = vmatprep.subr.bf16.mxu0 %v2852
  %2943 = vmatpush1.bf16.msra.mxu0 %v2851
  %2944 = vmatprep.subr.bf16.mxu0 %v2856
  %2945 = vmatpush1.bf16.msra.mxu0 %v2855
  %2946 = vmatprep.subr.bf16.mxu0 0
  %2947 = vmatpush1.bf16.msra.mxu0 0
  %2948 = vmatprep.subr.bf16.mxu0 0
  %2949 = vmatpush1.bf16.msra.mxu0 0
  %2950 = vmatprep.subr.bf16.mxu0 0
  %2951 = vmatpush1.bf16.msra.mxu0 0
  %2952 = vmatprep.subr.bf16.mxu0 0
  %2953 = vmatpush1.bf16.msra.mxu0 0
  %2954 = vmatprep.subr.bf16.mxu0 0
  %2955 = vmatpush1.bf16.msra.mxu0 0
  %2956 = vmatprep.subr.bf16.mxu0 0
  %2957 = vmatpush1.bf16.msra.mxu0 0
  %2958 = vmatprep.subr.bf16.mxu0 0
  %2959 = vmatpush1.bf16.msra.mxu0 0
  %2960 = vmatprep.subr.bf16.mxu0 0
  %2961 = vmatpush1.bf16.msra.mxu0 0
  %2962 = vmatprep.mubr.bf16.mxu0 0
  %2963 = vmatmul.mubr.bf16.gmra.mrb[0].mxu0 %v2026
  %v2964 = vpop.f32.mrb[0].mxu0
  %v2965 = vadd.f32 %v2720, %v2964
  %v2966 = vpop.f32.mrb[0].mxu0
  %v2967 = vadd.f32 %v2724, %v2966
  %v2968 = vpop.f32.mrb[0].mxu0
  %v2969 = vpop.f32.mrb[0].mxu0
  %2970 = vdwg.mxu0
  %v2971 = vmax.f32 %v2924, 0.0
  %v2972 = vmax.f32 %v2926, 0.0
  %v2973 = vmax.f32 %v2965, 0.0
  %v2974 = vmax.f32 %v2967, 0.0
  %v2975 = vpack.c.bf16 %v2971, %v2971
  %v2976 = vpack.c.bf16 %v2972, %v2972
  %v2977 = vpack.c.bf16 %v2973, %v2973
  %v2978 = vpack.c.bf16 %v2974, %v2974
  %v2979 = vld [vmem:[%s11] sm:$0xf]
  %v2980 = vld [vmem:[%s11 + $0x4] sm:$0xf]
  %v2981 = vld [vmem:[%s11 + $0x8] sm:$0xf]
  %v2982 = vld [vmem:[%s11 + $0xc] sm:$0xf]
  %v2983 = vld [vmem:[%s11 + $0x10] sm:$0xf]
  %v2984 = vld [vmem:[%s11 + $0x14] sm:$0xf]
  %v2985 = vld [vmem:[%s11 + $0x18] sm:$0xf]
  %v2986 = vld [vmem:[%s11 + $0x1c] sm:$0xf]
  %v2987 = vld [vmem:[%s11 + $0x20] sm:$0xf]
  %v2988 = vld [vmem:[%s11 + $0x24] sm:$0xf]
  %v2989 = vld [vmem:[%s11 + $0x28] sm:$0xf]
  %v2990 = vld [vmem:[%s11 + $0x2c] sm:$0xf]
  %v2991 = vld [vmem:[%s11 + $0x30] sm:$0xf]
  %v2992 = vld [vmem:[%s11 + $0x34] sm:$0xf]
  %v2993 = vld [vmem:[%s11 + $0x38] sm:$0xf]
  %v2994 = vld [vmem:[%s11 + $0x3c] sm:$0xf]
  %v2995 = vld [vmem:[%s11 + $0x40] sm:$0xf]
  %v2996 = vld [vmem:[%s11 + $0x44] sm:$0xf]
  %v2997 = vld [vmem:[%s11 + $0x48] sm:$0xf]
  %v2998 = vld [vmem:[%s11 + $0x4c] sm:$0xf]
  %v2999 = vld [vmem:[%s11 + $0x50] sm:$0xf]
  %v3000 = vld [vmem:[%s11 + $0x54] sm:$0xf]
  %v3001 = vld [vmem:[%s11 + $0x58] sm:$0xf]
  %v3002 = vld [vmem:[%s11 + $0x5c] sm:$0xf]
  %v3003 = vld [vmem:[%s11 + $0x60] sm:$0xf]
  %v3004 = vld [vmem:[%s11 + $0x64] sm:$0xf]
  %v3005 = vld [vmem:[%s11 + $0x68] sm:$0xf]
  %v3006 = vld [vmem:[%s11 + $0x6c] sm:$0xf]
  %v3007 = vld [vmem:[%s11 + $0x70] sm:$0xf]
  %v3008 = vld [vmem:[%s11 + $0x74] sm:$0xf]
  %v3009 = vld [vmem:[%s11 + $0x78] sm:$0xf]
  %v3010 = vld [vmem:[%s11 + $0x7c] sm:$0xf]
  %v3011 = vld [vmem:[%s11 + $0x80] sm:$0xf]
  %v3012 = vld [vmem:[%s11 + $0x84] sm:$0xf]
  %v3013 = vld [vmem:[%s11 + $0x88] sm:$0xf]
  %v3014 = vld [vmem:[%s11 + $0x8c] sm:$0xf]
  %v3015 = vld [vmem:[%s11 + $0x90] sm:$0xf]
  %v3016 = vld [vmem:[%s11 + $0x94] sm:$0xf]
  %v3017 = vld [vmem:[%s11 + $0x98] sm:$0xf]
  %v3018 = vld [vmem:[%s11 + $0x9c] sm:$0xf]
  %v3019 = vld [vmem:[%s11 + $0xa0] sm:$0xf]
  %v3020 = vld [vmem:[%s11 + $0xa4] sm:$0xf]
  %v3021 = vld [vmem:[%s11 + $0xa8] sm:$0xf]
  %v3022 = vld [vmem:[%s11 + $0xac] sm:$0xf]
  %v3023 = vld [vmem:[%s11 + $0xb0] sm:$0xf]
  %v3024 = vld [vmem:[%s11 + $0xb4] sm:$0xf]
  %v3025 = vld [vmem:[%s11 + $0xb8] sm:$0xf]
  %v3026 = vld [vmem:[%s11 + $0xbc] sm:$0xf]
  %v3027 = vld [vmem:[%s11 + $0xc0] sm:$0xf]
  %v3028 = vld [vmem:[%s11 + $0xc4] sm:$0xf]
  %v3029 = vld [vmem:[%s11 + $0xc8] sm:$0xf]
  %v3030 = vld [vmem:[%s11 + $0xcc] sm:$0xf]
  %v3031 = vld [vmem:[%s11 + $0xd0] sm:$0xf]
  %v3032 = vld [vmem:[%s11 + $0xd4] sm:$0xf]
  %v3033 = vld [vmem:[%s11 + $0xd8] sm:$0xf]
  %v3034 = vld [vmem:[%s11 + $0xdc] sm:$0xf]
  %v3035 = vld [vmem:[%s11 + $0xe0] sm:$0xf]
  %v3036 = vld [vmem:[%s11 + $0xe4] sm:$0xf]
  %v3037 = vld [vmem:[%s11 + $0xe8] sm:$0xf]
  %v3038 = vld [vmem:[%s11 + $0xec] sm:$0xf]
  %v3039 = vld [vmem:[%s11 + $0xf0] sm:$0xf]
  %v3040 = vld [vmem:[%s11 + $0xf4] sm:$0xf]
  %v3041 = vld [vmem:[%s11 + $0xf8] sm:$0xf]
  %v3042 = vld [vmem:[%s11 + $0xfc] sm:$0xf]
  %v3043 = vld [vmem:[%s12] sm:$0x1]
  %v3045 = vlaneseq
  %v3046 = vshrl.u32 %v3045, 7
  %v3047 = vsub.s32 0, %v3046
  %v3048 = vrot.slane %v3043, %v3047
  %v3114 = vunpack.c.l.b16 %v2979
  %v3115 = vunpack.c.l.b16 %v2980
  %v3116 = vunpack.c.l.b16 %v2981
  %v3117 = vunpack.c.l.b16 %v2982
  %v3118 = vunpack.c.l.b16 %v2983
  %v3119 = vunpack.c.l.b16 %v2984
  %v3120 = vunpack.c.l.b16 %v2985
  %v3121 = vunpack.c.l.b16 %v2986
  %v3122 = vunpack.c.l.b16 %v2987
  %v3123 = vunpack.c.l.b16 %v2988
  %v3124 = vunpack.c.l.b16 %v2989
  %v3125 = vunpack.c.l.b16 %v2990
  %v3126 = vunpack.c.l.b16 %v2991
  %v3127 = vunpack.c.l.b16 %v2992
  %v3128 = vunpack.c.l.b16 %v2993
  %v3129 = vunpack.c.l.b16 %v2994
  %v3130 = vunpack.c.l.b16 %v2995
  %v3131 = vunpack.c.l.b16 %v2996
  %v3132 = vunpack.c.l.b16 %v2997
  %v3133 = vunpack.c.l.b16 %v2998
  %v3134 = vunpack.c.l.b16 %v2999
  %v3135 = vunpack.c.l.b16 %v3000
  %v3136 = vunpack.c.l.b16 %v3001
  %v3137 = vunpack.c.l.b16 %v3002
  %v3138 = vunpack.c.l.b16 %v3003
  %v3139 = vunpack.c.l.b16 %v3004
  %v3140 = vunpack.c.l.b16 %v3005
  %v3141 = vunpack.c.l.b16 %v3006
  %v3142 = vunpack.c.l.b16 %v3007
  %v3143 = vunpack.c.l.b16 %v3008
  %v3144 = vunpack.c.l.b16 %v3009
  %v3145 = vunpack.c.l.b16 %v3010
  %v3146 = vunpack.c.l.b16 %v3011
  %v3147 = vunpack.c.l.b16 %v3012
  %v3148 = vunpack.c.l.b16 %v3013
  %v3149 = vunpack.c.l.b16 %v3014
  %v3150 = vunpack.c.l.b16 %v3015
  %v3151 = vunpack.c.l.b16 %v3016
  %v3152 = vunpack.c.l.b16 %v3017
  %v3153 = vunpack.c.l.b16 %v3018
  %v3154 = vunpack.c.l.b16 %v3019
  %v3155 = vunpack.c.l.b16 %v3020
  %v3156 = vunpack.c.l.b16 %v3021
  %v3157 = vunpack.c.l.b16 %v3022
  %v3158 = vunpack.c.l.b16 %v3023
  %v3159 = vunpack.c.l.b16 %v3024
  %v3160 = vunpack.c.l.b16 %v3025
  %v3161 = vunpack.c.l.b16 %v3026
  %v3162 = vunpack.c.l.b16 %v3027
  %v3163 = vunpack.c.l.b16 %v3028
  %v3164 = vunpack.c.l.b16 %v3029
  %v3165 = vunpack.c.l.b16 %v3030
  %v3166 = vunpack.c.l.b16 %v3031
  %v3167 = vunpack.c.l.b16 %v3032
  %v3168 = vunpack.c.l.b16 %v3033
  %v3169 = vunpack.c.l.b16 %v3034
  %v3170 = vunpack.c.l.b16 %v3035
  %v3171 = vunpack.c.l.b16 %v3036
  %v3172 = vunpack.c.l.b16 %v3037
  %v3173 = vunpack.c.l.b16 %v3038
  %v3174 = vunpack.c.l.b16 %v3039
  %v3175 = vunpack.c.l.b16 %v3040
  %v3176 = vunpack.c.l.b16 %v3041
  %v3177 = vunpack.c.l.b16 %v3042
  %v3178 = vpack.c.b16 %v3115, %v3114
  %v3179 = vpack.c.b16 %v3117, %v3116
  %v3180 = vpack.c.b16 %v3119, %v3118
  %v3181 = vpack.c.b16 %v3121, %v3120
  %v3182 = vpack.c.b16 %v3123, %v3122
  %v3183 = vpack.c.b16 %v3125, %v3124
  %v3184 = vpack.c.b16 %v3127, %v3126
  %v3185 = vpack.c.b16 %v3129, %v3128
  %v3186 = vpack.c.b16 %v3131, %v3130
  %v3187 = vpack.c.b16 %v3133, %v3132
  %v3188 = vpack.c.b16 %v3135, %v3134
  %v3189 = vpack.c.b16 %v3137, %v3136
  %v3190 = vpack.c.b16 %v3139, %v3138
  %v3191 = vpack.c.b16 %v3141, %v3140
  %v3192 = vpack.c.b16 %v3143, %v3142
  %v3193 = vpack.c.b16 %v3145, %v3144
  %v3194 = vpack.c.b16 %v3147, %v3146
  %v3195 = vpack.c.b16 %v3149, %v3148
  %v3196 = vpack.c.b16 %v3151, %v3150
  %v3197 = vpack.c.b16 %v3153, %v3152
  %v3198 = vpack.c.b16 %v3155, %v3154
  %v3199 = vpack.c.b16 %v3157, %v3156
  %v3200 = vpack.c.b16 %v3159, %v3158
  %v3201 = vpack.c.b16 %v3161, %v3160
  %v3202 = vpack.c.b16 %v3163, %v3162
  %v3203 = vpack.c.b16 %v3165, %v3164
  %v3204 = vpack.c.b16 %v3167, %v3166
  %v3205 = vpack.c.b16 %v3169, %v3168
  %v3206 = vpack.c.b16 %v3171, %v3170
  %v3207 = vpack.c.b16 %v3173, %v3172
  %v3208 = vpack.c.b16 %v3175, %v3174
  %v3209 = vpack.c.b16 %v3177, %v3176
  %3242 = vmatprep.subr.bf16.mxu0 0
  %3243 = vmatpush1.bf16.msra.mxu0 %v3178
  %3244 = vmatprep.subr.bf16.mxu0 0
  %3245 = vmatpush1.bf16.msra.mxu0 %v3179
  %3246 = vmatprep.subr.bf16.mxu0 0
  %3247 = vmatpush1.bf16.msra.mxu0 %v3180
  %3248 = vmatprep.subr.bf16.mxu0 0
  %3249 = vmatpush1.bf16.msra.mxu0 %v3181
  %3250 = vmatprep.subr.bf16.mxu0 0
  %3251 = vmatpush1.bf16.msra.mxu0 %v3182
  %3252 = vmatprep.subr.bf16.mxu0 0
  %3253 = vmatpush1.bf16.msra.mxu0 %v3183
  %3254 = vmatprep.subr.bf16.mxu0 0
  %3255 = vmatpush1.bf16.msra.mxu0 %v3184
  %3256 = vmatprep.subr.bf16.mxu0 0
  %3257 = vmatpush1.bf16.msra.mxu0 %v3185
  %3258 = vmatprep.subr.bf16.mxu0 0
  %3259 = vmatpush1.bf16.msra.mxu0 %v3186
  %3260 = vmatprep.subr.bf16.mxu0 0
  %3261 = vmatpush1.bf16.msra.mxu0 %v3187
  %3262 = vmatprep.subr.bf16.mxu0 0
  %3263 = vmatpush1.bf16.msra.mxu0 %v3188
  %3264 = vmatprep.subr.bf16.mxu0 0
  %3265 = vmatpush1.bf16.msra.mxu0 %v3189
  %3266 = vmatprep.subr.bf16.mxu0 0
  %3267 = vmatpush1.bf16.msra.mxu0 %v3190
  %3268 = vmatprep.subr.bf16.mxu0 0
  %3269 = vmatpush1.bf16.msra.mxu0 %v3191
  %3270 = vmatprep.subr.bf16.mxu0 0
  %3271 = vmatpush1.bf16.msra.mxu0 %v3192
  %3272 = vmatprep.subr.bf16.mxu0 0
  %3273 = vmatpush1.bf16.msra.mxu0 %v3193
  %3274 = vmatprep.mubr.bf16.mxu0 %v2976
  %3275 = vmatmul.mubr.bf16.gmra.mrb[0].mxu0 %v2975
  %v3276 = vpop.f32.mrb[0].mxu0
  %v3277 = vadd.f32 %v3048, %v3276
  %v3278 = vpop.f32.mrb[0].mxu0
  %v3279 = vpop.f32.mrb[0].mxu0
  %v3280 = vpop.f32.mrb[0].mxu0
  %3281 = vdwg.mxu0
  %3282 = vmatprep.subr.bf16.mxu0 0
  %3283 = vmatpush1.bf16.msra.mxu0 %v3194
  %3284 = vmatprep.subr.bf16.mxu0 0
  %3285 = vmatpush1.bf16.msra.mxu0 %v3195
  %3286 = vmatprep.subr.bf16.mxu0 0
  %3287 = vmatpush1.bf16.msra.mxu0 %v3196
  %3288 = vmatprep.subr.bf16.mxu0 0
  %3289 = vmatpush1.bf16.msra.mxu0 %v3197
  %3290 = vmatprep.subr.bf16.mxu0 0
  %3291 = vmatpush1.bf16.msra.mxu0 %v3198
  %3292 = vmatprep.subr.bf16.mxu0 0
  %3293 = vmatpush1.bf16.msra.mxu0 %v3199
  %3294 = vmatprep.subr.bf16.mxu0 0
  %3295 = vmatpush1.bf16.msra.mxu0 %v3200
  %3296 = vmatprep.subr.bf16.mxu0 0
  %3297 = vmatpush1.bf16.msra.mxu0 %v3201
  %3298 = vmatprep.subr.bf16.mxu0 0
  %3299 = vmatpush1.bf16.msra.mxu0 %v3202
  %3300 = vmatprep.subr.bf16.mxu0 0
  %3301 = vmatpush1.bf16.msra.mxu0 %v3203
  %3302 = vmatprep.subr.bf16.mxu0 0
  %3303 = vmatpush1.bf16.msra.mxu0 %v3204
  %3304 = vmatprep.subr.bf16.mxu0 0
  %3305 = vmatpush1.bf16.msra.mxu0 %v3205
  %3306 = vmatprep.subr.bf16.mxu0 0
  %3307 = vmatpush1.bf16.msra.mxu0 %v3206
  %3308 = vmatprep.subr.bf16.mxu0 0
  %3309 = vmatpush1.bf16.msra.mxu0 %v3207
  %3310 = vmatprep.subr.bf16.mxu0 0
  %3311 = vmatpush1.bf16.msra.mxu0 %v3208
  %3312 = vmatprep.subr.bf16.mxu0 0
  %3313 = vmatpush1.bf16.msra.mxu0 %v3209
  %3314 = vmatprep.mubr.bf16.mxu0 %v2978
  %3315 = vmatmul.mubr.bf16.gmra.mrb[0].mxu0 %v2977
  %v3316 = vpop.f32.mrb[0].mxu0
  %v3317 = vadd.f32 %v3277, %v3316
  %v3318 = vpop.f32.mrb[0].mxu0
  %v3319 = vpop.f32.mrb[0].mxu0
  %v3320 = vpop.f32.mrb[0].mxu0
  %3321 = vdwg.mxu0
  %3322 = vst [vmem:[%s14] sm:$0x3] %v3317
  // Predicated region
  $region54: #{convddqn_forward.3} parent=0 // pred_check
    _
  $region55: #{convddqn_forward.3} parent=0 // pred_check_branch
    %3324 = sbr.rel (0) target = $region57
  $region56: #{convddqn_forward.3} parent=0 // pred_region
    _
  $region57: #{convddqn_forward.3} parent=0 // pred_fallthru
    _
  // Predicated region
  $region58: #{convddqn_forward.3} parent=0 // pred_check
    _
  $region59: #{convddqn_forward.3} parent=0 // pred_check_branch
    %3326 = sbr.rel (0) target = $region61
  $region60: #{convddqn_forward.3} parent=0 // pred_region
    _
  $region61: #{convddqn_forward.3} parent=0 // pred_fallthru
    _
  // Predicated region
  $region62: #{convddqn_forward.3} parent=0 // pred_check
    _
  $region63: #{convddqn_forward.3} parent=0 // pred_check_branch
    %3328 = sbr.rel (0) target = $region65
  $region64: #{convddqn_forward.3} parent=0 // pred_region
    _
  $region65: #{convddqn_forward.3} parent=0 // pred_fallthru
    _
  // Predicated region
  $region66: #{convddqn_forward.3} parent=0 // pred_check
    _
  $region67: #{convddqn_forward.3} parent=0 // pred_check_branch
    %3330 = sbr.rel (0) target = $region69
  $region68: #{convddqn_forward.3} parent=0 // pred_region
    _
  $region69: #{convddqn_forward.3} parent=0 // pred_fallthru
    _

</llo_original>
